<compile_context>
chip_gen: v6e
topology: v6e:2x2x1
jax: 0.10.0
libtpu: 0.0.40
codegen_flags: <defaults>
</compile_context>

<pallas_src>
import functools

import numpy as np
import jax
import jax.numpy as jnp
from jax import lax
from jax.experimental import pallas as pl
from jax.experimental.pallas import tpu as pltpu


def fdl_kernel(x_ref, par_ref, h0_ref, c0_ref, o_ref, *, T, B, H, O, F):
    """Wavefront-interleaved LSTM0/LSTM1/GRU0/GRU1 recurrence.

    x_ref  : (T*B, F)   time-major input, batch padded to B (=8) sublane rows
    par_ref: (Rp, NW)   packed params: rows [0, 2H+2O) = block-diag fused weight,
                        rows [2H+2O, 2H+2O+F) lanes [0,4H) = W_ih0 (reordered),
                        row  2H+2O+ceil8(F)  = fused bias row.
    h0_ref, c0_ref: (2, B, H) initial LSTM states.
    o_ref  : (B, T*O)   lane-dense output.
    """
    f32 = jnp.float32
    R0 = 2 * H + 2 * O
    Fp = -(-F // 8) * 8
    R1 = R0 + Fp

    wf = par_ref[0:R0, :]                     # (2H+2O, 8H+12O) block-diag fused weight
    w_ih0 = par_ref[R0:R0 + F, 0:4 * H]       # (F, 4H) LSTM0 input weight
    bf = par_ref[R1:R1 + 1, :]                # (1, 8H+12O) fused bias row

    # Hoisted, non-recurrent input matmul for LSTM layer 0 (one MXU op total).
    gi0 = jnp.dot(x_ref[...], w_ih0, preferred_element_type=f32)       # (T*B, 4H)

    # Carried states (padded batch rows compute junk; wrapper slices them off).
    h_l0 = h0_ref[0]
    c_l0 = c0_ref[0]
    h_l1 = h0_ref[1]
    c_l1 = c0_ref[1]
    h_g0 = jnp.zeros((B, O), f32)             # PyTorch GRU default zero init
    h_g1 = jnp.zeros((B, O), f32)

    def lstm_cell(gates, c):
        # Gate order (i, f, o, g): one sigmoid slab + one tanh slab per step.
        sg = jax.nn.sigmoid(gates[:, :3 * H])
        g = jnp.tanh(gates[:, 3 * H:])
        c_new = sg[:, H:2 * H] * c + sg[:, :H] * g          # f*c + i*g
        h_new = sg[:, 2 * H:3 * H] * jnp.tanh(c_new)        # o*tanh(c)
        return h_new, c_new

    def gru_cell(gi, gh, h):
        # Gate order (r, z, n); b_ih is inside gi, b_hh inside gh (so the n-gate
        # b_hh stays inside r*(...), matching PyTorch).
        rz = jax.nn.sigmoid(gi[:, :2 * O] + gh[:, :2 * O])
        n = jnp.tanh(gi[:, 2 * O:] + rz[:, :O] * gh[:, 2 * O:])
        return (1.0 - rz[:, O:]) * n + rz[:, O:] * h

    # Wavefront: step s computes LSTM0(t=s), LSTM1(t=s-1), GRU0(t=s-2), GRU1(t=s-3).
    # One fused block-diagonal matmul per step produces every active layer's
    # hidden-/input-chain gates from the carried states of the previous step,
    # shortening the dependent MXU chain from 4T to T+3 issues.  Fully unrolled.
    for s in range(T + 3):
        v = jnp.concatenate([h_l0, h_l1, h_g0, h_g1], axis=1)          # (B, 2H+2O)
        g = jnp.dot(v, wf, preferred_element_type=f32) + bf            # (B, 8H+12O)

        if s < T:                                           # LSTM layer 0, t = s
            h_l0, c_l0 = lstm_cell(g[:, 0:4 * H] + gi0[s * B:(s + 1) * B], c_l0)
        if 0 <= s - 1 < T:                                  # LSTM layer 1, t = s-1
            h_l1, c_l1 = lstm_cell(g[:, 4 * H:8 * H], c_l1)
        if 0 <= s - 2 < T:                                  # GRU layer 0, t = s-2
            h_g0 = gru_cell(g[:, 8 * H:8 * H + 3 * O],
                            g[:, 8 * H + 3 * O:8 * H + 6 * O], h_g0)
        if 0 <= s - 3 < T:                                  # GRU layer 1, t = s-3
            h_g1 = gru_cell(g[:, 8 * H + 6 * O:8 * H + 9 * O],
                            g[:, 8 * H + 9 * O:8 * H + 12 * O], h_g1)
            t = s - 3
            o_ref[:, t * O:(t + 1) * O] = h_g1              # store spread across loop


def pack_params(p, F):
    """One-time parameter prep (cache this!): LSTM gate reorder (i,f,g,o)->(i,f,o,g),
    block-diagonal wavefront weight fusion, and packing into a single f32 buffer so
    the kernel sees exactly one parameter DMA."""
    H = p["lstm_w_hh0"].shape[0]
    O = p["gru_w_hh0"].shape[0]

    def reord(w):
        w = np.asarray(w)
        return np.concatenate([w[:, :2 * H], w[:, 3 * H:], w[:, 2 * H:3 * H]], axis=1)

    R0 = 2 * H + 2 * O                      # carried-state lanes: h_l0 | h_l1 | h_g0 | h_g1
    NW = 8 * H + 12 * O                     # lstm0 | lstm1 | gru0 gi | gru0 gh | gru1 gi | gru1 gh
    Fp = -(-F // 8) * 8
    R1 = R0 + Fp
    rows = -(-(R1 + 1) // 8) * 8

    buf = np.zeros((rows, NW), np.float32)
    # Block-diagonal fused weight (rows index the carried-state vector).
    buf[0:H, 0:4 * H] = reord(p["lstm_w_hh0"])                                 # h_l0 -> LSTM0 gates
    buf[0:H, 4 * H:8 * H] = reord(p["lstm_w_ih1"])                             # h_l0 -> LSTM1 input gates
    buf[H:2 * H, 4 * H:8 * H] = reord(p["lstm_w_hh1"])                         # h_l1 -> LSTM1 hidden gates
    buf[H:2 * H, 8 * H:8 * H + 3 * O] = np.asarray(p["gru_w_ih0"])             # h_l1 -> GRU0 gi
    buf[2 * H:2 * H + O, 8 * H + 3 * O:8 * H + 6 * O] = np.asarray(p["gru_w_hh0"])   # h_g0 -> GRU0 gh
    buf[2 * H:2 * H + O, 8 * H + 6 * O:8 * H + 9 * O] = np.asarray(p["gru_w_ih1"])   # h_g0 -> GRU1 gi
    buf[2 * H + O:2 * H + 2 * O, 8 * H + 9 * O:8 * H + 12 * O] = np.asarray(p["gru_w_hh1"])  # h_g1 -> GRU1 gh
    # LSTM layer-0 input weight (hoisted x matmul inside the kernel).
    buf[R0:R0 + F, 0:4 * H] = reord(p["lstm_w_ih0"])
    # Fused bias row (LSTM biases = b_ih + b_hh combined; GRU b_ih / b_hh kept split).
    buf[R1, 0:4 * H] = reord(p["lstm_b0"])[0]
    buf[R1, 4 * H:8 * H] = reord(p["lstm_b1"])[0]
    buf[R1, 8 * H:8 * H + 3 * O] = np.asarray(p["gru_b_ih0"])[0]
    buf[R1, 8 * H + 3 * O:8 * H + 6 * O] = np.asarray(p["gru_b_hh0"])[0]
    buf[R1, 8 * H + 6 * O:8 * H + 9 * O] = np.asarray(p["gru_b_ih1"])[0]
    buf[R1, 8 * H + 9 * O:8 * H + 12 * O] = np.asarray(p["gru_b_hh1"])[0]
    return jnp.asarray(buf)


def fdl_forward(x, packed, h0, c0, *, O, Bp=8):
    """x: (batch, 1, seq_length, num_node) -> (batch, num_node, output_size)."""
    B, C, F, T = x.shape
    assert C == 1
    H = h0.shape[-1]
    # Lane-layout assumptions this kernel was tuned for (see perf review).
    assert 4 * H == 128 and 3 * O == 48 and T * O == 128 and B <= Bp

    # squeeze + permute(0,2,1) -> (B,T,F); kernel wants time-major with the batch
    # padded to the 8-row f32 sublane tile so every per-step slice/store is aligned.
    xt = jnp.transpose(x[:, 0].astype(jnp.float32), (2, 0, 1))                 # (T, B, F)
    xs = jnp.zeros((T, Bp, F), jnp.float32).at[:, :B].set(xt).reshape(T * Bp, F)
    h0p = jnp.zeros((2, Bp, H), jnp.float32).at[:, :B].set(h0)
    c0p = jnp.zeros((2, Bp, H), jnp.float32).at[:, :B].set(c0)

    vmem = pl.BlockSpec(memory_space=pltpu.MemorySpace.VMEM)
    out = pl.pallas_call(
        functools.partial(fdl_kernel, T=T, B=Bp, H=H, O=O, F=F),
        out_shape=jax.ShapeDtypeStruct((Bp, T * O), jnp.float32),
        in_specs=[vmem] * 4,
        out_specs=vmem,
    )(xs, packed, h0p, c0p)

    # (Bp, T*O) -> drop batch padding -> (B, T, O): pure slice + reshape, no transpose.
    return out[:B].reshape(B, T, O)


# ---------------- pure-JAX reference (for correctness check) ----------------
def fdl_reference(x, p, h0, c0):
    O = p["gru_w_hh0"].shape[0]
    xs = jnp.transpose(x[:, 0].astype(jnp.float32), (0, 2, 1))  # (B, T, F)

    def lstm_layer(seq, h, c, w_ih, w_hh, b):
        def step(carry, x_t):
            h, c = carry
            gates = x_t @ w_ih + h @ w_hh + b
            i, f, g, o = jnp.split(gates, 4, axis=-1)
            i, f, o = jax.nn.sigmoid(i), jax.nn.sigmoid(f), jax.nn.sigmoid(o)
            g = jnp.tanh(g)
            c = f * c + i * g
            h = o * jnp.tanh(c)
            return (h, c), h
        _, ys = lax.scan(step, (h, c), jnp.transpose(seq, (1, 0, 2)))
        return jnp.transpose(ys, (1, 0, 2))

    def gru_layer(seq, h, w_ih, w_hh, b_ih, b_hh):
        def step(h, x_t):
            gi = x_t @ w_ih + b_ih
            gh = h @ w_hh + b_hh
            r = jax.nn.sigmoid(gi[:, 0 * O:1 * O] + gh[:, 0 * O:1 * O])
            z = jax.nn.sigmoid(gi[:, 1 * O:2 * O] + gh[:, 1 * O:2 * O])
            n = jnp.tanh(gi[:, 2 * O:3 * O] + r * gh[:, 2 * O:3 * O])
            h = (1.0 - z) * n + z * h
            return h, h
        _, ys = lax.scan(step, h, jnp.transpose(seq, (1, 0, 2)))
        return jnp.transpose(ys, (1, 0, 2))

    y = lstm_layer(xs, h0[0], c0[0], p["lstm_w_ih0"], p["lstm_w_hh0"], p["lstm_b0"])
    y = lstm_layer(y, h0[1], c0[1], p["lstm_w_ih1"], p["lstm_w_hh1"], p["lstm_b1"])
    B = xs.shape[0]
    y = gru_layer(y, jnp.zeros((B, O), jnp.float32),
                  p["gru_w_ih0"], p["gru_w_hh0"], p["gru_b_ih0"], p["gru_b_hh0"])
    y = gru_layer(y, jnp.zeros((B, O), jnp.float32),
                  p["gru_w_ih1"], p["gru_w_hh1"], p["gru_b_ih1"], p["gru_b_hh1"])
    return y


def init_params(key, F, H, O):
    """Deterministic synthetic weights (PyTorch-style uniform(-1/sqrt(h), 1/sqrt(h)))."""
    ks = jax.random.split(key, 16)
    kl = 1.0 / np.sqrt(H)
    kg = 1.0 / np.sqrt(O)
    u = lambda k, shape, s: jax.random.uniform(k, shape, jnp.float32, -s, s)
    return {
        # LSTM (canonical gate order i,f,g,o), b = b_ih + b_hh folded together
        "lstm_w_ih0": u(ks[0], (F, 4 * H), kl),
        "lstm_w_hh0": u(ks[1], (H, 4 * H), kl),
        "lstm_b0":    u(ks[2], (1, 4 * H), kl),
        "lstm_w_ih1": u(ks[3], (H, 4 * H), kl),
        "lstm_w_hh1": u(ks[4], (H, 4 * H), kl),
        "lstm_b1":    u(ks[5], (1, 4 * H), kl),
        # GRU (gate order r,z,n), b_ih / b_hh kept separate (needed for n gate)
        "gru_w_ih0":  u(ks[6], (H, 3 * O), kg),
        "gru_w_hh0":  u(ks[7], (O, 3 * O), kg),
        "gru_b_ih0":  u(ks[8], (1, 3 * O), kg),
        "gru_b_hh0":  u(ks[9], (1, 3 * O), kg),
        "gru_w_ih1":  u(ks[10], (O, 3 * O), kg),
        "gru_w_hh1":  u(ks[11], (O, 3 * O), kg),
        "gru_b_ih1":  u(ks[12], (1, 3 * O), kg),
        "gru_b_hh1":  u(ks[13], (1, 3 * O), kg),
    }


if __name__ == "__main__":
    # batch=2, in_channels=1, seq_length=8 (LSTM feature dim), num_node=8 (time),
    # hidden_size=32, output_size=16, num_layers=2
    B, F, T = 2, 8, 8
    H, O = 32, 16

    key = jax.random.PRNGKey(0)
    k_x, k_p, k_h, k_c = jax.random.split(key, 4)

    x = jax.random.normal(k_x, (B, 1, F, T), jnp.float32)
    params = init_params(k_p, F, H, O)
    # deterministic stand-in for the torch.randn h_0 / c_0 drawn in forward()
    h0 = jax.random.normal(k_h, (2, B, H), jnp.float32)
    c0 = jax.random.normal(k_c, (2, B, H), jnp.float32)

    # One-time (cached) parameter packing: gate reorder + block-diag fusion + single DMA buffer.
    packed = pack_params(params, F)

    out = jax.block_until_ready(fdl_forward(x, packed, h0, c0, O=O))
    ref = jax.block_until_ready(fdl_reference(x, params, h0, c0))
    assert out.shape == (B, T, O), out.shape
    np.testing.assert_allclose(np.asarray(out), np.asarray(ref), rtol=5e-4, atol=5e-4)

    # TODO(synk): entropy_weight / grey_relational_analysis and self.fc/self.relu are
    # defined on the module but never used in forward(); not implemented in the kernel.
    print("KERNEL_OK")
</pallas_src>

<mosaic_0001>
module attributes {stable_mosaic.version = 11 : i64} {
  func.func @fdl_kernel(%arg0: memref<64x8xf32, #tpu.memory_space<vmem>>, %arg1: memref<112x448xf32, #tpu.memory_space<vmem>>, %arg2: memref<2x8x32xf32, #tpu.memory_space<vmem>>, %arg3: memref<2x8x32xf32, #tpu.memory_space<vmem>>, %arg4: memref<8x128xf32, #tpu.memory_space<vmem>>) attributes {dimension_semantics = [], scalar_prefetch = 0 : i64, scratch_operands = 0 : i64, tpu.core_type = #tpu.core_type<tc>} {
    %c0 = arith.constant 0 : index
    %c0_0 = arith.constant 0 : index
    %0 = vector.load %arg1[%c0, %c0_0] : memref<112x448xf32, #tpu.memory_space<vmem>>, vector<96x448xf32>
    %c96 = arith.constant 96 : index
    %c0_1 = arith.constant 0 : index
    %1 = vector.load %arg1[%c96, %c0_1] : memref<112x448xf32, #tpu.memory_space<vmem>>, vector<8x128xf32>
    %c104 = arith.constant 104 : index
    %c0_2 = arith.constant 0 : index
    %2 = vector.load %arg1[%c104, %c0_2] : memref<112x448xf32, #tpu.memory_space<vmem>>, vector<1x448xf32>
    %c0_3 = arith.constant 0 : index
    %c0_4 = arith.constant 0 : index
    %3 = vector.load %arg0[%c0_3, %c0_4] : memref<64x8xf32, #tpu.memory_space<vmem>>, vector<64x8xf32>
    %cst = arith.constant dense<0.000000e+00> : vector<64x128xf32>
    %4 = tpu.matmul %3, %1, %cst {dimension_numbers = #tpu.dot_dimension_numbers<[1], [0], [0], [1], [0, 0, 1, 1], [], []>} : vector<64x8xf32>, vector<8x128xf32>, vector<64x128xf32> -> vector<64x128xf32>
    %c0_5 = arith.constant 0 : index
    %c0_6 = arith.constant 0 : index
    %c0_7 = arith.constant 0 : index
    %5 = vector.load %arg2[%c0_5, %c0_6, %c0_7] : memref<2x8x32xf32, #tpu.memory_space<vmem>>, vector<1x8x32xf32>
    %6 = vector.shape_cast %5 : vector<1x8x32xf32> to vector<8x32xf32>
    %c0_8 = arith.constant 0 : index
    %c0_9 = arith.constant 0 : index
    %c0_10 = arith.constant 0 : index
    %7 = vector.load %arg3[%c0_8, %c0_9, %c0_10] : memref<2x8x32xf32, #tpu.memory_space<vmem>>, vector<1x8x32xf32>
    %8 = vector.shape_cast %7 : vector<1x8x32xf32> to vector<8x32xf32>
    %c1 = arith.constant 1 : index
    %c0_11 = arith.constant 0 : index
    %c0_12 = arith.constant 0 : index
    %9 = vector.load %arg2[%c1, %c0_11, %c0_12] : memref<2x8x32xf32, #tpu.memory_space<vmem>>, vector<1x8x32xf32>
    %10 = vector.shape_cast %9 : vector<1x8x32xf32> to vector<8x32xf32>
    %c1_13 = arith.constant 1 : index
    %c0_14 = arith.constant 0 : index
    %c0_15 = arith.constant 0 : index
    %11 = vector.load %arg3[%c1_13, %c0_14, %c0_15] : memref<2x8x32xf32, #tpu.memory_space<vmem>>, vector<1x8x32xf32>
    %12 = vector.shape_cast %11 : vector<1x8x32xf32> to vector<8x32xf32>
    %cst_16 = arith.constant 0.000000e+00 : f32
    %13 = vector.broadcast %cst_16 : f32 to vector<8x16xf32>
    %cst_17 = arith.constant 0.000000e+00 : f32
    %14 = vector.broadcast %cst_17 : f32 to vector<8x16xf32>
    %15 = tpu.concatenate %6, %10, %13, %14 in 1 : vector<8x32xf32>, vector<8x32xf32>, vector<8x16xf32>, vector<8x16xf32> -> vector<8x96xf32>
    %cst_18 = arith.constant dense<0.000000e+00> : vector<8x448xf32>
    %16 = tpu.matmul %15, %0, %cst_18 {dimension_numbers = #tpu.dot_dimension_numbers<[1], [0], [0], [1], [0, 0, 1, 1], [], []>} : vector<8x96xf32>, vector<96x448xf32>, vector<8x448xf32> -> vector<8x448xf32>
    %17 = vector.broadcast %2 : vector<1x448xf32> to vector<8x448xf32>
    %18 = arith.addf %16, %17 : vector<8x448xf32>
    %19 = vector.extract_strided_slice %18 {offsets = [0, 0], sizes = [8, 128], strides = [1, 1]} : vector<8x448xf32> to vector<8x128xf32>
    %20 = vector.extract_strided_slice %4 {offsets = [0, 0], sizes = [8, 128], strides = [1, 1]} : vector<64x128xf32> to vector<8x128xf32>
    %21 = arith.addf %19, %20 : vector<8x128xf32>
    %22 = vector.extract_strided_slice %21 {offsets = [0, 0], sizes = [8, 96], strides = [1, 1]} : vector<8x128xf32> to vector<8x96xf32>
    %23 = arith.negf %22 : vector<8x96xf32>
    %24 = math.exp %23 : vector<8x96xf32>
    %cst_19 = arith.constant 1.000000e+00 : f32
    %25 = vector.broadcast %cst_19 : f32 to vector<8x96xf32>
    %26 = arith.addf %25, %24 : vector<8x96xf32>
    %27 = arith.divf %25, %26 : vector<8x96xf32>
    %28 = vector.extract_strided_slice %21 {offsets = [0, 96], sizes = [8, 32], strides = [1, 1]} : vector<8x128xf32> to vector<8x32xf32>
    %29 = math.tanh %28 : vector<8x32xf32>
    %30 = vector.extract_strided_slice %27 {offsets = [0, 32], sizes = [8, 32], strides = [1, 1]} : vector<8x96xf32> to vector<8x32xf32>
    %31 = arith.mulf %30, %8 : vector<8x32xf32>
    %32 = vector.extract_strided_slice %27 {offsets = [0, 0], sizes = [8, 32], strides = [1, 1]} : vector<8x96xf32> to vector<8x32xf32>
    %33 = arith.mulf %32, %29 : vector<8x32xf32>
    %34 = arith.addf %31, %33 : vector<8x32xf32>
    %35 = vector.extract_strided_slice %27 {offsets = [0, 64], sizes = [8, 32], strides = [1, 1]} : vector<8x96xf32> to vector<8x32xf32>
    %36 = math.tanh %34 : vector<8x32xf32>
    %37 = arith.mulf %35, %36 : vector<8x32xf32>
    %38 = tpu.concatenate %37, %10, %13, %14 in 1 : vector<8x32xf32>, vector<8x32xf32>, vector<8x16xf32>, vector<8x16xf32> -> vector<8x96xf32>
    %cst_20 = arith.constant dense<0.000000e+00> : vector<8x448xf32>
    %39 = tpu.matmul %38, %0, %cst_20 {dimension_numbers = #tpu.dot_dimension_numbers<[1], [0], [0], [1], [0, 0, 1, 1], [], []>} : vector<8x96xf32>, vector<96x448xf32>, vector<8x448xf32> -> vector<8x448xf32>
    %40 = vector.broadcast %2 : vector<1x448xf32> to vector<8x448xf32>
    %41 = arith.addf %39, %40 : vector<8x448xf32>
    %42 = vector.extract_strided_slice %41 {offsets = [0, 0], sizes = [8, 128], strides = [1, 1]} : vector<8x448xf32> to vector<8x128xf32>
    %43 = vector.extract_strided_slice %4 {offsets = [8, 0], sizes = [8, 128], strides = [1, 1]} : vector<64x128xf32> to vector<8x128xf32>
    %44 = arith.addf %42, %43 : vector<8x128xf32>
    %45 = vector.extract_strided_slice %44 {offsets = [0, 0], sizes = [8, 96], strides = [1, 1]} : vector<8x128xf32> to vector<8x96xf32>
    %46 = arith.negf %45 : vector<8x96xf32>
    %47 = math.exp %46 : vector<8x96xf32>
    %cst_21 = arith.constant 1.000000e+00 : f32
    %48 = vector.broadcast %cst_21 : f32 to vector<8x96xf32>
    %49 = arith.addf %48, %47 : vector<8x96xf32>
    %50 = arith.divf %48, %49 : vector<8x96xf32>
    %51 = vector.extract_strided_slice %44 {offsets = [0, 96], sizes = [8, 32], strides = [1, 1]} : vector<8x128xf32> to vector<8x32xf32>
    %52 = math.tanh %51 : vector<8x32xf32>
    %53 = vector.extract_strided_slice %50 {offsets = [0, 32], sizes = [8, 32], strides = [1, 1]} : vector<8x96xf32> to vector<8x32xf32>
    %54 = arith.mulf %53, %34 : vector<8x32xf32>
    %55 = vector.extract_strided_slice %50 {offsets = [0, 0], sizes = [8, 32], strides = [1, 1]} : vector<8x96xf32> to vector<8x32xf32>
    %56 = arith.mulf %55, %52 : vector<8x32xf32>
    %57 = arith.addf %54, %56 : vector<8x32xf32>
    %58 = vector.extract_strided_slice %50 {offsets = [0, 64], sizes = [8, 32], strides = [1, 1]} : vector<8x96xf32> to vector<8x32xf32>
    %59 = math.tanh %57 : vector<8x32xf32>
    %60 = arith.mulf %58, %59 : vector<8x32xf32>
    %61 = vector.extract_strided_slice %41 {offsets = [0, 128], sizes = [8, 128], strides = [1, 1]} : vector<8x448xf32> to vector<8x128xf32>
    %62 = vector.extract_strided_slice %61 {offsets = [0, 0], sizes = [8, 96], strides = [1, 1]} : vector<8x128xf32> to vector<8x96xf32>
    %63 = arith.negf %62 : vector<8x96xf32>
    %64 = math.exp %63 : vector<8x96xf32>
    %cst_22 = arith.constant 1.000000e+00 : f32
    %65 = vector.broadcast %cst_22 : f32 to vector<8x96xf32>
    %66 = arith.addf %65, %64 : vector<8x96xf32>
    %67 = arith.divf %65, %66 : vector<8x96xf32>
    %68 = vector.extract_strided_slice %61 {offsets = [0, 96], sizes = [8, 32], strides = [1, 1]} : vector<8x128xf32> to vector<8x32xf32>
    %69 = math.tanh %68 : vector<8x32xf32>
    %70 = vector.extract_strided_slice %67 {offsets = [0, 32], sizes = [8, 32], strides = [1, 1]} : vector<8x96xf32> to vector<8x32xf32>
    %71 = arith.mulf %70, %12 : vector<8x32xf32>
    %72 = vector.extract_strided_slice %67 {offsets = [0, 0], sizes = [8, 32], strides = [1, 1]} : vector<8x96xf32> to vector<8x32xf32>
    %73 = arith.mulf %72, %69 : vector<8x32xf32>
    %74 = arith.addf %71, %73 : vector<8x32xf32>
    %75 = vector.extract_strided_slice %67 {offsets = [0, 64], sizes = [8, 32], strides = [1, 1]} : vector<8x96xf32> to vector<8x32xf32>
    %76 = math.tanh %74 : vector<8x32xf32>
    %77 = arith.mulf %75, %76 : vector<8x32xf32>
    %78 = tpu.concatenate %60, %77, %13, %14 in 1 : vector<8x32xf32>, vector<8x32xf32>, vector<8x16xf32>, vector<8x16xf32> -> vector<8x96xf32>
    %cst_23 = arith.constant dense<0.000000e+00> : vector<8x448xf32>
    %79 = tpu.matmul %78, %0, %cst_23 {dimension_numbers = #tpu.dot_dimension_numbers<[1], [0], [0], [1], [0, 0, 1, 1], [], []>} : vector<8x96xf32>, vector<96x448xf32>, vector<8x448xf32> -> vector<8x448xf32>
    %80 = vector.broadcast %2 : vector<1x448xf32> to vector<8x448xf32>
    %81 = arith.addf %79, %80 : vector<8x448xf32>
    %82 = vector.extract_strided_slice %81 {offsets = [0, 0], sizes = [8, 128], strides = [1, 1]} : vector<8x448xf32> to vector<8x128xf32>
    %83 = vector.extract_strided_slice %4 {offsets = [16, 0], sizes = [8, 128], strides = [1, 1]} : vector<64x128xf32> to vector<8x128xf32>
    %84 = arith.addf %82, %83 : vector<8x128xf32>
    %85 = vector.extract_strided_slice %84 {offsets = [0, 0], sizes = [8, 96], strides = [1, 1]} : vector<8x128xf32> to vector<8x96xf32>
    %86 = arith.negf %85 : vector<8x96xf32>
    %87 = math.exp %86 : vector<8x96xf32>
    %cst_24 = arith.constant 1.000000e+00 : f32
    %88 = vector.broadcast %cst_24 : f32 to vector<8x96xf32>
    %89 = arith.addf %88, %87 : vector<8x96xf32>
    %90 = arith.divf %88, %89 : vector<8x96xf32>
    %91 = vector.extract_strided_slice %84 {offsets = [0, 96], sizes = [8, 32], strides = [1, 1]} : vector<8x128xf32> to vector<8x32xf32>
    %92 = math.tanh %91 : vector<8x32xf32>
    %93 = vector.extract_strided_slice %90 {offsets = [0, 32], sizes = [8, 32], strides = [1, 1]} : vector<8x96xf32> to vector<8x32xf32>
    %94 = arith.mulf %93, %57 : vector<8x32xf32>
    %95 = vector.extract_strided_slice %90 {offsets = [0, 0], sizes = [8, 32], strides = [1, 1]} : vector<8x96xf32> to vector<8x32xf32>
    %96 = arith.mulf %95, %92 : vector<8x32xf32>
    %97 = arith.addf %94, %96 : vector<8x32xf32>
    %98 = vector.extract_strided_slice %90 {offsets = [0, 64], sizes = [8, 32], strides = [1, 1]} : vector<8x96xf32> to vector<8x32xf32>
    %99 = math.tanh %97 : vector<8x32xf32>
    %100 = arith.mulf %98, %99 : vector<8x32xf32>
    %101 = vector.extract_strided_slice %81 {offsets = [0, 128], sizes = [8, 128], strides = [1, 1]} : vector<8x448xf32> to vector<8x128xf32>
    %102 = vector.extract_strided_slice %101 {offsets = [0, 0], sizes = [8, 96], strides = [1, 1]} : vector<8x128xf32> to vector<8x96xf32>
    %103 = arith.negf %102 : vector<8x96xf32>
    %104 = math.exp %103 : vector<8x96xf32>
    %cst_25 = arith.constant 1.000000e+00 : f32
    %105 = vector.broadcast %cst_25 : f32 to vector<8x96xf32>
    %106 = arith.addf %105, %104 : vector<8x96xf32>
    %107 = arith.divf %105, %106 : vector<8x96xf32>
    %108 = vector.extract_strided_slice %101 {offsets = [0, 96], sizes = [8, 32], strides = [1, 1]} : vector<8x128xf32> to vector<8x32xf32>
    %109 = math.tanh %108 : vector<8x32xf32>
    %110 = vector.extract_strided_slice %107 {offsets = [0, 32], sizes = [8, 32], strides = [1, 1]} : vector<8x96xf32> to vector<8x32xf32>
    %111 = arith.mulf %110, %74 : vector<8x32xf32>
    %112 = vector.extract_strided_slice %107 {offsets = [0, 0], sizes = [8, 32], strides = [1, 1]} : vector<8x96xf32> to vector<8x32xf32>
    %113 = arith.mulf %112, %109 : vector<8x32xf32>
    %114 = arith.addf %111, %113 : vector<8x32xf32>
    %115 = vector.extract_strided_slice %107 {offsets = [0, 64], sizes = [8, 32], strides = [1, 1]} : vector<8x96xf32> to vector<8x32xf32>
    %116 = math.tanh %114 : vector<8x32xf32>
    %117 = arith.mulf %115, %116 : vector<8x32xf32>
    %118 = vector.extract_strided_slice %81 {offsets = [0, 256], sizes = [8, 48], strides = [1, 1]} : vector<8x448xf32> to vector<8x48xf32>
    %119 = vector.extract_strided_slice %81 {offsets = [0, 304], sizes = [8, 48], strides = [1, 1]} : vector<8x448xf32> to vector<8x48xf32>
    %120 = vector.extract_strided_slice %118 {offsets = [0, 0], sizes = [8, 32], strides = [1, 1]} : vector<8x48xf32> to vector<8x32xf32>
    %121 = vector.extract_strided_slice %119 {offsets = [0, 0], sizes = [8, 32], strides = [1, 1]} : vector<8x48xf32> to vector<8x32xf32>
    %122 = arith.addf %120, %121 : vector<8x32xf32>
    %123 = arith.negf %122 : vector<8x32xf32>
    %124 = math.exp %123 : vector<8x32xf32>
    %cst_26 = arith.constant 1.000000e+00 : f32
    %125 = vector.broadcast %cst_26 : f32 to vector<8x32xf32>
    %126 = arith.addf %125, %124 : vector<8x32xf32>
    %127 = arith.divf %125, %126 : vector<8x32xf32>
    %128 = vector.extract_strided_slice %118 {offsets = [0, 32], sizes = [8, 16], strides = [1, 1]} : vector<8x48xf32> to vector<8x16xf32>
    %129 = vector.extract_strided_slice %127 {offsets = [0, 0], sizes = [8, 16], strides = [1, 1]} : vector<8x32xf32> to vector<8x16xf32>
    %130 = vector.extract_strided_slice %119 {offsets = [0, 32], sizes = [8, 16], strides = [1, 1]} : vector<8x48xf32> to vector<8x16xf32>
    %131 = arith.mulf %129, %130 : vector<8x16xf32>
    %132 = arith.addf %128, %131 : vector<8x16xf32>
    %133 = math.tanh %132 : vector<8x16xf32>
    %134 = vector.extract_strided_slice %127 {offsets = [0, 16], sizes = [8, 16], strides = [1, 1]} : vector<8x32xf32> to vector<8x16xf32>
    %cst_27 = arith.constant 1.000000e+00 : f32
    %135 = vector.broadcast %cst_27 : f32 to vector<8x16xf32>
    %136 = arith.subf %135, %134 : vector<8x16xf32>
    %137 = arith.mulf %136, %133 : vector<8x16xf32>
    %138 = vector.extract_strided_slice %127 {offsets = [0, 16], sizes = [8, 16], strides = [1, 1]} : vector<8x32xf32> to vector<8x16xf32>
    %139 = arith.mulf %138, %13 : vector<8x16xf32>
    %140 = arith.addf %137, %139 : vector<8x16xf32>
    %141 = tpu.concatenate %100, %117, %140, %14 in 1 : vector<8x32xf32>, vector<8x32xf32>, vector<8x16xf32>, vector<8x16xf32> -> vector<8x96xf32>
    %cst_28 = arith.constant dense<0.000000e+00> : vector<8x448xf32>
    %142 = tpu.matmul %141, %0, %cst_28 {dimension_numbers = #tpu.dot_dimension_numbers<[1], [0], [0], [1], [0, 0, 1, 1], [], []>} : vector<8x96xf32>, vector<96x448xf32>, vector<8x448xf32> -> vector<8x448xf32>
    %143 = vector.broadcast %2 : vector<1x448xf32> to vector<8x448xf32>
    %144 = arith.addf %142, %143 : vector<8x448xf32>
    %145 = vector.extract_strided_slice %144 {offsets = [0, 0], sizes = [8, 128], strides = [1, 1]} : vector<8x448xf32> to vector<8x128xf32>
    %146 = vector.extract_strided_slice %4 {offsets = [24, 0], sizes = [8, 128], strides = [1, 1]} : vector<64x128xf32> to vector<8x128xf32>
    %147 = arith.addf %145, %146 : vector<8x128xf32>
    %148 = vector.extract_strided_slice %147 {offsets = [0, 0], sizes = [8, 96], strides = [1, 1]} : vector<8x128xf32> to vector<8x96xf32>
    %149 = arith.negf %148 : vector<8x96xf32>
    %150 = math.exp %149 : vector<8x96xf32>
    %cst_29 = arith.constant 1.000000e+00 : f32
    %151 = vector.broadcast %cst_29 : f32 to vector<8x96xf32>
    %152 = arith.addf %151, %150 : vector<8x96xf32>
    %153 = arith.divf %151, %152 : vector<8x96xf32>
    %154 = vector.extract_strided_slice %147 {offsets = [0, 96], sizes = [8, 32], strides = [1, 1]} : vector<8x128xf32> to vector<8x32xf32>
    %155 = math.tanh %154 : vector<8x32xf32>
    %156 = vector.extract_strided_slice %153 {offsets = [0, 32], sizes = [8, 32], strides = [1, 1]} : vector<8x96xf32> to vector<8x32xf32>
    %157 = arith.mulf %156, %97 : vector<8x32xf32>
    %158 = vector.extract_strided_slice %153 {offsets = [0, 0], sizes = [8, 32], strides = [1, 1]} : vector<8x96xf32> to vector<8x32xf32>
    %159 = arith.mulf %158, %155 : vector<8x32xf32>
    %160 = arith.addf %157, %159 : vector<8x32xf32>
    %161 = vector.extract_strided_slice %153 {offsets = [0, 64], sizes = [8, 32], strides = [1, 1]} : vector<8x96xf32> to vector<8x32xf32>
    %162 = math.tanh %160 : vector<8x32xf32>
    %163 = arith.mulf %161, %162 : vector<8x32xf32>
    %164 = vector.extract_strided_slice %144 {offsets = [0, 128], sizes = [8, 128], strides = [1, 1]} : vector<8x448xf32> to vector<8x128xf32>
    %165 = vector.extract_strided_slice %164 {offsets = [0, 0], sizes = [8, 96], strides = [1, 1]} : vector<8x128xf32> to vector<8x96xf32>
    %166 = arith.negf %165 : vector<8x96xf32>
    %167 = math.exp %166 : vector<8x96xf32>
    %cst_30 = arith.constant 1.000000e+00 : f32
    %168 = vector.broadcast %cst_30 : f32 to vector<8x96xf32>
    %169 = arith.addf %168, %167 : vector<8x96xf32>
    %170 = arith.divf %168, %169 : vector<8x96xf32>
    %171 = vector.extract_strided_slice %164 {offsets = [0, 96], sizes = [8, 32], strides = [1, 1]} : vector<8x128xf32> to vector<8x32xf32>
    %172 = math.tanh %171 : vector<8x32xf32>
    %173 = vector.extract_strided_slice %170 {offsets = [0, 32], sizes = [8, 32], strides = [1, 1]} : vector<8x96xf32> to vector<8x32xf32>
    %174 = arith.mulf %173, %114 : vector<8x32xf32>
    %175 = vector.extract_strided_slice %170 {offsets = [0, 0], sizes = [8, 32], strides = [1, 1]} : vector<8x96xf32> to vector<8x32xf32>
    %176 = arith.mulf %175, %172 : vector<8x32xf32>
    %177 = arith.addf %174, %176 : vector<8x32xf32>
    %178 = vector.extract_strided_slice %170 {offsets = [0, 64], sizes = [8, 32], strides = [1, 1]} : vector<8x96xf32> to vector<8x32xf32>
    %179 = math.tanh %177 : vector<8x32xf32>
    %180 = arith.mulf %178, %179 : vector<8x32xf32>
    %181 = vector.extract_strided_slice %144 {offsets = [0, 256], sizes = [8, 48], strides = [1, 1]} : vector<8x448xf32> to vector<8x48xf32>
    %182 = vector.extract_strided_slice %144 {offsets = [0, 304], sizes = [8, 48], strides = [1, 1]} : vector<8x448xf32> to vector<8x48xf32>
    %183 = vector.extract_strided_slice %181 {offsets = [0, 0], sizes = [8, 32], strides = [1, 1]} : vector<8x48xf32> to vector<8x32xf32>
    %184 = vector.extract_strided_slice %182 {offsets = [0, 0], sizes = [8, 32], strides = [1, 1]} : vector<8x48xf32> to vector<8x32xf32>
    %185 = arith.addf %183, %184 : vector<8x32xf32>
    %186 = arith.negf %185 : vector<8x32xf32>
    %187 = math.exp %186 : vector<8x32xf32>
    %cst_31 = arith.constant 1.000000e+00 : f32
    %188 = vector.broadcast %cst_31 : f32 to vector<8x32xf32>
    %189 = arith.addf %188, %187 : vector<8x32xf32>
    %190 = arith.divf %188, %189 : vector<8x32xf32>
    %191 = vector.extract_strided_slice %181 {offsets = [0, 32], sizes = [8, 16], strides = [1, 1]} : vector<8x48xf32> to vector<8x16xf32>
    %192 = vector.extract_strided_slice %190 {offsets = [0, 0], sizes = [8, 16], strides = [1, 1]} : vector<8x32xf32> to vector<8x16xf32>
    %193 = vector.extract_strided_slice %182 {offsets = [0, 32], sizes = [8, 16], strides = [1, 1]} : vector<8x48xf32> to vector<8x16xf32>
    %194 = arith.mulf %192, %193 : vector<8x16xf32>
    %195 = arith.addf %191, %194 : vector<8x16xf32>
    %196 = math.tanh %195 : vector<8x16xf32>
    %197 = vector.extract_strided_slice %190 {offsets = [0, 16], sizes = [8, 16], strides = [1, 1]} : vector<8x32xf32> to vector<8x16xf32>
    %cst_32 = arith.constant 1.000000e+00 : f32
    %198 = vector.broadcast %cst_32 : f32 to vector<8x16xf32>
    %199 = arith.subf %198, %197 : vector<8x16xf32>
    %200 = arith.mulf %199, %196 : vector<8x16xf32>
    %201 = vector.extract_strided_slice %190 {offsets = [0, 16], sizes = [8, 16], strides = [1, 1]} : vector<8x32xf32> to vector<8x16xf32>
    %202 = arith.mulf %201, %140 : vector<8x16xf32>
    %203 = arith.addf %200, %202 : vector<8x16xf32>
    %204 = vector.extract_strided_slice %144 {offsets = [0, 352], sizes = [8, 48], strides = [1, 1]} : vector<8x448xf32> to vector<8x48xf32>
    %205 = vector.extract_strided_slice %144 {offsets = [0, 400], sizes = [8, 48], strides = [1, 1]} : vector<8x448xf32> to vector<8x48xf32>
    %206 = vector.extract_strided_slice %204 {offsets = [0, 0], sizes = [8, 32], strides = [1, 1]} : vector<8x48xf32> to vector<8x32xf32>
    %207 = vector.extract_strided_slice %205 {offsets = [0, 0], sizes = [8, 32], strides = [1, 1]} : vector<8x48xf32> to vector<8x32xf32>
    %208 = arith.addf %206, %207 : vector<8x32xf32>
    %209 = arith.negf %208 : vector<8x32xf32>
    %210 = math.exp %209 : vector<8x32xf32>
    %cst_33 = arith.constant 1.000000e+00 : f32
    %211 = vector.broadcast %cst_33 : f32 to vector<8x32xf32>
    %212 = arith.addf %211, %210 : vector<8x32xf32>
    %213 = arith.divf %211, %212 : vector<8x32xf32>
    %214 = vector.extract_strided_slice %204 {offsets = [0, 32], sizes = [8, 16], strides = [1, 1]} : vector<8x48xf32> to vector<8x16xf32>
    %215 = vector.extract_strided_slice %213 {offsets = [0, 0], sizes = [8, 16], strides = [1, 1]} : vector<8x32xf32> to vector<8x16xf32>
    %216 = vector.extract_strided_slice %205 {offsets = [0, 32], sizes = [8, 16], strides = [1, 1]} : vector<8x48xf32> to vector<8x16xf32>
    %217 = arith.mulf %215, %216 : vector<8x16xf32>
    %218 = arith.addf %214, %217 : vector<8x16xf32>
    %219 = math.tanh %218 : vector<8x16xf32>
    %220 = vector.extract_strided_slice %213 {offsets = [0, 16], sizes = [8, 16], strides = [1, 1]} : vector<8x32xf32> to vector<8x16xf32>
    %cst_34 = arith.constant 1.000000e+00 : f32
    %221 = vector.broadcast %cst_34 : f32 to vector<8x16xf32>
    %222 = arith.subf %221, %220 : vector<8x16xf32>
    %223 = arith.mulf %222, %219 : vector<8x16xf32>
    %224 = vector.extract_strided_slice %213 {offsets = [0, 16], sizes = [8, 16], strides = [1, 1]} : vector<8x32xf32> to vector<8x16xf32>
    %225 = arith.mulf %224, %14 : vector<8x16xf32>
    %226 = arith.addf %223, %225 : vector<8x16xf32>
    %c0_35 = arith.constant 0 : index
    %c0_36 = arith.constant 0 : index
    %227 = vector.load %arg4[%c0_35, %c0_36] : memref<8x128xf32, #tpu.memory_space<vmem>>, vector<8x16xf32>
    tpu.vector_store %arg4[%c0_35, %c0_36], %226 {strides = array<i32>} : memref<8x128xf32, #tpu.memory_space<vmem>>, vector<8x16xf32>,
    %228 = tpu.concatenate %163, %180, %203, %226 in 1 : vector<8x32xf32>, vector<8x32xf32>, vector<8x16xf32>, vector<8x16xf32> -> vector<8x96xf32>
    %cst_37 = arith.constant dense<0.000000e+00> : vector<8x448xf32>
    %229 = tpu.matmul %228, %0, %cst_37 {dimension_numbers = #tpu.dot_dimension_numbers<[1], [0], [0], [1], [0, 0, 1, 1], [], []>} : vector<8x96xf32>, vector<96x448xf32>, vector<8x448xf32> -> vector<8x448xf32>
    %230 = vector.broadcast %2 : vector<1x448xf32> to vector<8x448xf32>
    %231 = arith.addf %229, %230 : vector<8x448xf32>
    %232 = vector.extract_strided_slice %231 {offsets = [0, 0], sizes = [8, 128], strides = [1, 1]} : vector<8x448xf32> to vector<8x128xf32>
    %233 = vector.extract_strided_slice %4 {offsets = [32, 0], sizes = [8, 128], strides = [1, 1]} : vector<64x128xf32> to vector<8x128xf32>
    %234 = arith.addf %232, %233 : vector<8x128xf32>
    %235 = vector.extract_strided_slice %234 {offsets = [0, 0], sizes = [8, 96], strides = [1, 1]} : vector<8x128xf32> to vector<8x96xf32>
    %236 = arith.negf %235 : vector<8x96xf32>
    %237 = math.exp %236 : vector<8x96xf32>
    %cst_38 = arith.constant 1.000000e+00 : f32
    %238 = vector.broadcast %cst_38 : f32 to vector<8x96xf32>
    %239 = arith.addf %238, %237 : vector<8x96xf32>
    %240 = arith.divf %238, %239 : vector<8x96xf32>
    %241 = vector.extract_strided_slice %234 {offsets = [0, 96], sizes = [8, 32], strides = [1, 1]} : vector<8x128xf32> to vector<8x32xf32>
    %242 = math.tanh %241 : vector<8x32xf32>
    %243 = vector.extract_strided_slice %240 {offsets = [0, 32], sizes = [8, 32], strides = [1, 1]} : vector<8x96xf32> to vector<8x32xf32>
    %244 = arith.mulf %243, %160 : vector<8x32xf32>
    %245 = vector.extract_strided_slice %240 {offsets = [0, 0], sizes = [8, 32], strides = [1, 1]} : vector<8x96xf32> to vector<8x32xf32>
    %246 = arith.mulf %245, %242 : vector<8x32xf32>
    %247 = arith.addf %244, %246 : vector<8x32xf32>
    %248 = vector.extract_strided_slice %240 {offsets = [0, 64], sizes = [8, 32], strides = [1, 1]} : vector<8x96xf32> to vector<8x32xf32>
    %249 = math.tanh %247 : vector<8x32xf32>
    %250 = arith.mulf %248, %249 : vector<8x32xf32>
    %251 = vector.extract_strided_slice %231 {offsets = [0, 128], sizes = [8, 128], strides = [1, 1]} : vector<8x448xf32> to vector<8x128xf32>
    %252 = vector.extract_strided_slice %251 {offsets = [0, 0], sizes = [8, 96], strides = [1, 1]} : vector<8x128xf32> to vector<8x96xf32>
    %253 = arith.negf %252 : vector<8x96xf32>
    %254 = math.exp %253 : vector<8x96xf32>
    %cst_39 = arith.constant 1.000000e+00 : f32
    %255 = vector.broadcast %cst_39 : f32 to vector<8x96xf32>
    %256 = arith.addf %255, %254 : vector<8x96xf32>
    %257 = arith.divf %255, %256 : vector<8x96xf32>
    %258 = vector.extract_strided_slice %251 {offsets = [0, 96], sizes = [8, 32], strides = [1, 1]} : vector<8x128xf32> to vector<8x32xf32>
    %259 = math.tanh %258 : vector<8x32xf32>
    %260 = vector.extract_strided_slice %257 {offsets = [0, 32], sizes = [8, 32], strides = [1, 1]} : vector<8x96xf32> to vector<8x32xf32>
    %261 = arith.mulf %260, %177 : vector<8x32xf32>
    %262 = vector.extract_strided_slice %257 {offsets = [0, 0], sizes = [8, 32], strides = [1, 1]} : vector<8x96xf32> to vector<8x32xf32>
    %263 = arith.mulf %262, %259 : vector<8x32xf32>
    %264 = arith.addf %261, %263 : vector<8x32xf32>
    %265 = vector.extract_strided_slice %257 {offsets = [0, 64], sizes = [8, 32], strides = [1, 1]} : vector<8x96xf32> to vector<8x32xf32>
    %266 = math.tanh %264 : vector<8x32xf32>
    %267 = arith.mulf %265, %266 : vector<8x32xf32>
    %268 = vector.extract_strided_slice %231 {offsets = [0, 256], sizes = [8, 48], strides = [1, 1]} : vector<8x448xf32> to vector<8x48xf32>
    %269 = vector.extract_strided_slice %231 {offsets = [0, 304], sizes = [8, 48], strides = [1, 1]} : vector<8x448xf32> to vector<8x48xf32>
    %270 = vector.extract_strided_slice %268 {offsets = [0, 0], sizes = [8, 32], strides = [1, 1]} : vector<8x48xf32> to vector<8x32xf32>
    %271 = vector.extract_strided_slice %269 {offsets = [0, 0], sizes = [8, 32], strides = [1, 1]} : vector<8x48xf32> to vector<8x32xf32>
    %272 = arith.addf %270, %271 : vector<8x32xf32>
    %273 = arith.negf %272 : vector<8x32xf32>
    %274 = math.exp %273 : vector<8x32xf32>
    %cst_40 = arith.constant 1.000000e+00 : f32
    %275 = vector.broadcast %cst_40 : f32 to vector<8x32xf32>
    %276 = arith.addf %275, %274 : vector<8x32xf32>
    %277 = arith.divf %275, %276 : vector<8x32xf32>
    %278 = vector.extract_strided_slice %268 {offsets = [0, 32], sizes = [8, 16], strides = [1, 1]} : vector<8x48xf32> to vector<8x16xf32>
    %279 = vector.extract_strided_slice %277 {offsets = [0, 0], sizes = [8, 16], strides = [1, 1]} : vector<8x32xf32> to vector<8x16xf32>
    %280 = vector.extract_strided_slice %269 {offsets = [0, 32], sizes = [8, 16], strides = [1, 1]} : vector<8x48xf32> to vector<8x16xf32>
    %281 = arith.mulf %279, %280 : vector<8x16xf32>
    %282 = arith.addf %278, %281 : vector<8x16xf32>
    %283 = math.tanh %282 : vector<8x16xf32>
    %284 = vector.extract_strided_slice %277 {offsets = [0, 16], sizes = [8, 16], strides = [1, 1]} : vector<8x32xf32> to vector<8x16xf32>
    %cst_41 = arith.constant 1.000000e+00 : f32
    %285 = vector.broadcast %cst_41 : f32 to vector<8x16xf32>
    %286 = arith.subf %285, %284 : vector<8x16xf32>
    %287 = arith.mulf %286, %283 : vector<8x16xf32>
    %288 = vector.extract_strided_slice %277 {offsets = [0, 16], sizes = [8, 16], strides = [1, 1]} : vector<8x32xf32> to vector<8x16xf32>
    %289 = arith.mulf %288, %203 : vector<8x16xf32>
    %290 = arith.addf %287, %289 : vector<8x16xf32>
    %291 = vector.extract_strided_slice %231 {offsets = [0, 352], sizes = [8, 48], strides = [1, 1]} : vector<8x448xf32> to vector<8x48xf32>
    %292 = vector.extract_strided_slice %231 {offsets = [0, 400], sizes = [8, 48], strides = [1, 1]} : vector<8x448xf32> to vector<8x48xf32>
    %293 = vector.extract_strided_slice %291 {offsets = [0, 0], sizes = [8, 32], strides = [1, 1]} : vector<8x48xf32> to vector<8x32xf32>
    %294 = vector.extract_strided_slice %292 {offsets = [0, 0], sizes = [8, 32], strides = [1, 1]} : vector<8x48xf32> to vector<8x32xf32>
    %295 = arith.addf %293, %294 : vector<8x32xf32>
    %296 = arith.negf %295 : vector<8x32xf32>
    %297 = math.exp %296 : vector<8x32xf32>
    %cst_42 = arith.constant 1.000000e+00 : f32
    %298 = vector.broadcast %cst_42 : f32 to vector<8x32xf32>
    %299 = arith.addf %298, %297 : vector<8x32xf32>
    %300 = arith.divf %298, %299 : vector<8x32xf32>
    %301 = vector.extract_strided_slice %291 {offsets = [0, 32], sizes = [8, 16], strides = [1, 1]} : vector<8x48xf32> to vector<8x16xf32>
    %302 = vector.extract_strided_slice %300 {offsets = [0, 0], sizes = [8, 16], strides = [1, 1]} : vector<8x32xf32> to vector<8x16xf32>
    %303 = vector.extract_strided_slice %292 {offsets = [0, 32], sizes = [8, 16], strides = [1, 1]} : vector<8x48xf32> to vector<8x16xf32>
    %304 = arith.mulf %302, %303 : vector<8x16xf32>
    %305 = arith.addf %301, %304 : vector<8x16xf32>
    %306 = math.tanh %305 : vector<8x16xf32>
    %307 = vector.extract_strided_slice %300 {offsets = [0, 16], sizes = [8, 16], strides = [1, 1]} : vector<8x32xf32> to vector<8x16xf32>
    %cst_43 = arith.constant 1.000000e+00 : f32
    %308 = vector.broadcast %cst_43 : f32 to vector<8x16xf32>
    %309 = arith.subf %308, %307 : vector<8x16xf32>
    %310 = arith.mulf %309, %306 : vector<8x16xf32>
    %311 = vector.extract_strided_slice %300 {offsets = [0, 16], sizes = [8, 16], strides = [1, 1]} : vector<8x32xf32> to vector<8x16xf32>
    %312 = arith.mulf %311, %226 : vector<8x16xf32>
    %313 = arith.addf %310, %312 : vector<8x16xf32>
    %c0_44 = arith.constant 0 : index
    %c16 = arith.constant 16 : index
    %314 = vector.load %arg4[%c0_44, %c16] : memref<8x128xf32, #tpu.memory_space<vmem>>, vector<8x16xf32>
    tpu.vector_store %arg4[%c0_44, %c16], %313 {strides = array<i32>} : memref<8x128xf32, #tpu.memory_space<vmem>>, vector<8x16xf32>,
    %315 = tpu.concatenate %250, %267, %290, %313 in 1 : vector<8x32xf32>, vector<8x32xf32>, vector<8x16xf32>, vector<8x16xf32> -> vector<8x96xf32>
    %cst_45 = arith.constant dense<0.000000e+00> : vector<8x448xf32>
    %316 = tpu.matmul %315, %0, %cst_45 {dimension_numbers = #tpu.dot_dimension_numbers<[1], [0], [0], [1], [0, 0, 1, 1], [], []>} : vector<8x96xf32>, vector<96x448xf32>, vector<8x448xf32> -> vector<8x448xf32>
    %317 = vector.broadcast %2 : vector<1x448xf32> to vector<8x448xf32>
    %318 = arith.addf %316, %317 : vector<8x448xf32>
    %319 = vector.extract_strided_slice %318 {offsets = [0, 0], sizes = [8, 128], strides = [1, 1]} : vector<8x448xf32> to vector<8x128xf32>
    %320 = vector.extract_strided_slice %4 {offsets = [40, 0], sizes = [8, 128], strides = [1, 1]} : vector<64x128xf32> to vector<8x128xf32>
    %321 = arith.addf %319, %320 : vector<8x128xf32>
    %322 = vector.extract_strided_slice %321 {offsets = [0, 0], sizes = [8, 96], strides = [1, 1]} : vector<8x128xf32> to vector<8x96xf32>
    %323 = arith.negf %322 : vector<8x96xf32>
    %324 = math.exp %323 : vector<8x96xf32>
    %cst_46 = arith.constant 1.000000e+00 : f32
    %325 = vector.broadcast %cst_46 : f32 to vector<8x96xf32>
    %326 = arith.addf %325, %324 : vector<8x96xf32>
    %327 = arith.divf %325, %326 : vector<8x96xf32>
    %328 = vector.extract_strided_slice %321 {offsets = [0, 96], sizes = [8, 32], strides = [1, 1]} : vector<8x128xf32> to vector<8x32xf32>
    %329 = math.tanh %328 : vector<8x32xf32>
    %330 = vector.extract_strided_slice %327 {offsets = [0, 32], sizes = [8, 32], strides = [1, 1]} : vector<8x96xf32> to vector<8x32xf32>
    %331 = arith.mulf %330, %247 : vector<8x32xf32>
    %332 = vector.extract_strided_slice %327 {offsets = [0, 0], sizes = [8, 32], strides = [1, 1]} : vector<8x96xf32> to vector<8x32xf32>
    %333 = arith.mulf %332, %329 : vector<8x32xf32>
    %334 = arith.addf %331, %333 : vector<8x32xf32>
    %335 = vector.extract_strided_slice %327 {offsets = [0, 64], sizes = [8, 32], strides = [1, 1]} : vector<8x96xf32> to vector<8x32xf32>
    %336 = math.tanh %334 : vector<8x32xf32>
    %337 = arith.mulf %335, %336 : vector<8x32xf32>
    %338 = vector.extract_strided_slice %318 {offsets = [0, 128], sizes = [8, 128], strides = [1, 1]} : vector<8x448xf32> to vector<8x128xf32>
    %339 = vector.extract_strided_slice %338 {offsets = [0, 0], sizes = [8, 96], strides = [1, 1]} : vector<8x128xf32> to vector<8x96xf32>
    %340 = arith.negf %339 : vector<8x96xf32>
    %341 = math.exp %340 : vector<8x96xf32>
    %cst_47 = arith.constant 1.000000e+00 : f32
    %342 = vector.broadcast %cst_47 : f32 to vector<8x96xf32>
    %343 = arith.addf %342, %341 : vector<8x96xf32>
    %344 = arith.divf %342, %343 : vector<8x96xf32>
    %345 = vector.extract_strided_slice %338 {offsets = [0, 96], sizes = [8, 32], strides = [1, 1]} : vector<8x128xf32> to vector<8x32xf32>
    %346 = math.tanh %345 : vector<8x32xf32>
    %347 = vector.extract_strided_slice %344 {offsets = [0, 32], sizes = [8, 32], strides = [1, 1]} : vector<8x96xf32> to vector<8x32xf32>
    %348 = arith.mulf %347, %264 : vector<8x32xf32>
    %349 = vector.extract_strided_slice %344 {offsets = [0, 0], sizes = [8, 32], strides = [1, 1]} : vector<8x96xf32> to vector<8x32xf32>
    %350 = arith.mulf %349, %346 : vector<8x32xf32>
    %351 = arith.addf %348, %350 : vector<8x32xf32>
    %352 = vector.extract_strided_slice %344 {offsets = [0, 64], sizes = [8, 32], strides = [1, 1]} : vector<8x96xf32> to vector<8x32xf32>
    %353 = math.tanh %351 : vector<8x32xf32>
    %354 = arith.mulf %352, %353 : vector<8x32xf32>
    %355 = vector.extract_strided_slice %318 {offsets = [0, 256], sizes = [8, 48], strides = [1, 1]} : vector<8x448xf32> to vector<8x48xf32>
    %356 = vector.extract_strided_slice %318 {offsets = [0, 304], sizes = [8, 48], strides = [1, 1]} : vector<8x448xf32> to vector<8x48xf32>
    %357 = vector.extract_strided_slice %355 {offsets = [0, 0], sizes = [8, 32], strides = [1, 1]} : vector<8x48xf32> to vector<8x32xf32>
    %358 = vector.extract_strided_slice %356 {offsets = [0, 0], sizes = [8, 32], strides = [1, 1]} : vector<8x48xf32> to vector<8x32xf32>
    %359 = arith.addf %357, %358 : vector<8x32xf32>
    %360 = arith.negf %359 : vector<8x32xf32>
    %361 = math.exp %360 : vector<8x32xf32>
    %cst_48 = arith.constant 1.000000e+00 : f32
    %362 = vector.broadcast %cst_48 : f32 to vector<8x32xf32>
    %363 = arith.addf %362, %361 : vector<8x32xf32>
    %364 = arith.divf %362, %363 : vector<8x32xf32>
    %365 = vector.extract_strided_slice %355 {offsets = [0, 32], sizes = [8, 16], strides = [1, 1]} : vector<8x48xf32> to vector<8x16xf32>
    %366 = vector.extract_strided_slice %364 {offsets = [0, 0], sizes = [8, 16], strides = [1, 1]} : vector<8x32xf32> to vector<8x16xf32>
    %367 = vector.extract_strided_slice %356 {offsets = [0, 32], sizes = [8, 16], strides = [1, 1]} : vector<8x48xf32> to vector<8x16xf32>
    %368 = arith.mulf %366, %367 : vector<8x16xf32>
    %369 = arith.addf %365, %368 : vector<8x16xf32>
    %370 = math.tanh %369 : vector<8x16xf32>
    %371 = vector.extract_strided_slice %364 {offsets = [0, 16], sizes = [8, 16], strides = [1, 1]} : vector<8x32xf32> to vector<8x16xf32>
    %cst_49 = arith.constant 1.000000e+00 : f32
    %372 = vector.broadcast %cst_49 : f32 to vector<8x16xf32>
    %373 = arith.subf %372, %371 : vector<8x16xf32>
    %374 = arith.mulf %373, %370 : vector<8x16xf32>
    %375 = vector.extract_strided_slice %364 {offsets = [0, 16], sizes = [8, 16], strides = [1, 1]} : vector<8x32xf32> to vector<8x16xf32>
    %376 = arith.mulf %375, %290 : vector<8x16xf32>
    %377 = arith.addf %374, %376 : vector<8x16xf32>
    %378 = vector.extract_strided_slice %318 {offsets = [0, 352], sizes = [8, 48], strides = [1, 1]} : vector<8x448xf32> to vector<8x48xf32>
    %379 = vector.extract_strided_slice %318 {offsets = [0, 400], sizes = [8, 48], strides = [1, 1]} : vector<8x448xf32> to vector<8x48xf32>
    %380 = vector.extract_strided_slice %378 {offsets = [0, 0], sizes = [8, 32], strides = [1, 1]} : vector<8x48xf32> to vector<8x32xf32>
    %381 = vector.extract_strided_slice %379 {offsets = [0, 0], sizes = [8, 32], strides = [1, 1]} : vector<8x48xf32> to vector<8x32xf32>
    %382 = arith.addf %380, %381 : vector<8x32xf32>
    %383 = arith.negf %382 : vector<8x32xf32>
    %384 = math.exp %383 : vector<8x32xf32>
    %cst_50 = arith.constant 1.000000e+00 : f32
    %385 = vector.broadcast %cst_50 : f32 to vector<8x32xf32>
    %386 = arith.addf %385, %384 : vector<8x32xf32>
    %387 = arith.divf %385, %386 : vector<8x32xf32>
    %388 = vector.extract_strided_slice %378 {offsets = [0, 32], sizes = [8, 16], strides = [1, 1]} : vector<8x48xf32> to vector<8x16xf32>
    %389 = vector.extract_strided_slice %387 {offsets = [0, 0], sizes = [8, 16], strides = [1, 1]} : vector<8x32xf32> to vector<8x16xf32>
    %390 = vector.extract_strided_slice %379 {offsets = [0, 32], sizes = [8, 16], strides = [1, 1]} : vector<8x48xf32> to vector<8x16xf32>
    %391 = arith.mulf %389, %390 : vector<8x16xf32>
    %392 = arith.addf %388, %391 : vector<8x16xf32>
    %393 = math.tanh %392 : vector<8x16xf32>
    %394 = vector.extract_strided_slice %387 {offsets = [0, 16], sizes = [8, 16], strides = [1, 1]} : vector<8x32xf32> to vector<8x16xf32>
    %cst_51 = arith.constant 1.000000e+00 : f32
    %395 = vector.broadcast %cst_51 : f32 to vector<8x16xf32>
    %396 = arith.subf %395, %394 : vector<8x16xf32>
    %397 = arith.mulf %396, %393 : vector<8x16xf32>
    %398 = vector.extract_strided_slice %387 {offsets = [0, 16], sizes = [8, 16], strides = [1, 1]} : vector<8x32xf32> to vector<8x16xf32>
    %399 = arith.mulf %398, %313 : vector<8x16xf32>
    %400 = arith.addf %397, %399 : vector<8x16xf32>
    %c0_52 = arith.constant 0 : index
    %c32 = arith.constant 32 : index
    %401 = vector.load %arg4[%c0_52, %c32] : memref<8x128xf32, #tpu.memory_space<vmem>>, vector<8x16xf32>
    tpu.vector_store %arg4[%c0_52, %c32], %400 {strides = array<i32>} : memref<8x128xf32, #tpu.memory_space<vmem>>, vector<8x16xf32>,
    %402 = tpu.concatenate %337, %354, %377, %400 in 1 : vector<8x32xf32>, vector<8x32xf32>, vector<8x16xf32>, vector<8x16xf32> -> vector<8x96xf32>
    %cst_53 = arith.constant dense<0.000000e+00> : vector<8x448xf32>
    %403 = tpu.matmul %402, %0, %cst_53 {dimension_numbers = #tpu.dot_dimension_numbers<[1], [0], [0], [1], [0, 0, 1, 1], [], []>} : vector<8x96xf32>, vector<96x448xf32>, vector<8x448xf32> -> vector<8x448xf32>
    %404 = vector.broadcast %2 : vector<1x448xf32> to vector<8x448xf32>
    %405 = arith.addf %403, %404 : vector<8x448xf32>
    %406 = vector.extract_strided_slice %405 {offsets = [0, 0], sizes = [8, 128], strides = [1, 1]} : vector<8x448xf32> to vector<8x128xf32>
    %407 = vector.extract_strided_slice %4 {offsets = [48, 0], sizes = [8, 128], strides = [1, 1]} : vector<64x128xf32> to vector<8x128xf32>
    %408 = arith.addf %406, %407 : vector<8x128xf32>
    %409 = vector.extract_strided_slice %408 {offsets = [0, 0], sizes = [8, 96], strides = [1, 1]} : vector<8x128xf32> to vector<8x96xf32>
    %410 = arith.negf %409 : vector<8x96xf32>
    %411 = math.exp %410 : vector<8x96xf32>
    %cst_54 = arith.constant 1.000000e+00 : f32
    %412 = vector.broadcast %cst_54 : f32 to vector<8x96xf32>
    %413 = arith.addf %412, %411 : vector<8x96xf32>
    %414 = arith.divf %412, %413 : vector<8x96xf32>
    %415 = vector.extract_strided_slice %408 {offsets = [0, 96], sizes = [8, 32], strides = [1, 1]} : vector<8x128xf32> to vector<8x32xf32>
    %416 = math.tanh %415 : vector<8x32xf32>
    %417 = vector.extract_strided_slice %414 {offsets = [0, 32], sizes = [8, 32], strides = [1, 1]} : vector<8x96xf32> to vector<8x32xf32>
    %418 = arith.mulf %417, %334 : vector<8x32xf32>
    %419 = vector.extract_strided_slice %414 {offsets = [0, 0], sizes = [8, 32], strides = [1, 1]} : vector<8x96xf32> to vector<8x32xf32>
    %420 = arith.mulf %419, %416 : vector<8x32xf32>
    %421 = arith.addf %418, %420 : vector<8x32xf32>
    %422 = vector.extract_strided_slice %414 {offsets = [0, 64], sizes = [8, 32], strides = [1, 1]} : vector<8x96xf32> to vector<8x32xf32>
    %423 = math.tanh %421 : vector<8x32xf32>
    %424 = arith.mulf %422, %423 : vector<8x32xf32>
    %425 = vector.extract_strided_slice %405 {offsets = [0, 128], sizes = [8, 128], strides = [1, 1]} : vector<8x448xf32> to vector<8x128xf32>
    %426 = vector.extract_strided_slice %425 {offsets = [0, 0], sizes = [8, 96], strides = [1, 1]} : vector<8x128xf32> to vector<8x96xf32>
    %427 = arith.negf %426 : vector<8x96xf32>
    %428 = math.exp %427 : vector<8x96xf32>
    %cst_55 = arith.constant 1.000000e+00 : f32
    %429 = vector.broadcast %cst_55 : f32 to vector<8x96xf32>
    %430 = arith.addf %429, %428 : vector<8x96xf32>
    %431 = arith.divf %429, %430 : vector<8x96xf32>
    %432 = vector.extract_strided_slice %425 {offsets = [0, 96], sizes = [8, 32], strides = [1, 1]} : vector<8x128xf32> to vector<8x32xf32>
    %433 = math.tanh %432 : vector<8x32xf32>
    %434 = vector.extract_strided_slice %431 {offsets = [0, 32], sizes = [8, 32], strides = [1, 1]} : vector<8x96xf32> to vector<8x32xf32>
    %435 = arith.mulf %434, %351 : vector<8x32xf32>
    %436 = vector.extract_strided_slice %431 {offsets = [0, 0], sizes = [8, 32], strides = [1, 1]} : vector<8x96xf32> to vector<8x32xf32>
    %437 = arith.mulf %436, %433 : vector<8x32xf32>
    %438 = arith.addf %435, %437 : vector<8x32xf32>
    %439 = vector.extract_strided_slice %431 {offsets = [0, 64], sizes = [8, 32], strides = [1, 1]} : vector<8x96xf32> to vector<8x32xf32>
    %440 = math.tanh %438 : vector<8x32xf32>
    %441 = arith.mulf %439, %440 : vector<8x32xf32>
    %442 = vector.extract_strided_slice %405 {offsets = [0, 256], sizes = [8, 48], strides = [1, 1]} : vector<8x448xf32> to vector<8x48xf32>
    %443 = vector.extract_strided_slice %405 {offsets = [0, 304], sizes = [8, 48], strides = [1, 1]} : vector<8x448xf32> to vector<8x48xf32>
    %444 = vector.extract_strided_slice %442 {offsets = [0, 0], sizes = [8, 32], strides = [1, 1]} : vector<8x48xf32> to vector<8x32xf32>
    %445 = vector.extract_strided_slice %443 {offsets = [0, 0], sizes = [8, 32], strides = [1, 1]} : vector<8x48xf32> to vector<8x32xf32>
    %446 = arith.addf %444, %445 : vector<8x32xf32>
    %447 = arith.negf %446 : vector<8x32xf32>
    %448 = math.exp %447 : vector<8x32xf32>
    %cst_56 = arith.constant 1.000000e+00 : f32
    %449 = vector.broadcast %cst_56 : f32 to vector<8x32xf32>
    %450 = arith.addf %449, %448 : vector<8x32xf32>
    %451 = arith.divf %449, %450 : vector<8x32xf32>
    %452 = vector.extract_strided_slice %442 {offsets = [0, 32], sizes = [8, 16], strides = [1, 1]} : vector<8x48xf32> to vector<8x16xf32>
    %453 = vector.extract_strided_slice %451 {offsets = [0, 0], sizes = [8, 16], strides = [1, 1]} : vector<8x32xf32> to vector<8x16xf32>
    %454 = vector.extract_strided_slice %443 {offsets = [0, 32], sizes = [8, 16], strides = [1, 1]} : vector<8x48xf32> to vector<8x16xf32>
    %455 = arith.mulf %453, %454 : vector<8x16xf32>
    %456 = arith.addf %452, %455 : vector<8x16xf32>
    %457 = math.tanh %456 : vector<8x16xf32>
    %458 = vector.extract_strided_slice %451 {offsets = [0, 16], sizes = [8, 16], strides = [1, 1]} : vector<8x32xf32> to vector<8x16xf32>
    %cst_57 = arith.constant 1.000000e+00 : f32
    %459 = vector.broadcast %cst_57 : f32 to vector<8x16xf32>
    %460 = arith.subf %459, %458 : vector<8x16xf32>
    %461 = arith.mulf %460, %457 : vector<8x16xf32>
    %462 = vector.extract_strided_slice %451 {offsets = [0, 16], sizes = [8, 16], strides = [1, 1]} : vector<8x32xf32> to vector<8x16xf32>
    %463 = arith.mulf %462, %377 : vector<8x16xf32>
    %464 = arith.addf %461, %463 : vector<8x16xf32>
    %465 = vector.extract_strided_slice %405 {offsets = [0, 352], sizes = [8, 48], strides = [1, 1]} : vector<8x448xf32> to vector<8x48xf32>
    %466 = vector.extract_strided_slice %405 {offsets = [0, 400], sizes = [8, 48], strides = [1, 1]} : vector<8x448xf32> to vector<8x48xf32>
    %467 = vector.extract_strided_slice %465 {offsets = [0, 0], sizes = [8, 32], strides = [1, 1]} : vector<8x48xf32> to vector<8x32xf32>
    %468 = vector.extract_strided_slice %466 {offsets = [0, 0], sizes = [8, 32], strides = [1, 1]} : vector<8x48xf32> to vector<8x32xf32>
    %469 = arith.addf %467, %468 : vector<8x32xf32>
    %470 = arith.negf %469 : vector<8x32xf32>
    %471 = math.exp %470 : vector<8x32xf32>
    %cst_58 = arith.constant 1.000000e+00 : f32
    %472 = vector.broadcast %cst_58 : f32 to vector<8x32xf32>
    %473 = arith.addf %472, %471 : vector<8x32xf32>
    %474 = arith.divf %472, %473 : vector<8x32xf32>
    %475 = vector.extract_strided_slice %465 {offsets = [0, 32], sizes = [8, 16], strides = [1, 1]} : vector<8x48xf32> to vector<8x16xf32>
    %476 = vector.extract_strided_slice %474 {offsets = [0, 0], sizes = [8, 16], strides = [1, 1]} : vector<8x32xf32> to vector<8x16xf32>
    %477 = vector.extract_strided_slice %466 {offsets = [0, 32], sizes = [8, 16], strides = [1, 1]} : vector<8x48xf32> to vector<8x16xf32>
    %478 = arith.mulf %476, %477 : vector<8x16xf32>
    %479 = arith.addf %475, %478 : vector<8x16xf32>
    %480 = math.tanh %479 : vector<8x16xf32>
    %481 = vector.extract_strided_slice %474 {offsets = [0, 16], sizes = [8, 16], strides = [1, 1]} : vector<8x32xf32> to vector<8x16xf32>
    %cst_59 = arith.constant 1.000000e+00 : f32
    %482 = vector.broadcast %cst_59 : f32 to vector<8x16xf32>
    %483 = arith.subf %482, %481 : vector<8x16xf32>
    %484 = arith.mulf %483, %480 : vector<8x16xf32>
    %485 = vector.extract_strided_slice %474 {offsets = [0, 16], sizes = [8, 16], strides = [1, 1]} : vector<8x32xf32> to vector<8x16xf32>
    %486 = arith.mulf %485, %400 : vector<8x16xf32>
    %487 = arith.addf %484, %486 : vector<8x16xf32>
    %c0_60 = arith.constant 0 : index
    %c48 = arith.constant 48 : index
    %488 = vector.load %arg4[%c0_60, %c48] : memref<8x128xf32, #tpu.memory_space<vmem>>, vector<8x16xf32>
    tpu.vector_store %arg4[%c0_60, %c48], %487 {strides = array<i32>} : memref<8x128xf32, #tpu.memory_space<vmem>>, vector<8x16xf32>,
    %489 = tpu.concatenate %424, %441, %464, %487 in 1 : vector<8x32xf32>, vector<8x32xf32>, vector<8x16xf32>, vector<8x16xf32> -> vector<8x96xf32>
    %cst_61 = arith.constant dense<0.000000e+00> : vector<8x448xf32>
    %490 = tpu.matmul %489, %0, %cst_61 {dimension_numbers = #tpu.dot_dimension_numbers<[1], [0], [0], [1], [0, 0, 1, 1], [], []>} : vector<8x96xf32>, vector<96x448xf32>, vector<8x448xf32> -> vector<8x448xf32>
    %491 = vector.broadcast %2 : vector<1x448xf32> to vector<8x448xf32>
    %492 = arith.addf %490, %491 : vector<8x448xf32>
    %493 = vector.extract_strided_slice %492 {offsets = [0, 0], sizes = [8, 128], strides = [1, 1]} : vector<8x448xf32> to vector<8x128xf32>
    %494 = vector.extract_strided_slice %4 {offsets = [56, 0], sizes = [8, 128], strides = [1, 1]} : vector<64x128xf32> to vector<8x128xf32>
    %495 = arith.addf %493, %494 : vector<8x128xf32>
    %496 = vector.extract_strided_slice %495 {offsets = [0, 0], sizes = [8, 96], strides = [1, 1]} : vector<8x128xf32> to vector<8x96xf32>
    %497 = arith.negf %496 : vector<8x96xf32>
    %498 = math.exp %497 : vector<8x96xf32>
    %cst_62 = arith.constant 1.000000e+00 : f32
    %499 = vector.broadcast %cst_62 : f32 to vector<8x96xf32>
    %500 = arith.addf %499, %498 : vector<8x96xf32>
    %501 = arith.divf %499, %500 : vector<8x96xf32>
    %502 = vector.extract_strided_slice %495 {offsets = [0, 96], sizes = [8, 32], strides = [1, 1]} : vector<8x128xf32> to vector<8x32xf32>
    %503 = math.tanh %502 : vector<8x32xf32>
    %504 = vector.extract_strided_slice %501 {offsets = [0, 32], sizes = [8, 32], strides = [1, 1]} : vector<8x96xf32> to vector<8x32xf32>
    %505 = arith.mulf %504, %421 : vector<8x32xf32>
    %506 = vector.extract_strided_slice %501 {offsets = [0, 0], sizes = [8, 32], strides = [1, 1]} : vector<8x96xf32> to vector<8x32xf32>
    %507 = arith.mulf %506, %503 : vector<8x32xf32>
    %508 = arith.addf %505, %507 : vector<8x32xf32>
    %509 = vector.extract_strided_slice %501 {offsets = [0, 64], sizes = [8, 32], strides = [1, 1]} : vector<8x96xf32> to vector<8x32xf32>
    %510 = math.tanh %508 : vector<8x32xf32>
    %511 = arith.mulf %509, %510 : vector<8x32xf32>
    %512 = vector.extract_strided_slice %492 {offsets = [0, 128], sizes = [8, 128], strides = [1, 1]} : vector<8x448xf32> to vector<8x128xf32>
    %513 = vector.extract_strided_slice %512 {offsets = [0, 0], sizes = [8, 96], strides = [1, 1]} : vector<8x128xf32> to vector<8x96xf32>
    %514 = arith.negf %513 : vector<8x96xf32>
    %515 = math.exp %514 : vector<8x96xf32>
    %cst_63 = arith.constant 1.000000e+00 : f32
    %516 = vector.broadcast %cst_63 : f32 to vector<8x96xf32>
    %517 = arith.addf %516, %515 : vector<8x96xf32>
    %518 = arith.divf %516, %517 : vector<8x96xf32>
    %519 = vector.extract_strided_slice %512 {offsets = [0, 96], sizes = [8, 32], strides = [1, 1]} : vector<8x128xf32> to vector<8x32xf32>
    %520 = math.tanh %519 : vector<8x32xf32>
    %521 = vector.extract_strided_slice %518 {offsets = [0, 32], sizes = [8, 32], strides = [1, 1]} : vector<8x96xf32> to vector<8x32xf32>
    %522 = arith.mulf %521, %438 : vector<8x32xf32>
    %523 = vector.extract_strided_slice %518 {offsets = [0, 0], sizes = [8, 32], strides = [1, 1]} : vector<8x96xf32> to vector<8x32xf32>
    %524 = arith.mulf %523, %520 : vector<8x32xf32>
    %525 = arith.addf %522, %524 : vector<8x32xf32>
    %526 = vector.extract_strided_slice %518 {offsets = [0, 64], sizes = [8, 32], strides = [1, 1]} : vector<8x96xf32> to vector<8x32xf32>
    %527 = math.tanh %525 : vector<8x32xf32>
    %528 = arith.mulf %526, %527 : vector<8x32xf32>
    %529 = vector.extract_strided_slice %492 {offsets = [0, 256], sizes = [8, 48], strides = [1, 1]} : vector<8x448xf32> to vector<8x48xf32>
    %530 = vector.extract_strided_slice %492 {offsets = [0, 304], sizes = [8, 48], strides = [1, 1]} : vector<8x448xf32> to vector<8x48xf32>
    %531 = vector.extract_strided_slice %529 {offsets = [0, 0], sizes = [8, 32], strides = [1, 1]} : vector<8x48xf32> to vector<8x32xf32>
    %532 = vector.extract_strided_slice %530 {offsets = [0, 0], sizes = [8, 32], strides = [1, 1]} : vector<8x48xf32> to vector<8x32xf32>
    %533 = arith.addf %531, %532 : vector<8x32xf32>
    %534 = arith.negf %533 : vector<8x32xf32>
    %535 = math.exp %534 : vector<8x32xf32>
    %cst_64 = arith.constant 1.000000e+00 : f32
    %536 = vector.broadcast %cst_64 : f32 to vector<8x32xf32>
    %537 = arith.addf %536, %535 : vector<8x32xf32>
    %538 = arith.divf %536, %537 : vector<8x32xf32>
    %539 = vector.extract_strided_slice %529 {offsets = [0, 32], sizes = [8, 16], strides = [1, 1]} : vector<8x48xf32> to vector<8x16xf32>
    %540 = vector.extract_strided_slice %538 {offsets = [0, 0], sizes = [8, 16], strides = [1, 1]} : vector<8x32xf32> to vector<8x16xf32>
    %541 = vector.extract_strided_slice %530 {offsets = [0, 32], sizes = [8, 16], strides = [1, 1]} : vector<8x48xf32> to vector<8x16xf32>
    %542 = arith.mulf %540, %541 : vector<8x16xf32>
    %543 = arith.addf %539, %542 : vector<8x16xf32>
    %544 = math.tanh %543 : vector<8x16xf32>
    %545 = vector.extract_strided_slice %538 {offsets = [0, 16], sizes = [8, 16], strides = [1, 1]} : vector<8x32xf32> to vector<8x16xf32>
    %cst_65 = arith.constant 1.000000e+00 : f32
    %546 = vector.broadcast %cst_65 : f32 to vector<8x16xf32>
    %547 = arith.subf %546, %545 : vector<8x16xf32>
    %548 = arith.mulf %547, %544 : vector<8x16xf32>
    %549 = vector.extract_strided_slice %538 {offsets = [0, 16], sizes = [8, 16], strides = [1, 1]} : vector<8x32xf32> to vector<8x16xf32>
    %550 = arith.mulf %549, %464 : vector<8x16xf32>
    %551 = arith.addf %548, %550 : vector<8x16xf32>
    %552 = vector.extract_strided_slice %492 {offsets = [0, 352], sizes = [8, 48], strides = [1, 1]} : vector<8x448xf32> to vector<8x48xf32>
    %553 = vector.extract_strided_slice %492 {offsets = [0, 400], sizes = [8, 48], strides = [1, 1]} : vector<8x448xf32> to vector<8x48xf32>
    %554 = vector.extract_strided_slice %552 {offsets = [0, 0], sizes = [8, 32], strides = [1, 1]} : vector<8x48xf32> to vector<8x32xf32>
    %555 = vector.extract_strided_slice %553 {offsets = [0, 0], sizes = [8, 32], strides = [1, 1]} : vector<8x48xf32> to vector<8x32xf32>
    %556 = arith.addf %554, %555 : vector<8x32xf32>
    %557 = arith.negf %556 : vector<8x32xf32>
    %558 = math.exp %557 : vector<8x32xf32>
    %cst_66 = arith.constant 1.000000e+00 : f32
    %559 = vector.broadcast %cst_66 : f32 to vector<8x32xf32>
    %560 = arith.addf %559, %558 : vector<8x32xf32>
    %561 = arith.divf %559, %560 : vector<8x32xf32>
    %562 = vector.extract_strided_slice %552 {offsets = [0, 32], sizes = [8, 16], strides = [1, 1]} : vector<8x48xf32> to vector<8x16xf32>
    %563 = vector.extract_strided_slice %561 {offsets = [0, 0], sizes = [8, 16], strides = [1, 1]} : vector<8x32xf32> to vector<8x16xf32>
    %564 = vector.extract_strided_slice %553 {offsets = [0, 32], sizes = [8, 16], strides = [1, 1]} : vector<8x48xf32> to vector<8x16xf32>
    %565 = arith.mulf %563, %564 : vector<8x16xf32>
    %566 = arith.addf %562, %565 : vector<8x16xf32>
    %567 = math.tanh %566 : vector<8x16xf32>
    %568 = vector.extract_strided_slice %561 {offsets = [0, 16], sizes = [8, 16], strides = [1, 1]} : vector<8x32xf32> to vector<8x16xf32>
    %cst_67 = arith.constant 1.000000e+00 : f32
    %569 = vector.broadcast %cst_67 : f32 to vector<8x16xf32>
    %570 = arith.subf %569, %568 : vector<8x16xf32>
    %571 = arith.mulf %570, %567 : vector<8x16xf32>
    %572 = vector.extract_strided_slice %561 {offsets = [0, 16], sizes = [8, 16], strides = [1, 1]} : vector<8x32xf32> to vector<8x16xf32>
    %573 = arith.mulf %572, %487 : vector<8x16xf32>
    %574 = arith.addf %571, %573 : vector<8x16xf32>
    %c0_68 = arith.constant 0 : index
    %c64 = arith.constant 64 : index
    %575 = vector.load %arg4[%c0_68, %c64] : memref<8x128xf32, #tpu.memory_space<vmem>>, vector<8x16xf32>
    tpu.vector_store %arg4[%c0_68, %c64], %574 {strides = array<i32>} : memref<8x128xf32, #tpu.memory_space<vmem>>, vector<8x16xf32>,
    %576 = tpu.concatenate %511, %528, %551, %574 in 1 : vector<8x32xf32>, vector<8x32xf32>, vector<8x16xf32>, vector<8x16xf32> -> vector<8x96xf32>
    %cst_69 = arith.constant dense<0.000000e+00> : vector<8x448xf32>
    %577 = tpu.matmul %576, %0, %cst_69 {dimension_numbers = #tpu.dot_dimension_numbers<[1], [0], [0], [1], [0, 0, 1, 1], [], []>} : vector<8x96xf32>, vector<96x448xf32>, vector<8x448xf32> -> vector<8x448xf32>
    %578 = vector.broadcast %2 : vector<1x448xf32> to vector<8x448xf32>
    %579 = arith.addf %577, %578 : vector<8x448xf32>
    %580 = vector.extract_strided_slice %579 {offsets = [0, 128], sizes = [8, 128], strides = [1, 1]} : vector<8x448xf32> to vector<8x128xf32>
    %581 = vector.extract_strided_slice %580 {offsets = [0, 0], sizes = [8, 96], strides = [1, 1]} : vector<8x128xf32> to vector<8x96xf32>
    %582 = arith.negf %581 : vector<8x96xf32>
    %583 = math.exp %582 : vector<8x96xf32>
    %cst_70 = arith.constant 1.000000e+00 : f32
    %584 = vector.broadcast %cst_70 : f32 to vector<8x96xf32>
    %585 = arith.addf %584, %583 : vector<8x96xf32>
    %586 = arith.divf %584, %585 : vector<8x96xf32>
    %587 = vector.extract_strided_slice %580 {offsets = [0, 96], sizes = [8, 32], strides = [1, 1]} : vector<8x128xf32> to vector<8x32xf32>
    %588 = math.tanh %587 : vector<8x32xf32>
    %589 = vector.extract_strided_slice %586 {offsets = [0, 32], sizes = [8, 32], strides = [1, 1]} : vector<8x96xf32> to vector<8x32xf32>
    %590 = arith.mulf %589, %525 : vector<8x32xf32>
    %591 = vector.extract_strided_slice %586 {offsets = [0, 0], sizes = [8, 32], strides = [1, 1]} : vector<8x96xf32> to vector<8x32xf32>
    %592 = arith.mulf %591, %588 : vector<8x32xf32>
    %593 = arith.addf %590, %592 : vector<8x32xf32>
    %594 = vector.extract_strided_slice %586 {offsets = [0, 64], sizes = [8, 32], strides = [1, 1]} : vector<8x96xf32> to vector<8x32xf32>
    %595 = math.tanh %593 : vector<8x32xf32>
    %596 = arith.mulf %594, %595 : vector<8x32xf32>
    %597 = vector.extract_strided_slice %579 {offsets = [0, 256], sizes = [8, 48], strides = [1, 1]} : vector<8x448xf32> to vector<8x48xf32>
    %598 = vector.extract_strided_slice %579 {offsets = [0, 304], sizes = [8, 48], strides = [1, 1]} : vector<8x448xf32> to vector<8x48xf32>
    %599 = vector.extract_strided_slice %597 {offsets = [0, 0], sizes = [8, 32], strides = [1, 1]} : vector<8x48xf32> to vector<8x32xf32>
    %600 = vector.extract_strided_slice %598 {offsets = [0, 0], sizes = [8, 32], strides = [1, 1]} : vector<8x48xf32> to vector<8x32xf32>
    %601 = arith.addf %599, %600 : vector<8x32xf32>
    %602 = arith.negf %601 : vector<8x32xf32>
    %603 = math.exp %602 : vector<8x32xf32>
    %cst_71 = arith.constant 1.000000e+00 : f32
    %604 = vector.broadcast %cst_71 : f32 to vector<8x32xf32>
    %605 = arith.addf %604, %603 : vector<8x32xf32>
    %606 = arith.divf %604, %605 : vector<8x32xf32>
    %607 = vector.extract_strided_slice %597 {offsets = [0, 32], sizes = [8, 16], strides = [1, 1]} : vector<8x48xf32> to vector<8x16xf32>
    %608 = vector.extract_strided_slice %606 {offsets = [0, 0], sizes = [8, 16], strides = [1, 1]} : vector<8x32xf32> to vector<8x16xf32>
    %609 = vector.extract_strided_slice %598 {offsets = [0, 32], sizes = [8, 16], strides = [1, 1]} : vector<8x48xf32> to vector<8x16xf32>
    %610 = arith.mulf %608, %609 : vector<8x16xf32>
    %611 = arith.addf %607, %610 : vector<8x16xf32>
    %612 = math.tanh %611 : vector<8x16xf32>
    %613 = vector.extract_strided_slice %606 {offsets = [0, 16], sizes = [8, 16], strides = [1, 1]} : vector<8x32xf32> to vector<8x16xf32>
    %cst_72 = arith.constant 1.000000e+00 : f32
    %614 = vector.broadcast %cst_72 : f32 to vector<8x16xf32>
    %615 = arith.subf %614, %613 : vector<8x16xf32>
    %616 = arith.mulf %615, %612 : vector<8x16xf32>
    %617 = vector.extract_strided_slice %606 {offsets = [0, 16], sizes = [8, 16], strides = [1, 1]} : vector<8x32xf32> to vector<8x16xf32>
    %618 = arith.mulf %617, %551 : vector<8x16xf32>
    %619 = arith.addf %616, %618 : vector<8x16xf32>
    %620 = vector.extract_strided_slice %579 {offsets = [0, 352], sizes = [8, 48], strides = [1, 1]} : vector<8x448xf32> to vector<8x48xf32>
    %621 = vector.extract_strided_slice %579 {offsets = [0, 400], sizes = [8, 48], strides = [1, 1]} : vector<8x448xf32> to vector<8x48xf32>
    %622 = vector.extract_strided_slice %620 {offsets = [0, 0], sizes = [8, 32], strides = [1, 1]} : vector<8x48xf32> to vector<8x32xf32>
    %623 = vector.extract_strided_slice %621 {offsets = [0, 0], sizes = [8, 32], strides = [1, 1]} : vector<8x48xf32> to vector<8x32xf32>
    %624 = arith.addf %622, %623 : vector<8x32xf32>
    %625 = arith.negf %624 : vector<8x32xf32>
    %626 = math.exp %625 : vector<8x32xf32>
    %cst_73 = arith.constant 1.000000e+00 : f32
    %627 = vector.broadcast %cst_73 : f32 to vector<8x32xf32>
    %628 = arith.addf %627, %626 : vector<8x32xf32>
    %629 = arith.divf %627, %628 : vector<8x32xf32>
    %630 = vector.extract_strided_slice %620 {offsets = [0, 32], sizes = [8, 16], strides = [1, 1]} : vector<8x48xf32> to vector<8x16xf32>
    %631 = vector.extract_strided_slice %629 {offsets = [0, 0], sizes = [8, 16], strides = [1, 1]} : vector<8x32xf32> to vector<8x16xf32>
    %632 = vector.extract_strided_slice %621 {offsets = [0, 32], sizes = [8, 16], strides = [1, 1]} : vector<8x48xf32> to vector<8x16xf32>
    %633 = arith.mulf %631, %632 : vector<8x16xf32>
    %634 = arith.addf %630, %633 : vector<8x16xf32>
    %635 = math.tanh %634 : vector<8x16xf32>
    %636 = vector.extract_strided_slice %629 {offsets = [0, 16], sizes = [8, 16], strides = [1, 1]} : vector<8x32xf32> to vector<8x16xf32>
    %cst_74 = arith.constant 1.000000e+00 : f32
    %637 = vector.broadcast %cst_74 : f32 to vector<8x16xf32>
    %638 = arith.subf %637, %636 : vector<8x16xf32>
    %639 = arith.mulf %638, %635 : vector<8x16xf32>
    %640 = vector.extract_strided_slice %629 {offsets = [0, 16], sizes = [8, 16], strides = [1, 1]} : vector<8x32xf32> to vector<8x16xf32>
    %641 = arith.mulf %640, %574 : vector<8x16xf32>
    %642 = arith.addf %639, %641 : vector<8x16xf32>
    %c0_75 = arith.constant 0 : index
    %c80 = arith.constant 80 : index
    %643 = vector.load %arg4[%c0_75, %c80] : memref<8x128xf32, #tpu.memory_space<vmem>>, vector<8x16xf32>
    tpu.vector_store %arg4[%c0_75, %c80], %642 {strides = array<i32>} : memref<8x128xf32, #tpu.memory_space<vmem>>, vector<8x16xf32>,
    %644 = tpu.concatenate %511, %596, %619, %642 in 1 : vector<8x32xf32>, vector<8x32xf32>, vector<8x16xf32>, vector<8x16xf32> -> vector<8x96xf32>
    %cst_76 = arith.constant dense<0.000000e+00> : vector<8x448xf32>
    %645 = tpu.matmul %644, %0, %cst_76 {dimension_numbers = #tpu.dot_dimension_numbers<[1], [0], [0], [1], [0, 0, 1, 1], [], []>} : vector<8x96xf32>, vector<96x448xf32>, vector<8x448xf32> -> vector<8x448xf32>
    %646 = vector.broadcast %2 : vector<1x448xf32> to vector<8x448xf32>
    %647 = arith.addf %645, %646 : vector<8x448xf32>
    %648 = vector.extract_strided_slice %647 {offsets = [0, 256], sizes = [8, 48], strides = [1, 1]} : vector<8x448xf32> to vector<8x48xf32>
    %649 = vector.extract_strided_slice %647 {offsets = [0, 304], sizes = [8, 48], strides = [1, 1]} : vector<8x448xf32> to vector<8x48xf32>
    %650 = vector.extract_strided_slice %648 {offsets = [0, 0], sizes = [8, 32], strides = [1, 1]} : vector<8x48xf32> to vector<8x32xf32>
    %651 = vector.extract_strided_slice %649 {offsets = [0, 0], sizes = [8, 32], strides = [1, 1]} : vector<8x48xf32> to vector<8x32xf32>
    %652 = arith.addf %650, %651 : vector<8x32xf32>
    %653 = arith.negf %652 : vector<8x32xf32>
    %654 = math.exp %653 : vector<8x32xf32>
    %cst_77 = arith.constant 1.000000e+00 : f32
    %655 = vector.broadcast %cst_77 : f32 to vector<8x32xf32>
    %656 = arith.addf %655, %654 : vector<8x32xf32>
    %657 = arith.divf %655, %656 : vector<8x32xf32>
    %658 = vector.extract_strided_slice %648 {offsets = [0, 32], sizes = [8, 16], strides = [1, 1]} : vector<8x48xf32> to vector<8x16xf32>
    %659 = vector.extract_strided_slice %657 {offsets = [0, 0], sizes = [8, 16], strides = [1, 1]} : vector<8x32xf32> to vector<8x16xf32>
    %660 = vector.extract_strided_slice %649 {offsets = [0, 32], sizes = [8, 16], strides = [1, 1]} : vector<8x48xf32> to vector<8x16xf32>
    %661 = arith.mulf %659, %660 : vector<8x16xf32>
    %662 = arith.addf %658, %661 : vector<8x16xf32>
    %663 = math.tanh %662 : vector<8x16xf32>
    %664 = vector.extract_strided_slice %657 {offsets = [0, 16], sizes = [8, 16], strides = [1, 1]} : vector<8x32xf32> to vector<8x16xf32>
    %cst_78 = arith.constant 1.000000e+00 : f32
    %665 = vector.broadcast %cst_78 : f32 to vector<8x16xf32>
    %666 = arith.subf %665, %664 : vector<8x16xf32>
    %667 = arith.mulf %666, %663 : vector<8x16xf32>
    %668 = vector.extract_strided_slice %657 {offsets = [0, 16], sizes = [8, 16], strides = [1, 1]} : vector<8x32xf32> to vector<8x16xf32>
    %669 = arith.mulf %668, %619 : vector<8x16xf32>
    %670 = arith.addf %667, %669 : vector<8x16xf32>
    %671 = vector.extract_strided_slice %647 {offsets = [0, 352], sizes = [8, 48], strides = [1, 1]} : vector<8x448xf32> to vector<8x48xf32>
    %672 = vector.extract_strided_slice %647 {offsets = [0, 400], sizes = [8, 48], strides = [1, 1]} : vector<8x448xf32> to vector<8x48xf32>
    %673 = vector.extract_strided_slice %671 {offsets = [0, 0], sizes = [8, 32], strides = [1, 1]} : vector<8x48xf32> to vector<8x32xf32>
    %674 = vector.extract_strided_slice %672 {offsets = [0, 0], sizes = [8, 32], strides = [1, 1]} : vector<8x48xf32> to vector<8x32xf32>
    %675 = arith.addf %673, %674 : vector<8x32xf32>
    %676 = arith.negf %675 : vector<8x32xf32>
    %677 = math.exp %676 : vector<8x32xf32>
    %cst_79 = arith.constant 1.000000e+00 : f32
    %678 = vector.broadcast %cst_79 : f32 to vector<8x32xf32>
    %679 = arith.addf %678, %677 : vector<8x32xf32>
    %680 = arith.divf %678, %679 : vector<8x32xf32>
    %681 = vector.extract_strided_slice %671 {offsets = [0, 32], sizes = [8, 16], strides = [1, 1]} : vector<8x48xf32> to vector<8x16xf32>
    %682 = vector.extract_strided_slice %680 {offsets = [0, 0], sizes = [8, 16], strides = [1, 1]} : vector<8x32xf32> to vector<8x16xf32>
    %683 = vector.extract_strided_slice %672 {offsets = [0, 32], sizes = [8, 16], strides = [1, 1]} : vector<8x48xf32> to vector<8x16xf32>
    %684 = arith.mulf %682, %683 : vector<8x16xf32>
    %685 = arith.addf %681, %684 : vector<8x16xf32>
    %686 = math.tanh %685 : vector<8x16xf32>
    %687 = vector.extract_strided_slice %680 {offsets = [0, 16], sizes = [8, 16], strides = [1, 1]} : vector<8x32xf32> to vector<8x16xf32>
    %cst_80 = arith.constant 1.000000e+00 : f32
    %688 = vector.broadcast %cst_80 : f32 to vector<8x16xf32>
    %689 = arith.subf %688, %687 : vector<8x16xf32>
    %690 = arith.mulf %689, %686 : vector<8x16xf32>
    %691 = vector.extract_strided_slice %680 {offsets = [0, 16], sizes = [8, 16], strides = [1, 1]} : vector<8x32xf32> to vector<8x16xf32>
    %692 = arith.mulf %691, %642 : vector<8x16xf32>
    %693 = arith.addf %690, %692 : vector<8x16xf32>
    %c0_81 = arith.constant 0 : index
    %c96_82 = arith.constant 96 : index
    %694 = vector.load %arg4[%c0_81, %c96_82] : memref<8x128xf32, #tpu.memory_space<vmem>>, vector<8x16xf32>
    tpu.vector_store %arg4[%c0_81, %c96_82], %693 {strides = array<i32>} : memref<8x128xf32, #tpu.memory_space<vmem>>, vector<8x16xf32>,
    %695 = tpu.concatenate %511, %596, %670, %693 in 1 : vector<8x32xf32>, vector<8x32xf32>, vector<8x16xf32>, vector<8x16xf32> -> vector<8x96xf32>
    %cst_83 = arith.constant dense<0.000000e+00> : vector<8x448xf32>
    %696 = tpu.matmul %695, %0, %cst_83 {dimension_numbers = #tpu.dot_dimension_numbers<[1], [0], [0], [1], [0, 0, 1, 1], [], []>} : vector<8x96xf32>, vector<96x448xf32>, vector<8x448xf32> -> vector<8x448xf32>
    %697 = vector.broadcast %2 : vector<1x448xf32> to vector<8x448xf32>
    %698 = arith.addf %696, %697 : vector<8x448xf32>
    %699 = vector.extract_strided_slice %698 {offsets = [0, 352], sizes = [8, 48], strides = [1, 1]} : vector<8x448xf32> to vector<8x48xf32>
    %700 = vector.extract_strided_slice %698 {offsets = [0, 400], sizes = [8, 48], strides = [1, 1]} : vector<8x448xf32> to vector<8x48xf32>
    %701 = vector.extract_strided_slice %699 {offsets = [0, 0], sizes = [8, 32], strides = [1, 1]} : vector<8x48xf32> to vector<8x32xf32>
    %702 = vector.extract_strided_slice %700 {offsets = [0, 0], sizes = [8, 32], strides = [1, 1]} : vector<8x48xf32> to vector<8x32xf32>
    %703 = arith.addf %701, %702 : vector<8x32xf32>
    %704 = arith.negf %703 : vector<8x32xf32>
    %705 = math.exp %704 : vector<8x32xf32>
    %cst_84 = arith.constant 1.000000e+00 : f32
    %706 = vector.broadcast %cst_84 : f32 to vector<8x32xf32>
    %707 = arith.addf %706, %705 : vector<8x32xf32>
    %708 = arith.divf %706, %707 : vector<8x32xf32>
    %709 = vector.extract_strided_slice %699 {offsets = [0, 32], sizes = [8, 16], strides = [1, 1]} : vector<8x48xf32> to vector<8x16xf32>
    %710 = vector.extract_strided_slice %708 {offsets = [0, 0], sizes = [8, 16], strides = [1, 1]} : vector<8x32xf32> to vector<8x16xf32>
    %711 = vector.extract_strided_slice %700 {offsets = [0, 32], sizes = [8, 16], strides = [1, 1]} : vector<8x48xf32> to vector<8x16xf32>
    %712 = arith.mulf %710, %711 : vector<8x16xf32>
    %713 = arith.addf %709, %712 : vector<8x16xf32>
    %714 = math.tanh %713 : vector<8x16xf32>
    %715 = vector.extract_strided_slice %708 {offsets = [0, 16], sizes = [8, 16], strides = [1, 1]} : vector<8x32xf32> to vector<8x16xf32>
    %cst_85 = arith.constant 1.000000e+00 : f32
    %716 = vector.broadcast %cst_85 : f32 to vector<8x16xf32>
    %717 = arith.subf %716, %715 : vector<8x16xf32>
    %718 = arith.mulf %717, %714 : vector<8x16xf32>
    %719 = vector.extract_strided_slice %708 {offsets = [0, 16], sizes = [8, 16], strides = [1, 1]} : vector<8x32xf32> to vector<8x16xf32>
    %720 = arith.mulf %719, %693 : vector<8x16xf32>
    %721 = arith.addf %718, %720 : vector<8x16xf32>
    %c0_86 = arith.constant 0 : index
    %c112 = arith.constant 112 : index
    %722 = vector.load %arg4[%c0_86, %c112] : memref<8x128xf32, #tpu.memory_space<vmem>>, vector<8x16xf32>
    tpu.vector_store %arg4[%c0_86, %c112], %721 {strides = array<i32>} : memref<8x128xf32, #tpu.memory_space<vmem>>, vector<8x16xf32>,
    return
  }
}

</mosaic_0001>

<llo_original>
// kernel: tpu_custom_call.1
$region0: #{tpu_custom_call.1}
  #allocation0 [shape = 'u32[]', space=smem, size = 0x4, offset = 0x4, fixed_abs, tag = 'smem constant byte address 0x4 - core index']
  #allocation1 [shape = 'u32[144,128]{1,0:T(1,128)}', space=vmem, size = 0x12000, scoped, tag = 'internal scratch']
  %s0 = inlined_call_operand.vmem [shape: f32[64,8], index: 0, kind: input, shape index: {}]
  %s1 = inlined_call_operand.hbm [shape: f32[112,448], index: 1, kind: input, shape index: {}]
  %s2 = inlined_call_operand.vmem [shape: f32[2,8,32], index: 2, kind: input, shape index: {}]
  %s3 = inlined_call_operand.vmem [shape: f32[2,8,32], index: 3, kind: input, shape index: {}]
  %s4 = inlined_call_operand.hbm [shape: f32[8,128], index: 4, kind: output, shape index: {}]
  %s5 = sld [smem:[#allocation0]]
  $region30: #{tpu_custom_call.1} parent=0
    _
  %s7 = ssub.s32 1, %s5
  %s8 = scalar_select 0, %s7, %s5
  $region1: #{tpu_custom_call.1} parent=0
    #allocation2 [shape = 'u8[229376]{0}', space=vmem, size = 0x38000, scoped, tag = 'input window, operand 1, single buffered']
    #allocation3 [shape = 's32[1]{0}', space=sflag, size = 0x4, scoped, tag = 'scoped memory for tpu_custom_call.1']
    #allocation4 [shape = 's32[1]{0}', space=sflag, size = 0x4, scoped, tag = 'scoped memory for tpu_custom_call.1']
    #allocation5 [shape = 'u8[4096]{0}', space=vmem, size = 0x1000, scoped, tag = 'output window, operand 0, single buffered']
    %9 = vsyncpa [#allocation3], 0
    %10 = vsyncpa [#allocation4], 0
    // Predicated region
    $region2: #{tpu_custom_call.1} parent=1 // pred_check
      _
    $region3: #{tpu_custom_call.1} parent=1 // pred_check_branch
      %12 = sbr.rel (0) target = $region5
    $region4: #{tpu_custom_call.1} parent=1 // pred_region
      _
    $region5: #{tpu_custom_call.1} parent=1 // pred_fallthru
      _
    // Predicated region
    $region6: #{tpu_custom_call.1} parent=1 // pred_check
      _
    $region7: #{tpu_custom_call.1} parent=1 // pred_check_branch
      %14 = sbr.rel (0) target = $region9
    $region8: #{tpu_custom_call.1} parent=1 // pred_region
      %s16 = ssub.s32 7168, 7168
      %17 = vsyncadd [#allocation3], %s16
      %s18 = sshll.u32 [#allocation2], 4
      %s19 = int_to_ptr.vmem [resolvable:$true] %s18
      %24 = dma.hbm_to_vmem [thread:$0]  %s1, 7168, %s19, [#allocation3], 512, 512, 32
    $region9: #{tpu_custom_call.1} parent=1 // pred_fallthru
      _
    // Predicated region
    $region10: #{tpu_custom_call.1} parent=1 // pred_check
      _
    $region11: #{tpu_custom_call.1} parent=1 // pred_check_branch
      %26 = sbr.rel (0) target = $region13
    $region12: #{tpu_custom_call.1} parent=1 // pred_region
      _
    $region13: #{tpu_custom_call.1} parent=1 // pred_fallthru
      _
    // Predicated region
    $region14: #{tpu_custom_call.1} parent=1 // pred_check
      _
    $region15: #{tpu_custom_call.1} parent=1 // pred_check_branch
      %28 = sbr.rel (0) target = $region17
    $region16: #{tpu_custom_call.1} parent=1 // pred_region
      _
    $region17: #{tpu_custom_call.1} parent=1 // pred_fallthru
      _
    // Predicated region
    $region18: #{tpu_custom_call.1} parent=1 // pred_check
      _
    $region19: #{tpu_custom_call.1} parent=1 // pred_check_branch
      %30 = sbr.rel (0) target = $region21
    $region20: #{tpu_custom_call.1} parent=1 // pred_region
      %31 = dma.done [#allocation3], 7168
    $region21: #{tpu_custom_call.1} parent=1 // pred_fallthru
      _
    %v32 = vld [vmem:[#allocation2] sm:$0xff]
    %v33 = vld [vmem:[#allocation2 + $0x8] sm:$0xff]
    %v34 = vld [vmem:[#allocation2 + $0x10] sm:$0xff]
    %v35 = vld [vmem:[#allocation2 + $0x18] sm:$0xff]
    %v36 = vld [vmem:[#allocation2 + $0x20] sm:$0xff]
    %v37 = vld [vmem:[#allocation2 + $0x28] sm:$0xff]
    %v38 = vld [vmem:[#allocation2 + $0x30] sm:$0xff]
    %v39 = vld [vmem:[#allocation2 + $0x38] sm:$0xff]
    %v40 = vld [vmem:[#allocation2 + $0x40] sm:$0xff]
    %v41 = vld [vmem:[#allocation2 + $0x48] sm:$0xff]
    %v42 = vld [vmem:[#allocation2 + $0x50] sm:$0xff]
    %v43 = vld [vmem:[#allocation2 + $0x58] sm:$0xff]
    %v44 = vld [vmem:[#allocation2 + $0x60] sm:$0xff]
    %v45 = vld [vmem:[#allocation2 + $0x68] sm:$0xff]
    %v46 = vld [vmem:[#allocation2 + $0x70] sm:$0xff]
    %v47 = vld [vmem:[#allocation2 + $0x78] sm:$0xff]
    %v48 = vld [vmem:[#allocation2 + $0x80] sm:$0xff]
    %v49 = vld [vmem:[#allocation2 + $0x88] sm:$0xff]
    %v50 = vld [vmem:[#allocation2 + $0x90] sm:$0xff]
    %v51 = vld [vmem:[#allocation2 + $0x98] sm:$0xff]
    %v52 = vld [vmem:[#allocation2 + $0xa0] sm:$0xff]
    %v53 = vld [vmem:[#allocation2 + $0xa8] sm:$0xff]
    %v54 = vld [vmem:[#allocation2 + $0xb0] sm:$0xff]
    %v55 = vld [vmem:[#allocation2 + $0xb8] sm:$0xff]
    %v56 = vld [vmem:[#allocation2 + $0xc0] sm:$0xff]
    %v57 = vld [vmem:[#allocation2 + $0xc8] sm:$0xff]
    %v58 = vld [vmem:[#allocation2 + $0xd0] sm:$0xff]
    %v59 = vld [vmem:[#allocation2 + $0xd8] sm:$0xff]
    %v60 = vld [vmem:[#allocation2 + $0xe0] sm:$0xff]
    %v61 = vld [vmem:[#allocation2 + $0xe8] sm:$0xff]
    %v62 = vld [vmem:[#allocation2 + $0xf0] sm:$0xff]
    %v63 = vld [vmem:[#allocation2 + $0xf8] sm:$0xff]
    %v64 = vld [vmem:[#allocation2 + $0x100] sm:$0xff]
    %v65 = vld [vmem:[#allocation2 + $0x108] sm:$0xff]
    %v66 = vld [vmem:[#allocation2 + $0x110] sm:$0xff]
    %v67 = vld [vmem:[#allocation2 + $0x118] sm:$0xff]
    %v68 = vld [vmem:[#allocation2 + $0x120] sm:$0xff]
    %v69 = vld [vmem:[#allocation2 + $0x128] sm:$0xff]
    %v70 = vld [vmem:[#allocation2 + $0x130] sm:$0xff]
    %v71 = vld [vmem:[#allocation2 + $0x138] sm:$0xff]
    %v72 = vld [vmem:[#allocation2 + $0x140] sm:$0xff]
    %v73 = vld [vmem:[#allocation2 + $0x148] sm:$0xff]
    %v74 = vld [vmem:[#allocation2 + $0x150] sm:$0xff]
    %v75 = vld [vmem:[#allocation2 + $0x158] sm:$0xff]
    %v76 = vld [vmem:[#allocation2 + $0x160] sm:$0xff]
    %v77 = vld [vmem:[#allocation2 + $0x168] sm:$0xff]
    %v78 = vld [vmem:[#allocation2 + $0x170] sm:$0xff]
    %v79 = vld [vmem:[#allocation2 + $0x178] sm:$0xff]
    %v80 = vld [vmem:[#allocation2 + $0x180] sm:$0xff]
    %s81 = scalar_lea.vmem [#allocation2], 416
    %v82 = vld [vmem:[%s81] ss:$8 sm:$0xf]
    %v83 = vld [vmem:[%s0] sm:$0xff]
    %v84 = vld [vmem:[%s0 + $0x8] sm:$0xff]
    %v85 = vld [vmem:[%s0 + $0x10] sm:$0xff]
    %v86 = vld [vmem:[%s0 + $0x18] sm:$0xff]
    %v87 = vld [vmem:[%s0 + $0x20] sm:$0xff]
    %v88 = vld [vmem:[%s0 + $0x28] sm:$0xff]
    %v89 = vld [vmem:[%s0 + $0x30] sm:$0xff]
    %v90 = vld [vmem:[%s0 + $0x38] sm:$0xff]
    %vm91 = vcmask 64512
    %v93 = vsel %vm91, %v83, 0
    %v96 = vsel %vm91, %v84, 0
    %v99 = vsel %vm91, %v85, 0
    %v102 = vsel %vm91, %v86, 0
    %v105 = vsel %vm91, %v87, 0
    %v108 = vsel %vm91, %v88, 0
    %v111 = vsel %vm91, %v89, 0
    %v114 = vsel %vm91, %v90, 0
    %116 = vmatprep.subr.mxu0 0.0
    %117 = vmatpush1.msra.mxu0 0.0
    %118 = vmatprep.subr.mxu0 0.0
    %119 = vmatpush1.msra.mxu0 0.0
    %120 = vmatprep.subr.mxu0 0.0
    %121 = vmatpush1.msra.mxu0 0.0
    %122 = vmatprep.subr.mxu0 0.0
    %123 = vmatpush1.msra.mxu0 0.0
    %124 = vmatprep.subr.mxu0 0.0
    %125 = vmatpush1.msra.mxu0 0.0
    %126 = vmatprep.subr.mxu0 0.0
    %127 = vmatpush1.msra.mxu0 0.0
    %128 = vmatprep.subr.mxu0 0.0
    %129 = vmatpush1.msra.mxu0 0.0
    %130 = vmatprep.subr.mxu0 0.0
    %131 = vmatpush1.msra.mxu0 0.0
    %132 = vmatprep.subr.mxu0 0.0
    %133 = vmatpush1.msra.mxu0 0.0
    %134 = vmatprep.subr.mxu0 0.0
    %135 = vmatpush1.msra.mxu0 0.0
    %136 = vmatprep.subr.mxu0 0.0
    %137 = vmatpush1.msra.mxu0 0.0
    %138 = vmatprep.subr.mxu0 0.0
    %139 = vmatpush1.msra.mxu0 0.0
    %140 = vmatprep.subr.mxu0 0.0
    %141 = vmatpush1.msra.mxu0 0.0
    %142 = vmatprep.subr.mxu0 0.0
    %143 = vmatpush1.msra.mxu0 0.0
    %144 = vmatprep.subr.mxu0 0.0
    %145 = vmatpush1.msra.mxu0 0.0
    %146 = vmatprep.subr.mxu0 0.0
    %147 = vmatpush1.msra.mxu0 %v80
    %148 = vmatprep.subr.mxu0 0.0
    %149 = vmatpush2.msra.mxu0 0.0
    %150 = vmatprep.subr.mxu0 0.0
    %151 = vmatpush2.msra.mxu0 0.0
    %152 = vmatprep.subr.mxu0 0.0
    %153 = vmatpush2.msra.mxu0 0.0
    %154 = vmatprep.subr.mxu0 0.0
    %155 = vmatpush2.msra.mxu0 0.0
    %156 = vmatprep.subr.mxu0 0.0
    %157 = vmatpush2.msra.mxu0 0.0
    %158 = vmatprep.subr.mxu0 0.0
    %159 = vmatpush2.msra.mxu0 0.0
    %160 = vmatprep.subr.mxu0 0.0
    %161 = vmatpush2.msra.mxu0 0.0
    %162 = vmatprep.subr.mxu0 0.0
    %163 = vmatpush2.msra.mxu0 0.0
    %164 = vmatprep.subr.mxu0 0.0
    %165 = vmatpush2.msra.mxu0 0.0
    %166 = vmatprep.subr.mxu0 0.0
    %167 = vmatpush2.msra.mxu0 0.0
    %168 = vmatprep.subr.mxu0 0.0
    %169 = vmatpush2.msra.mxu0 0.0
    %170 = vmatprep.subr.mxu0 0.0
    %171 = vmatpush2.msra.mxu0 0.0
    %172 = vmatprep.subr.mxu0 0.0
    %173 = vmatpush2.msra.mxu0 0.0
    %174 = vmatprep.subr.mxu0 0.0
    %175 = vmatpush2.msra.mxu0 0.0
    %176 = vmatprep.subr.mxu0 0.0
    %177 = vmatpush2.msra.mxu0 0.0
    %178 = vmatprep.subr.mxu0 0.0
    %179 = vmatpush2.msra.mxu0 0.0
    %180 = vmatprep.mubr.f32.mxu0 0.0
    %181 = vmatmul.mubr.f32.gmra.mxu0 %v93
    %v182 = vpop.f32.mrf.mxu0
    %v183 = vadd.f32 0.0, %v182
    %v184 = vpop.f32.mrf.mxu0
    %185 = vmatprep.mubr.f32.mxu0 0.0
    %186 = vmatmul.mubr.f32.gmra.mxu0 %v96
    %v187 = vpop.f32.mrf.mxu0
    %v188 = vadd.f32 0.0, %v187
    %v189 = vpop.f32.mrf.mxu0
    %190 = vmatprep.mubr.f32.mxu0 0.0
    %191 = vmatmul.mubr.f32.gmra.mxu0 %v99
    %v192 = vpop.f32.mrf.mxu0
    %v193 = vadd.f32 0.0, %v192
    %v194 = vpop.f32.mrf.mxu0
    %195 = vmatprep.mubr.f32.mxu0 0.0
    %196 = vmatmul.mubr.f32.gmra.mxu0 %v102
    %v197 = vpop.f32.mrf.mxu0
    %v198 = vadd.f32 0.0, %v197
    %v199 = vpop.f32.mrf.mxu0
    %200 = vmatprep.mubr.f32.mxu0 0.0
    %201 = vmatmul.mubr.f32.gmra.mxu0 %v105
    %v202 = vpop.f32.mrf.mxu0
    %v203 = vadd.f32 0.0, %v202
    %v204 = vpop.f32.mrf.mxu0
    %205 = vmatprep.mubr.f32.mxu0 0.0
    %206 = vmatmul.mubr.f32.gmra.mxu0 %v108
    %v207 = vpop.f32.mrf.mxu0
    %v208 = vadd.f32 0.0, %v207
    %v209 = vpop.f32.mrf.mxu0
    %210 = vmatprep.mubr.f32.mxu0 0.0
    %211 = vmatmul.mubr.f32.gmra.mxu0 %v111
    %v212 = vpop.f32.mrf.mxu0
    %v213 = vadd.f32 0.0, %v212
    %v214 = vpop.f32.mrf.mxu0
    %215 = vmatprep.mubr.f32.mxu0 0.0
    %216 = vmatmul.mubr.f32.gmra.mxu0 %v114
    %v217 = vpop.f32.mrf.mxu0
    %v218 = vadd.f32 0.0, %v217
    %v219 = vpop.f32.mrf.mxu0
    %220 = vdwg.mxu0
    %v221 = vld [vmem:[%s2] sm:$0xff]
    %v222 = vld [vmem:[%s3] sm:$0xff]
    %s223 = scalar_lea.vmem %s2, 8
    %v224 = vld [vmem:[%s223] sm:$0xff]
    %s225 = scalar_lea.vmem %s3, 8
    %v226 = vld [vmem:[%s225] sm:$0xff]
    %228 = vrot.lane.b32.xlu0 %v224, 32
    %v229 = vpop.permute.xlu0 %228
    %vm231 = vcmask 261120
    %v232 = vsel %vm231, %v221, %v229
    %vm233 = vcmask 523264
    %v234 = vsel %vm233, %v232, 0.0
    %vm235 = vcmask 654336
    %v236 = vsel %vm235, %v234, 0.0
    %v238 = vlaneseq
    %v239 = vshrl.u32 %v238, 7
    %v240 = vsub.s32 0, %v239
    %v241 = vrot.slane %v82, %v240
    %v242 = vlaneseq
    %v243 = vshrl.u32 %v242, 7
    %v244 = vsub.s32 1, %v243
    %v245 = vrot.slane %v82, %v244
    %v246 = vlaneseq
    %v247 = vshrl.u32 %v246, 7
    %v248 = vsub.s32 2, %v247
    %v249 = vrot.slane %v82, %v248
    %v250 = vlaneseq
    %v251 = vshrl.u32 %v250, 7
    %v252 = vsub.s32 3, %v251
    %v253 = vrot.slane %v82, %v252
    %vm258 = vcmask 785408
    %v260 = vsel %vm258, %v236, 0
    %262 = vmatprep.subr.mxu0 0.0
    %263 = vmatpush1.msra.mxu0 0.0
    %264 = vmatprep.subr.mxu0 0.0
    %265 = vmatpush1.msra.mxu0 0.0
    %266 = vmatprep.subr.mxu0 0.0
    %267 = vmatpush1.msra.mxu0 0.0
    %268 = vmatprep.subr.mxu0 0.0
    %269 = vmatpush1.msra.mxu0 0.0
    %270 = vmatprep.subr.mxu0 %v77
    %271 = vmatpush1.msra.mxu0 %v76
    %272 = vmatprep.subr.mxu0 %v73
    %273 = vmatpush1.msra.mxu0 %v72
    %274 = vmatprep.subr.mxu0 %v69
    %275 = vmatpush1.msra.mxu0 %v68
    %276 = vmatprep.subr.mxu0 %v65
    %277 = vmatpush1.msra.mxu0 %v64
    %278 = vmatprep.subr.mxu0 %v61
    %279 = vmatpush1.msra.mxu0 %v60
    %280 = vmatprep.subr.mxu0 %v57
    %281 = vmatpush1.msra.mxu0 %v56
    %282 = vmatprep.subr.mxu0 %v53
    %283 = vmatpush1.msra.mxu0 %v52
    %284 = vmatprep.subr.mxu0 %v49
    %285 = vmatpush1.msra.mxu0 %v48
    %286 = vmatprep.subr.mxu0 %v45
    %287 = vmatpush1.msra.mxu0 %v44
    %288 = vmatprep.subr.mxu0 %v41
    %289 = vmatpush1.msra.mxu0 %v40
    %290 = vmatprep.subr.mxu0 %v37
    %291 = vmatpush1.msra.mxu0 %v36
    %292 = vmatprep.subr.mxu0 %v33
    %293 = vmatpush1.msra.mxu0 %v32
    %294 = vmatprep.subr.mxu0 0.0
    %295 = vmatpush2.msra.mxu0 0.0
    %296 = vmatprep.subr.mxu0 0.0
    %297 = vmatpush2.msra.mxu0 0.0
    %298 = vmatprep.subr.mxu0 0.0
    %299 = vmatpush2.msra.mxu0 0.0
    %300 = vmatprep.subr.mxu0 0.0
    %301 = vmatpush2.msra.mxu0 0.0
    %302 = vmatprep.subr.mxu0 0.0
    %303 = vmatpush2.msra.mxu0 0.0
    %304 = vmatprep.subr.mxu0 0.0
    %305 = vmatpush2.msra.mxu0 0.0
    %306 = vmatprep.subr.mxu0 0.0
    %307 = vmatpush2.msra.mxu0 0.0
    %308 = vmatprep.subr.mxu0 0.0
    %309 = vmatpush2.msra.mxu0 0.0
    %310 = vmatprep.subr.mxu0 0.0
    %311 = vmatpush2.msra.mxu0 0.0
    %312 = vmatprep.subr.mxu0 0.0
    %313 = vmatpush2.msra.mxu0 0.0
    %314 = vmatprep.subr.mxu0 0.0
    %315 = vmatpush2.msra.mxu0 0.0
    %316 = vmatprep.subr.mxu0 0.0
    %317 = vmatpush2.msra.mxu0 0.0
    %318 = vmatprep.subr.mxu0 0.0
    %319 = vmatpush2.msra.mxu0 0.0
    %320 = vmatprep.subr.mxu0 0.0
    %321 = vmatpush2.msra.mxu0 0.0
    %322 = vmatprep.subr.mxu0 0.0
    %323 = vmatpush2.msra.mxu0 0.0
    %324 = vmatprep.subr.mxu0 0.0
    %325 = vmatpush2.msra.mxu0 0.0
    %326 = vmatprep.mubr.f32.mxu0 0.0
    %327 = vmatmul.mubr.f32.gmra.mxu0 %v260
    %v328 = vpop.f32.mrf.mxu0
    %v329 = vadd.f32 %v241, %v328
    %v330 = vpop.f32.mrf.mxu0
    %331 = vdwg.mxu0
    %v332 = vadd.f32 %v329, %v183
    %v333 = vxor.u32 %v332, 2147483648
    %v334 = vmul.f32 %v333, 1.442695
    %v335 = vpow.pop %v334
    %v336 = vadd.f32 %v335, 1.0
    %v337 = vrcp.pop %v336
    %v338 = vmul.f32 1.0, %v337
    %v339 = vtanh.pop %v332
    %341 = vrot.lane.b32.xlu0 %v222, 32
    %v342 = vpop.permute.xlu0 %341
    %v344 = vmul.f32 %v338, %v342
    %346 = vrot.lane.b32.xlu0 %v339, 32
    %v347 = vpop.permute.xlu0 %346
    %v349 = vmul.f32 %v338, %v347
    %351 = vrot.lane.b32.xlu0 %v349, 32
    %v352 = vpop.permute.xlu0 %351
    %v354 = vadd.f32 %v344, %v352
    %v355 = vtanh.pop %v354
    %357 = vrot.lane.b32.xlu0 %v355, 32
    %v358 = vpop.permute.xlu0 %357
    %v360 = vmul.f32 %v338, %v358
    %362 = vrot.lane.b32.xlu0 %v360, 64
    %v363 = vpop.permute.xlu0 %362
    %v365 = vsel %vm231, %v363, %v229
    %v366 = vsel %vm233, %v365, 0.0
    %v367 = vsel %vm235, %v366, 0.0
    %v369 = vsel %vm258, %v367, 0
    %371 = vmatprep.subr.mxu0 0.0
    %372 = vmatpush1.msra.mxu0 0.0
    %373 = vmatprep.subr.mxu0 0.0
    %374 = vmatpush1.msra.mxu0 0.0
    %375 = vmatprep.subr.mxu0 0.0
    %376 = vmatpush1.msra.mxu0 0.0
    %377 = vmatprep.subr.mxu0 0.0
    %378 = vmatpush1.msra.mxu0 0.0
    %379 = vmatprep.subr.mxu0 %v77
    %380 = vmatpush1.msra.mxu0 %v76
    %381 = vmatprep.subr.mxu0 %v73
    %382 = vmatpush1.msra.mxu0 %v72
    %383 = vmatprep.subr.mxu0 %v69
    %384 = vmatpush1.msra.mxu0 %v68
    %385 = vmatprep.subr.mxu0 %v65
    %386 = vmatpush1.msra.mxu0 %v64
    %387 = vmatprep.subr.mxu0 %v61
    %388 = vmatpush1.msra.mxu0 %v60
    %389 = vmatprep.subr.mxu0 %v57
    %390 = vmatpush1.msra.mxu0 %v56
    %391 = vmatprep.subr.mxu0 %v53
    %392 = vmatpush1.msra.mxu0 %v52
    %393 = vmatprep.subr.mxu0 %v49
    %394 = vmatpush1.msra.mxu0 %v48
    %395 = vmatprep.subr.mxu0 %v45
    %396 = vmatpush1.msra.mxu0 %v44
    %397 = vmatprep.subr.mxu0 %v41
    %398 = vmatpush1.msra.mxu0 %v40
    %399 = vmatprep.subr.mxu0 %v37
    %400 = vmatpush1.msra.mxu0 %v36
    %401 = vmatprep.subr.mxu0 %v33
    %402 = vmatpush1.msra.mxu0 %v32
    %403 = vmatprep.subr.mxu0 0.0
    %404 = vmatpush2.msra.mxu0 0.0
    %405 = vmatprep.subr.mxu0 0.0
    %406 = vmatpush2.msra.mxu0 0.0
    %407 = vmatprep.subr.mxu0 0.0
    %408 = vmatpush2.msra.mxu0 0.0
    %409 = vmatprep.subr.mxu0 0.0
    %410 = vmatpush2.msra.mxu0 0.0
    %411 = vmatprep.subr.mxu0 0.0
    %412 = vmatpush2.msra.mxu0 0.0
    %413 = vmatprep.subr.mxu0 0.0
    %414 = vmatpush2.msra.mxu0 0.0
    %415 = vmatprep.subr.mxu0 0.0
    %416 = vmatpush2.msra.mxu0 0.0
    %417 = vmatprep.subr.mxu0 0.0
    %418 = vmatpush2.msra.mxu0 0.0
    %419 = vmatprep.subr.mxu0 0.0
    %420 = vmatpush2.msra.mxu0 0.0
    %421 = vmatprep.subr.mxu0 0.0
    %422 = vmatpush2.msra.mxu0 0.0
    %423 = vmatprep.subr.mxu0 0.0
    %424 = vmatpush2.msra.mxu0 0.0
    %425 = vmatprep.subr.mxu0 0.0
    %426 = vmatpush2.msra.mxu0 0.0
    %427 = vmatprep.subr.mxu0 0.0
    %428 = vmatpush2.msra.mxu0 0.0
    %429 = vmatprep.subr.mxu0 0.0
    %430 = vmatpush2.msra.mxu0 0.0
    %431 = vmatprep.subr.mxu0 0.0
    %432 = vmatpush2.msra.mxu0 0.0
    %433 = vmatprep.subr.mxu0 0.0
    %434 = vmatpush2.msra.mxu0 0.0
    %435 = vmatprep.mubr.f32.mxu0 0.0
    %436 = vmatmul.mubr.f32.gmra.mxu0 %v369
    %v437 = vpop.f32.mrf.mxu0
    %v438 = vadd.f32 %v241, %v437
    %v439 = vpop.f32.mrf.mxu0
    %v440 = vadd.f32 %v245, %v439
    %441 = vdwg.mxu0
    %v442 = vadd.f32 %v438, %v188
    %v443 = vxor.u32 %v442, 2147483648
    %v444 = vmul.f32 %v443, 1.442695
    %v445 = vpow.pop %v444
    %v446 = vadd.f32 %v445, 1.0
    %v447 = vrcp.pop %v446
    %v448 = vmul.f32 1.0, %v447
    %v449 = vtanh.pop %v442
    %v450 = vmul.f32 %v448, %v354
    %452 = vrot.lane.b32.xlu0 %v449, 32
    %v453 = vpop.permute.xlu0 %452
    %v455 = vmul.f32 %v448, %v453
    %457 = vrot.lane.b32.xlu0 %v455, 32
    %v458 = vpop.permute.xlu0 %457
    %v460 = vadd.f32 %v450, %v458
    %v461 = vtanh.pop %v460
    %463 = vrot.lane.b32.xlu0 %v461, 32
    %v464 = vpop.permute.xlu0 %463
    %v466 = vmul.f32 %v448, %v464
    %v467 = vxor.u32 %v440, 2147483648
    %v468 = vmul.f32 %v467, 1.442695
    %v469 = vpow.pop %v468
    %v470 = vadd.f32 %v469, 1.0
    %v471 = vrcp.pop %v470
    %v472 = vmul.f32 1.0, %v471
    %v473 = vtanh.pop %v440
    %475 = vrot.lane.b32.xlu0 %v226, 32
    %v476 = vpop.permute.xlu0 %475
    %v478 = vmul.f32 %v472, %v476
    %480 = vrot.lane.b32.xlu0 %v473, 32
    %v481 = vpop.permute.xlu0 %480
    %v483 = vmul.f32 %v472, %v481
    %485 = vrot.lane.b32.xlu0 %v483, 32
    %v486 = vpop.permute.xlu0 %485
    %v488 = vadd.f32 %v478, %v486
    %v489 = vtanh.pop %v488
    %491 = vrot.lane.b32.xlu0 %v489, 32
    %v492 = vpop.permute.xlu0 %491
    %v494 = vmul.f32 %v472, %v492
    %496 = vrot.lane.b32.xlu0 %v466, 64
    %v497 = vpop.permute.xlu0 %496
    %500 = vrot.lane.b32.xlu0 %v494, 96
    %v501 = vpop.permute.xlu0 %500
    %v503 = vsel %vm231, %v497, %v501
    %v504 = vsel %vm233, %v503, 0.0
    %v505 = vsel %vm235, %v504, 0.0
    %v507 = vsel %vm258, %v505, 0
    %509 = vmatprep.subr.mxu0 0.0
    %510 = vmatpush1.msra.mxu0 0.0
    %511 = vmatprep.subr.mxu0 0.0
    %512 = vmatpush1.msra.mxu0 0.0
    %513 = vmatprep.subr.mxu0 0.0
    %514 = vmatpush1.msra.mxu0 0.0
    %515 = vmatprep.subr.mxu0 0.0
    %516 = vmatpush1.msra.mxu0 0.0
    %517 = vmatprep.subr.mxu0 %v77
    %518 = vmatpush1.msra.mxu0 %v76
    %519 = vmatprep.subr.mxu0 %v73
    %520 = vmatpush1.msra.mxu0 %v72
    %521 = vmatprep.subr.mxu0 %v69
    %522 = vmatpush1.msra.mxu0 %v68
    %523 = vmatprep.subr.mxu0 %v65
    %524 = vmatpush1.msra.mxu0 %v64
    %525 = vmatprep.subr.mxu0 %v61
    %526 = vmatpush1.msra.mxu0 %v60
    %527 = vmatprep.subr.mxu0 %v57
    %528 = vmatpush1.msra.mxu0 %v56
    %529 = vmatprep.subr.mxu0 %v53
    %530 = vmatpush1.msra.mxu0 %v52
    %531 = vmatprep.subr.mxu0 %v49
    %532 = vmatpush1.msra.mxu0 %v48
    %533 = vmatprep.subr.mxu0 %v45
    %534 = vmatpush1.msra.mxu0 %v44
    %535 = vmatprep.subr.mxu0 %v41
    %536 = vmatpush1.msra.mxu0 %v40
    %537 = vmatprep.subr.mxu0 %v37
    %538 = vmatpush1.msra.mxu0 %v36
    %539 = vmatprep.subr.mxu0 %v33
    %540 = vmatpush1.msra.mxu0 %v32
    %541 = vmatprep.subr.mxu0 0.0
    %542 = vmatpush2.msra.mxu0 0.0
    %543 = vmatprep.subr.mxu0 0.0
    %544 = vmatpush2.msra.mxu0 0.0
    %545 = vmatprep.subr.mxu0 0.0
    %546 = vmatpush2.msra.mxu0 0.0
    %547 = vmatprep.subr.mxu0 0.0
    %548 = vmatpush2.msra.mxu0 0.0
    %549 = vmatprep.subr.mxu0 0.0
    %550 = vmatpush2.msra.mxu0 0.0
    %551 = vmatprep.subr.mxu0 0.0
    %552 = vmatpush2.msra.mxu0 0.0
    %553 = vmatprep.subr.mxu0 0.0
    %554 = vmatpush2.msra.mxu0 0.0
    %555 = vmatprep.subr.mxu0 0.0
    %556 = vmatpush2.msra.mxu0 0.0
    %557 = vmatprep.subr.mxu0 0.0
    %558 = vmatpush2.msra.mxu0 0.0
    %559 = vmatprep.subr.mxu0 0.0
    %560 = vmatpush2.msra.mxu0 0.0
    %561 = vmatprep.subr.mxu0 0.0
    %562 = vmatpush2.msra.mxu0 0.0
    %563 = vmatprep.subr.mxu0 0.0
    %564 = vmatpush2.msra.mxu0 0.0
    %565 = vmatprep.subr.mxu0 0.0
    %566 = vmatpush2.msra.mxu0 0.0
    %567 = vmatprep.subr.mxu0 0.0
    %568 = vmatpush2.msra.mxu0 0.0
    %569 = vmatprep.subr.mxu0 0.0
    %570 = vmatpush2.msra.mxu0 0.0
    %571 = vmatprep.subr.mxu0 0.0
    %572 = vmatpush2.msra.mxu0 0.0
    %573 = vmatprep.mubr.f32.mxu0 0.0
    %574 = vmatmul.mubr.f32.gmra.mxu0 %v507
    %v575 = vpop.f32.mrf.mxu0
    %v576 = vadd.f32 %v241, %v575
    %v577 = vpop.f32.mrf.mxu0
    %v578 = vadd.f32 %v245, %v577
    %579 = vdwg.mxu0
    %580 = vmatprep.subr.mxu0 0.0
    %581 = vmatpush1.msra.mxu0 0.0
    %582 = vmatprep.subr.mxu0 0.0
    %583 = vmatpush1.msra.mxu0 0.0
    %584 = vmatprep.subr.mxu0 0.0
    %585 = vmatpush1.msra.mxu0 0.0
    %586 = vmatprep.subr.mxu0 0.0
    %587 = vmatpush1.msra.mxu0 0.0
    %588 = vmatprep.subr.mxu0 %v79
    %589 = vmatpush1.msra.mxu0 %v78
    %590 = vmatprep.subr.mxu0 %v75
    %591 = vmatpush1.msra.mxu0 %v74
    %592 = vmatprep.subr.mxu0 %v71
    %593 = vmatpush1.msra.mxu0 %v70
    %594 = vmatprep.subr.mxu0 %v67
    %595 = vmatpush1.msra.mxu0 %v66
    %596 = vmatprep.subr.mxu0 %v63
    %597 = vmatpush1.msra.mxu0 %v62
    %598 = vmatprep.subr.mxu0 %v59
    %599 = vmatpush1.msra.mxu0 %v58
    %600 = vmatprep.subr.mxu0 %v55
    %601 = vmatpush1.msra.mxu0 %v54
    %602 = vmatprep.subr.mxu0 %v51
    %603 = vmatpush1.msra.mxu0 %v50
    %604 = vmatprep.subr.mxu0 %v47
    %605 = vmatpush1.msra.mxu0 %v46
    %606 = vmatprep.subr.mxu0 %v43
    %607 = vmatpush1.msra.mxu0 %v42
    %608 = vmatprep.subr.mxu0 %v39
    %609 = vmatpush1.msra.mxu0 %v38
    %610 = vmatprep.subr.mxu0 %v35
    %611 = vmatpush1.msra.mxu0 %v34
    %612 = vmatprep.subr.mxu0 0.0
    %613 = vmatpush2.msra.mxu0 0.0
    %614 = vmatprep.subr.mxu0 0.0
    %615 = vmatpush2.msra.mxu0 0.0
    %616 = vmatprep.subr.mxu0 0.0
    %617 = vmatpush2.msra.mxu0 0.0
    %618 = vmatprep.subr.mxu0 0.0
    %619 = vmatpush2.msra.mxu0 0.0
    %620 = vmatprep.subr.mxu0 0.0
    %621 = vmatpush2.msra.mxu0 0.0
    %622 = vmatprep.subr.mxu0 0.0
    %623 = vmatpush2.msra.mxu0 0.0
    %624 = vmatprep.subr.mxu0 0.0
    %625 = vmatpush2.msra.mxu0 0.0
    %626 = vmatprep.subr.mxu0 0.0
    %627 = vmatpush2.msra.mxu0 0.0
    %628 = vmatprep.subr.mxu0 0.0
    %629 = vmatpush2.msra.mxu0 0.0
    %630 = vmatprep.subr.mxu0 0.0
    %631 = vmatpush2.msra.mxu0 0.0
    %632 = vmatprep.subr.mxu0 0.0
    %633 = vmatpush2.msra.mxu0 0.0
    %634 = vmatprep.subr.mxu0 0.0
    %635 = vmatpush2.msra.mxu0 0.0
    %636 = vmatprep.subr.mxu0 0.0
    %637 = vmatpush2.msra.mxu0 0.0
    %638 = vmatprep.subr.mxu0 0.0
    %639 = vmatpush2.msra.mxu0 0.0
    %640 = vmatprep.subr.mxu0 0.0
    %641 = vmatpush2.msra.mxu0 0.0
    %642 = vmatprep.subr.mxu0 0.0
    %643 = vmatpush2.msra.mxu0 0.0
    %644 = vmatprep.mubr.f32.mxu0 0.0
    %645 = vmatmul.mubr.f32.gmra.mxu0 %v507
    %v646 = vpop.f32.mrf.mxu0
    %v647 = vadd.f32 %v249, %v646
    %v648 = vpop.f32.mrf.mxu0
    %649 = vdwg.mxu0
    %v650 = vadd.f32 %v576, %v193
    %v651 = vxor.u32 %v650, 2147483648
    %v652 = vmul.f32 %v651, 1.442695
    %v653 = vpow.pop %v652
    %v654 = vadd.f32 %v653, 1.0
    %v655 = vrcp.pop %v654
    %v656 = vmul.f32 1.0, %v655
    %v657 = vtanh.pop %v650
    %v658 = vmul.f32 %v656, %v460
    %660 = vrot.lane.b32.xlu0 %v657, 32
    %v661 = vpop.permute.xlu0 %660
    %v663 = vmul.f32 %v656, %v661
    %665 = vrot.lane.b32.xlu0 %v663, 32
    %v666 = vpop.permute.xlu0 %665
    %v668 = vadd.f32 %v658, %v666
    %v669 = vtanh.pop %v668
    %671 = vrot.lane.b32.xlu0 %v669, 32
    %v672 = vpop.permute.xlu0 %671
    %v674 = vmul.f32 %v656, %v672
    %v675 = vxor.u32 %v578, 2147483648
    %v676 = vmul.f32 %v675, 1.442695
    %v677 = vpow.pop %v676
    %v678 = vadd.f32 %v677, 1.0
    %v679 = vrcp.pop %v678
    %v680 = vmul.f32 1.0, %v679
    %v681 = vtanh.pop %v578
    %v682 = vmul.f32 %v680, %v488
    %684 = vrot.lane.b32.xlu0 %v681, 32
    %v685 = vpop.permute.xlu0 %684
    %v687 = vmul.f32 %v680, %v685
    %689 = vrot.lane.b32.xlu0 %v687, 32
    %v690 = vpop.permute.xlu0 %689
    %v692 = vadd.f32 %v682, %v690
    %v693 = vtanh.pop %v692
    %695 = vrot.lane.b32.xlu0 %v693, 32
    %v696 = vpop.permute.xlu0 %695
    %v698 = vmul.f32 %v680, %v696
    %700 = vrot.lane.b32.xlu0 %v647, 80
    %v701 = vpop.permute.xlu0 %700
    %v703 = vadd.f32 %v647, %v701
    %v704 = vxor.u32 %v703, 2147483648
    %v705 = vmul.f32 %v704, 1.442695
    %v706 = vpow.pop %v705
    %v707 = vadd.f32 %v706, 1.0
    %v708 = vrcp.pop %v707
    %v709 = vmul.f32 1.0, %v708
    %710 = vrot.lane.b32.xlu0 %v647, 48
    %v711 = vpop.permute.xlu0 %710
    %v713 = vmul.f32 %v709, %v711
    %715 = vrot.lane.b32.xlu0 %v713, 32
    %v716 = vpop.permute.xlu0 %715
    %v718 = vadd.f32 %v647, %v716
    %v719 = vtanh.pop %v718
    %v720 = vsub.f32 1.0, %v709
    %722 = vrot.lane.b32.xlu0 %v719, 112
    %v723 = vpop.permute.xlu0 %722
    %v725 = vmul.f32 %v720, %v723
    %v726 = vmul.f32 %v709, 0.0
    %v727 = vadd.f32 %v725, %v726
    %729 = vrot.lane.b32.xlu0 %v674, 64
    %v730 = vpop.permute.xlu0 %729
    %733 = vrot.lane.b32.xlu0 %v698, 96
    %v734 = vpop.permute.xlu0 %733
    %737 = vrot.lane.b32.xlu0 %v727, 48
    %v738 = vpop.permute.xlu0 %737
    %v740 = vsel %vm231, %v730, %v734
    %v741 = vsel %vm233, %v740, %v738
    %v742 = vsel %vm235, %v741, 0.0
    %v744 = vsel %vm258, %v742, 0
    %746 = vmatprep.subr.mxu0 0.0
    %747 = vmatpush1.msra.mxu0 0.0
    %748 = vmatprep.subr.mxu0 0.0
    %749 = vmatpush1.msra.mxu0 0.0
    %750 = vmatprep.subr.mxu0 0.0
    %751 = vmatpush1.msra.mxu0 0.0
    %752 = vmatprep.subr.mxu0 0.0
    %753 = vmatpush1.msra.mxu0 0.0
    %754 = vmatprep.subr.mxu0 %v77
    %755 = vmatpush1.msra.mxu0 %v76
    %756 = vmatprep.subr.mxu0 %v73
    %757 = vmatpush1.msra.mxu0 %v72
    %758 = vmatprep.subr.mxu0 %v69
    %759 = vmatpush1.msra.mxu0 %v68
    %760 = vmatprep.subr.mxu0 %v65
    %761 = vmatpush1.msra.mxu0 %v64
    %762 = vmatprep.subr.mxu0 %v61
    %763 = vmatpush1.msra.mxu0 %v60
    %764 = vmatprep.subr.mxu0 %v57
    %765 = vmatpush1.msra.mxu0 %v56
    %766 = vmatprep.subr.mxu0 %v53
    %767 = vmatpush1.msra.mxu0 %v52
    %768 = vmatprep.subr.mxu0 %v49
    %769 = vmatpush1.msra.mxu0 %v48
    %770 = vmatprep.subr.mxu0 %v45
    %771 = vmatpush1.msra.mxu0 %v44
    %772 = vmatprep.subr.mxu0 %v41
    %773 = vmatpush1.msra.mxu0 %v40
    %774 = vmatprep.subr.mxu0 %v37
    %775 = vmatpush1.msra.mxu0 %v36
    %776 = vmatprep.subr.mxu0 %v33
    %777 = vmatpush1.msra.mxu0 %v32
    %778 = vmatprep.subr.mxu0 0.0
    %779 = vmatpush2.msra.mxu0 0.0
    %780 = vmatprep.subr.mxu0 0.0
    %781 = vmatpush2.msra.mxu0 0.0
    %782 = vmatprep.subr.mxu0 0.0
    %783 = vmatpush2.msra.mxu0 0.0
    %784 = vmatprep.subr.mxu0 0.0
    %785 = vmatpush2.msra.mxu0 0.0
    %786 = vmatprep.subr.mxu0 0.0
    %787 = vmatpush2.msra.mxu0 0.0
    %788 = vmatprep.subr.mxu0 0.0
    %789 = vmatpush2.msra.mxu0 0.0
    %790 = vmatprep.subr.mxu0 0.0
    %791 = vmatpush2.msra.mxu0 0.0
    %792 = vmatprep.subr.mxu0 0.0
    %793 = vmatpush2.msra.mxu0 0.0
    %794 = vmatprep.subr.mxu0 0.0
    %795 = vmatpush2.msra.mxu0 0.0
    %796 = vmatprep.subr.mxu0 0.0
    %797 = vmatpush2.msra.mxu0 0.0
    %798 = vmatprep.subr.mxu0 0.0
    %799 = vmatpush2.msra.mxu0 0.0
    %800 = vmatprep.subr.mxu0 0.0
    %801 = vmatpush2.msra.mxu0 0.0
    %802 = vmatprep.subr.mxu0 0.0
    %803 = vmatpush2.msra.mxu0 0.0
    %804 = vmatprep.subr.mxu0 0.0
    %805 = vmatpush2.msra.mxu0 0.0
    %806 = vmatprep.subr.mxu0 0.0
    %807 = vmatpush2.msra.mxu0 0.0
    %808 = vmatprep.subr.mxu0 0.0
    %809 = vmatpush2.msra.mxu0 0.0
    %810 = vmatprep.mubr.f32.mxu0 0.0
    %811 = vmatmul.mubr.f32.gmra.mxu0 %v744
    %v812 = vpop.f32.mrf.mxu0
    %v813 = vadd.f32 %v241, %v812
    %v814 = vpop.f32.mrf.mxu0
    %v815 = vadd.f32 %v245, %v814
    %816 = vdwg.mxu0
    %817 = vmatprep.subr.mxu0 0.0
    %818 = vmatpush1.msra.mxu0 0.0
    %819 = vmatprep.subr.mxu0 0.0
    %820 = vmatpush1.msra.mxu0 0.0
    %821 = vmatprep.subr.mxu0 0.0
    %822 = vmatpush1.msra.mxu0 0.0
    %823 = vmatprep.subr.mxu0 0.0
    %824 = vmatpush1.msra.mxu0 0.0
    %825 = vmatprep.subr.mxu0 %v79
    %826 = vmatpush1.msra.mxu0 %v78
    %827 = vmatprep.subr.mxu0 %v75
    %828 = vmatpush1.msra.mxu0 %v74
    %829 = vmatprep.subr.mxu0 %v71
    %830 = vmatpush1.msra.mxu0 %v70
    %831 = vmatprep.subr.mxu0 %v67
    %832 = vmatpush1.msra.mxu0 %v66
    %833 = vmatprep.subr.mxu0 %v63
    %834 = vmatpush1.msra.mxu0 %v62
    %835 = vmatprep.subr.mxu0 %v59
    %836 = vmatpush1.msra.mxu0 %v58
    %837 = vmatprep.subr.mxu0 %v55
    %838 = vmatpush1.msra.mxu0 %v54
    %839 = vmatprep.subr.mxu0 %v51
    %840 = vmatpush1.msra.mxu0 %v50
    %841 = vmatprep.subr.mxu0 %v47
    %842 = vmatpush1.msra.mxu0 %v46
    %843 = vmatprep.subr.mxu0 %v43
    %844 = vmatpush1.msra.mxu0 %v42
    %845 = vmatprep.subr.mxu0 %v39
    %846 = vmatpush1.msra.mxu0 %v38
    %847 = vmatprep.subr.mxu0 %v35
    %848 = vmatpush1.msra.mxu0 %v34
    %849 = vmatprep.subr.mxu0 0.0
    %850 = vmatpush2.msra.mxu0 0.0
    %851 = vmatprep.subr.mxu0 0.0
    %852 = vmatpush2.msra.mxu0 0.0
    %853 = vmatprep.subr.mxu0 0.0
    %854 = vmatpush2.msra.mxu0 0.0
    %855 = vmatprep.subr.mxu0 0.0
    %856 = vmatpush2.msra.mxu0 0.0
    %857 = vmatprep.subr.mxu0 0.0
    %858 = vmatpush2.msra.mxu0 0.0
    %859 = vmatprep.subr.mxu0 0.0
    %860 = vmatpush2.msra.mxu0 0.0
    %861 = vmatprep.subr.mxu0 0.0
    %862 = vmatpush2.msra.mxu0 0.0
    %863 = vmatprep.subr.mxu0 0.0
    %864 = vmatpush2.msra.mxu0 0.0
    %865 = vmatprep.subr.mxu0 0.0
    %866 = vmatpush2.msra.mxu0 0.0
    %867 = vmatprep.subr.mxu0 0.0
    %868 = vmatpush2.msra.mxu0 0.0
    %869 = vmatprep.subr.mxu0 0.0
    %870 = vmatpush2.msra.mxu0 0.0
    %871 = vmatprep.subr.mxu0 0.0
    %872 = vmatpush2.msra.mxu0 0.0
    %873 = vmatprep.subr.mxu0 0.0
    %874 = vmatpush2.msra.mxu0 0.0
    %875 = vmatprep.subr.mxu0 0.0
    %876 = vmatpush2.msra.mxu0 0.0
    %877 = vmatprep.subr.mxu0 0.0
    %878 = vmatpush2.msra.mxu0 0.0
    %879 = vmatprep.subr.mxu0 0.0
    %880 = vmatpush2.msra.mxu0 0.0
    %881 = vmatprep.mubr.f32.mxu0 0.0
    %882 = vmatmul.mubr.f32.gmra.mxu0 %v744
    %v883 = vpop.f32.mrf.mxu0
    %v884 = vadd.f32 %v249, %v883
    %v885 = vpop.f32.mrf.mxu0
    %v886 = vadd.f32 %v253, %v885
    %887 = vdwg.mxu0
    %v888 = vadd.f32 %v813, %v198
    %v889 = vxor.u32 %v888, 2147483648
    %v890 = vmul.f32 %v889, 1.442695
    %v891 = vpow.pop %v890
    %v892 = vadd.f32 %v891, 1.0
    %v893 = vrcp.pop %v892
    %v894 = vmul.f32 1.0, %v893
    %v895 = vtanh.pop %v888
    %v896 = vmul.f32 %v894, %v668
    %898 = vrot.lane.b32.xlu0 %v895, 32
    %v899 = vpop.permute.xlu0 %898
    %v901 = vmul.f32 %v894, %v899
    %903 = vrot.lane.b32.xlu0 %v901, 32
    %v904 = vpop.permute.xlu0 %903
    %v906 = vadd.f32 %v896, %v904
    %v907 = vtanh.pop %v906
    %909 = vrot.lane.b32.xlu0 %v907, 32
    %v910 = vpop.permute.xlu0 %909
    %v912 = vmul.f32 %v894, %v910
    %v913 = vxor.u32 %v815, 2147483648
    %v914 = vmul.f32 %v913, 1.442695
    %v915 = vpow.pop %v914
    %v916 = vadd.f32 %v915, 1.0
    %v917 = vrcp.pop %v916
    %v918 = vmul.f32 1.0, %v917
    %v919 = vtanh.pop %v815
    %v920 = vmul.f32 %v918, %v692
    %922 = vrot.lane.b32.xlu0 %v919, 32
    %v923 = vpop.permute.xlu0 %922
    %v925 = vmul.f32 %v918, %v923
    %927 = vrot.lane.b32.xlu0 %v925, 32
    %v928 = vpop.permute.xlu0 %927
    %v930 = vadd.f32 %v920, %v928
    %v931 = vtanh.pop %v930
    %933 = vrot.lane.b32.xlu0 %v931, 32
    %v934 = vpop.permute.xlu0 %933
    %v936 = vmul.f32 %v918, %v934
    %938 = vrot.lane.b32.xlu0 %v884, 80
    %v939 = vpop.permute.xlu0 %938
    %v941 = vadd.f32 %v884, %v939
    %v942 = vxor.u32 %v941, 2147483648
    %v943 = vmul.f32 %v942, 1.442695
    %v944 = vpow.pop %v943
    %v945 = vadd.f32 %v944, 1.0
    %v946 = vrcp.pop %v945
    %v947 = vmul.f32 1.0, %v946
    %948 = vrot.lane.b32.xlu0 %v884, 48
    %v949 = vpop.permute.xlu0 %948
    %v951 = vmul.f32 %v947, %v949
    %953 = vrot.lane.b32.xlu0 %v951, 32
    %v954 = vpop.permute.xlu0 %953
    %v956 = vadd.f32 %v884, %v954
    %v957 = vtanh.pop %v956
    %v958 = vsub.f32 1.0, %v947
    %960 = vrot.lane.b32.xlu0 %v957, 112
    %v961 = vpop.permute.xlu0 %960
    %v963 = vmul.f32 %v958, %v961
    %v964 = vmul.f32 %v947, %v727
    %v965 = vadd.f32 %v963, %v964
    %967 = vrot.lane.b32.xlu0 %v886, 80
    %v968 = vpop.permute.xlu0 %967
    %v970 = vadd.f32 %v884, %v968
    %v971 = vxor.u32 %v970, 2147483648
    %v972 = vmul.f32 %v971, 1.442695
    %v973 = vpow.pop %v972
    %v974 = vadd.f32 %v973, 1.0
    %v975 = vrcp.pop %v974
    %v976 = vmul.f32 1.0, %v975
    %977 = vrot.lane.b32.xlu0 %v886, 48
    %v978 = vpop.permute.xlu0 %977
    %v980 = vmul.f32 %v976, %v978
    %982 = vrot.lane.b32.xlu0 %v980, 32
    %v983 = vpop.permute.xlu0 %982
    %v985 = vadd.f32 %v886, %v983
    %v986 = vtanh.pop %v985
    %v987 = vsub.f32 1.0, %v976
    %989 = vrot.lane.b32.xlu0 %v986, 112
    %v990 = vpop.permute.xlu0 %989
    %v992 = vmul.f32 %v987, %v990
    %v993 = vmul.f32 %v976, 0.0
    %v994 = vadd.f32 %v992, %v993
    %996 = vrot.lane.b32.xlu0 %v994, 16
    %v997 = vpop.permute.xlu0 %996
    %vm999 = vcmask 130048
    %1000 = vst.msk [vmem:[#allocation5] sm:$0xff] %vm999, %v997
    %1002 = vrot.lane.b32.xlu0 %v912, 64
    %v1003 = vpop.permute.xlu0 %1002
    %1006 = vrot.lane.b32.xlu0 %v936, 96
    %v1007 = vpop.permute.xlu0 %1006
    %1010 = vrot.lane.b32.xlu0 %v965, 48
    %v1011 = vpop.permute.xlu0 %1010
    %1013 = vrot.lane.b32.xlu0 %v994, 96
    %v1014 = vpop.permute.xlu0 %1013
    %v1016 = vsel %vm231, %v1003, %v1007
    %v1017 = vsel %vm233, %v1016, %v1011
    %v1018 = vsel %vm235, %v1017, %v1014
    %v1020 = vsel %vm258, %v1018, 0
    %1022 = vmatprep.subr.mxu0 0.0
    %1023 = vmatpush1.msra.mxu0 0.0
    %1024 = vmatprep.subr.mxu0 0.0
    %1025 = vmatpush1.msra.mxu0 0.0
    %1026 = vmatprep.subr.mxu0 0.0
    %1027 = vmatpush1.msra.mxu0 0.0
    %1028 = vmatprep.subr.mxu0 0.0
    %1029 = vmatpush1.msra.mxu0 0.0
    %1030 = vmatprep.subr.mxu0 %v77
    %1031 = vmatpush1.msra.mxu0 %v76
    %1032 = vmatprep.subr.mxu0 %v73
    %1033 = vmatpush1.msra.mxu0 %v72
    %1034 = vmatprep.subr.mxu0 %v69
    %1035 = vmatpush1.msra.mxu0 %v68
    %1036 = vmatprep.subr.mxu0 %v65
    %1037 = vmatpush1.msra.mxu0 %v64
    %1038 = vmatprep.subr.mxu0 %v61
    %1039 = vmatpush1.msra.mxu0 %v60
    %1040 = vmatprep.subr.mxu0 %v57
    %1041 = vmatpush1.msra.mxu0 %v56
    %1042 = vmatprep.subr.mxu0 %v53
    %1043 = vmatpush1.msra.mxu0 %v52
    %1044 = vmatprep.subr.mxu0 %v49
    %1045 = vmatpush1.msra.mxu0 %v48
    %1046 = vmatprep.subr.mxu0 %v45
    %1047 = vmatpush1.msra.mxu0 %v44
    %1048 = vmatprep.subr.mxu0 %v41
    %1049 = vmatpush1.msra.mxu0 %v40
    %1050 = vmatprep.subr.mxu0 %v37
    %1051 = vmatpush1.msra.mxu0 %v36
    %1052 = vmatprep.subr.mxu0 %v33
    %1053 = vmatpush1.msra.mxu0 %v32
    %1054 = vmatprep.subr.mxu0 0.0
    %1055 = vmatpush2.msra.mxu0 0.0
    %1056 = vmatprep.subr.mxu0 0.0
    %1057 = vmatpush2.msra.mxu0 0.0
    %1058 = vmatprep.subr.mxu0 0.0
    %1059 = vmatpush2.msra.mxu0 0.0
    %1060 = vmatprep.subr.mxu0 0.0
    %1061 = vmatpush2.msra.mxu0 0.0
    %1062 = vmatprep.subr.mxu0 0.0
    %1063 = vmatpush2.msra.mxu0 0.0
    %1064 = vmatprep.subr.mxu0 0.0
    %1065 = vmatpush2.msra.mxu0 0.0
    %1066 = vmatprep.subr.mxu0 0.0
    %1067 = vmatpush2.msra.mxu0 0.0
    %1068 = vmatprep.subr.mxu0 0.0
    %1069 = vmatpush2.msra.mxu0 0.0
    %1070 = vmatprep.subr.mxu0 0.0
    %1071 = vmatpush2.msra.mxu0 0.0
    %1072 = vmatprep.subr.mxu0 0.0
    %1073 = vmatpush2.msra.mxu0 0.0
    %1074 = vmatprep.subr.mxu0 0.0
    %1075 = vmatpush2.msra.mxu0 0.0
    %1076 = vmatprep.subr.mxu0 0.0
    %1077 = vmatpush2.msra.mxu0 0.0
    %1078 = vmatprep.subr.mxu0 0.0
    %1079 = vmatpush2.msra.mxu0 0.0
    %1080 = vmatprep.subr.mxu0 0.0
    %1081 = vmatpush2.msra.mxu0 0.0
    %1082 = vmatprep.subr.mxu0 0.0
    %1083 = vmatpush2.msra.mxu0 0.0
    %1084 = vmatprep.subr.mxu0 0.0
    %1085 = vmatpush2.msra.mxu0 0.0
    %1086 = vmatprep.mubr.f32.mxu0 0.0
    %1087 = vmatmul.mubr.f32.gmra.mxu0 %v1020
    %v1088 = vpop.f32.mrf.mxu0
    %v1089 = vadd.f32 %v241, %v1088
    %v1090 = vpop.f32.mrf.mxu0
    %v1091 = vadd.f32 %v245, %v1090
    %1092 = vdwg.mxu0
    %1093 = vmatprep.subr.mxu0 0.0
    %1094 = vmatpush1.msra.mxu0 0.0
    %1095 = vmatprep.subr.mxu0 0.0
    %1096 = vmatpush1.msra.mxu0 0.0
    %1097 = vmatprep.subr.mxu0 0.0
    %1098 = vmatpush1.msra.mxu0 0.0
    %1099 = vmatprep.subr.mxu0 0.0
    %1100 = vmatpush1.msra.mxu0 0.0
    %1101 = vmatprep.subr.mxu0 %v79
    %1102 = vmatpush1.msra.mxu0 %v78
    %1103 = vmatprep.subr.mxu0 %v75
    %1104 = vmatpush1.msra.mxu0 %v74
    %1105 = vmatprep.subr.mxu0 %v71
    %1106 = vmatpush1.msra.mxu0 %v70
    %1107 = vmatprep.subr.mxu0 %v67
    %1108 = vmatpush1.msra.mxu0 %v66
    %1109 = vmatprep.subr.mxu0 %v63
    %1110 = vmatpush1.msra.mxu0 %v62
    %1111 = vmatprep.subr.mxu0 %v59
    %1112 = vmatpush1.msra.mxu0 %v58
    %1113 = vmatprep.subr.mxu0 %v55
    %1114 = vmatpush1.msra.mxu0 %v54
    %1115 = vmatprep.subr.mxu0 %v51
    %1116 = vmatpush1.msra.mxu0 %v50
    %1117 = vmatprep.subr.mxu0 %v47
    %1118 = vmatpush1.msra.mxu0 %v46
    %1119 = vmatprep.subr.mxu0 %v43
    %1120 = vmatpush1.msra.mxu0 %v42
    %1121 = vmatprep.subr.mxu0 %v39
    %1122 = vmatpush1.msra.mxu0 %v38
    %1123 = vmatprep.subr.mxu0 %v35
    %1124 = vmatpush1.msra.mxu0 %v34
    %1125 = vmatprep.subr.mxu0 0.0
    %1126 = vmatpush2.msra.mxu0 0.0
    %1127 = vmatprep.subr.mxu0 0.0
    %1128 = vmatpush2.msra.mxu0 0.0
    %1129 = vmatprep.subr.mxu0 0.0
    %1130 = vmatpush2.msra.mxu0 0.0
    %1131 = vmatprep.subr.mxu0 0.0
    %1132 = vmatpush2.msra.mxu0 0.0
    %1133 = vmatprep.subr.mxu0 0.0
    %1134 = vmatpush2.msra.mxu0 0.0
    %1135 = vmatprep.subr.mxu0 0.0
    %1136 = vmatpush2.msra.mxu0 0.0
    %1137 = vmatprep.subr.mxu0 0.0
    %1138 = vmatpush2.msra.mxu0 0.0
    %1139 = vmatprep.subr.mxu0 0.0
    %1140 = vmatpush2.msra.mxu0 0.0
    %1141 = vmatprep.subr.mxu0 0.0
    %1142 = vmatpush2.msra.mxu0 0.0
    %1143 = vmatprep.subr.mxu0 0.0
    %1144 = vmatpush2.msra.mxu0 0.0
    %1145 = vmatprep.subr.mxu0 0.0
    %1146 = vmatpush2.msra.mxu0 0.0
    %1147 = vmatprep.subr.mxu0 0.0
    %1148 = vmatpush2.msra.mxu0 0.0
    %1149 = vmatprep.subr.mxu0 0.0
    %1150 = vmatpush2.msra.mxu0 0.0
    %1151 = vmatprep.subr.mxu0 0.0
    %1152 = vmatpush2.msra.mxu0 0.0
    %1153 = vmatprep.subr.mxu0 0.0
    %1154 = vmatpush2.msra.mxu0 0.0
    %1155 = vmatprep.subr.mxu0 0.0
    %1156 = vmatpush2.msra.mxu0 0.0
    %1157 = vmatprep.mubr.f32.mxu0 0.0
    %1158 = vmatmul.mubr.f32.gmra.mxu0 %v1020
    %v1159 = vpop.f32.mrf.mxu0
    %v1160 = vadd.f32 %v249, %v1159
    %v1161 = vpop.f32.mrf.mxu0
    %v1162 = vadd.f32 %v253, %v1161
    %1163 = vdwg.mxu0
    %v1164 = vadd.f32 %v1089, %v203
    %v1165 = vxor.u32 %v1164, 2147483648
    %v1166 = vmul.f32 %v1165, 1.442695
    %v1167 = vpow.pop %v1166
    %v1168 = vadd.f32 %v1167, 1.0
    %v1169 = vrcp.pop %v1168
    %v1170 = vmul.f32 1.0, %v1169
    %v1171 = vtanh.pop %v1164
    %v1172 = vmul.f32 %v1170, %v906
    %1174 = vrot.lane.b32.xlu0 %v1171, 32
    %v1175 = vpop.permute.xlu0 %1174
    %v1177 = vmul.f32 %v1170, %v1175
    %1179 = vrot.lane.b32.xlu0 %v1177, 32
    %v1180 = vpop.permute.xlu0 %1179
    %v1182 = vadd.f32 %v1172, %v1180
    %v1183 = vtanh.pop %v1182
    %1185 = vrot.lane.b32.xlu0 %v1183, 32
    %v1186 = vpop.permute.xlu0 %1185
    %v1188 = vmul.f32 %v1170, %v1186
    %v1189 = vxor.u32 %v1091, 2147483648
    %v1190 = vmul.f32 %v1189, 1.442695
    %v1191 = vpow.pop %v1190
    %v1192 = vadd.f32 %v1191, 1.0
    %v1193 = vrcp.pop %v1192
    %v1194 = vmul.f32 1.0, %v1193
    %v1195 = vtanh.pop %v1091
    %v1196 = vmul.f32 %v1194, %v930
    %1198 = vrot.lane.b32.xlu0 %v1195, 32
    %v1199 = vpop.permute.xlu0 %1198
    %v1201 = vmul.f32 %v1194, %v1199
    %1203 = vrot.lane.b32.xlu0 %v1201, 32
    %v1204 = vpop.permute.xlu0 %1203
    %v1206 = vadd.f32 %v1196, %v1204
    %v1207 = vtanh.pop %v1206
    %1209 = vrot.lane.b32.xlu0 %v1207, 32
    %v1210 = vpop.permute.xlu0 %1209
    %v1212 = vmul.f32 %v1194, %v1210
    %1214 = vrot.lane.b32.xlu0 %v1160, 80
    %v1215 = vpop.permute.xlu0 %1214
    %v1217 = vadd.f32 %v1160, %v1215
    %v1218 = vxor.u32 %v1217, 2147483648
    %v1219 = vmul.f32 %v1218, 1.442695
    %v1220 = vpow.pop %v1219
    %v1221 = vadd.f32 %v1220, 1.0
    %v1222 = vrcp.pop %v1221
    %v1223 = vmul.f32 1.0, %v1222
    %1224 = vrot.lane.b32.xlu0 %v1160, 48
    %v1225 = vpop.permute.xlu0 %1224
    %v1227 = vmul.f32 %v1223, %v1225
    %1229 = vrot.lane.b32.xlu0 %v1227, 32
    %v1230 = vpop.permute.xlu0 %1229
    %v1232 = vadd.f32 %v1160, %v1230
    %v1233 = vtanh.pop %v1232
    %v1234 = vsub.f32 1.0, %v1223
    %1236 = vrot.lane.b32.xlu0 %v1233, 112
    %v1237 = vpop.permute.xlu0 %1236
    %v1239 = vmul.f32 %v1234, %v1237
    %v1240 = vmul.f32 %v1223, %v965
    %v1241 = vadd.f32 %v1239, %v1240
    %1243 = vrot.lane.b32.xlu0 %v1162, 80
    %v1244 = vpop.permute.xlu0 %1243
    %v1246 = vadd.f32 %v1160, %v1244
    %v1247 = vxor.u32 %v1246, 2147483648
    %v1248 = vmul.f32 %v1247, 1.442695
    %v1249 = vpow.pop %v1248
    %v1250 = vadd.f32 %v1249, 1.0
    %v1251 = vrcp.pop %v1250
    %v1252 = vmul.f32 1.0, %v1251
    %1253 = vrot.lane.b32.xlu0 %v1162, 48
    %v1254 = vpop.permute.xlu0 %1253
    %v1256 = vmul.f32 %v1252, %v1254
    %1258 = vrot.lane.b32.xlu0 %v1256, 32
    %v1259 = vpop.permute.xlu0 %1258
    %v1261 = vadd.f32 %v1162, %v1259
    %v1262 = vtanh.pop %v1261
    %v1263 = vsub.f32 1.0, %v1252
    %1265 = vrot.lane.b32.xlu0 %v1262, 112
    %v1266 = vpop.permute.xlu0 %1265
    %v1268 = vmul.f32 %v1263, %v1266
    %v1269 = vmul.f32 %v1252, %v994
    %v1270 = vadd.f32 %v1268, %v1269
    %1272 = vrot.lane.b32.xlu0 %v1270, 32
    %v1273 = vpop.permute.xlu0 %1272
    %vm1275 = vcmask 261248
    %1276 = vst.msk [vmem:[#allocation5] sm:$0xff] %vm1275, %v1273
    %1278 = vrot.lane.b32.xlu0 %v1188, 64
    %v1279 = vpop.permute.xlu0 %1278
    %1282 = vrot.lane.b32.xlu0 %v1212, 96
    %v1283 = vpop.permute.xlu0 %1282
    %1286 = vrot.lane.b32.xlu0 %v1241, 48
    %v1287 = vpop.permute.xlu0 %1286
    %1289 = vrot.lane.b32.xlu0 %v1270, 96
    %v1290 = vpop.permute.xlu0 %1289
    %v1292 = vsel %vm231, %v1279, %v1283
    %v1293 = vsel %vm233, %v1292, %v1287
    %v1294 = vsel %vm235, %v1293, %v1290
    %v1296 = vsel %vm258, %v1294, 0
    %1298 = vmatprep.subr.mxu0 0.0
    %1299 = vmatpush1.msra.mxu0 0.0
    %1300 = vmatprep.subr.mxu0 0.0
    %1301 = vmatpush1.msra.mxu0 0.0
    %1302 = vmatprep.subr.mxu0 0.0
    %1303 = vmatpush1.msra.mxu0 0.0
    %1304 = vmatprep.subr.mxu0 0.0
    %1305 = vmatpush1.msra.mxu0 0.0
    %1306 = vmatprep.subr.mxu0 %v77
    %1307 = vmatpush1.msra.mxu0 %v76
    %1308 = vmatprep.subr.mxu0 %v73
    %1309 = vmatpush1.msra.mxu0 %v72
    %1310 = vmatprep.subr.mxu0 %v69
    %1311 = vmatpush1.msra.mxu0 %v68
    %1312 = vmatprep.subr.mxu0 %v65
    %1313 = vmatpush1.msra.mxu0 %v64
    %1314 = vmatprep.subr.mxu0 %v61
    %1315 = vmatpush1.msra.mxu0 %v60
    %1316 = vmatprep.subr.mxu0 %v57
    %1317 = vmatpush1.msra.mxu0 %v56
    %1318 = vmatprep.subr.mxu0 %v53
    %1319 = vmatpush1.msra.mxu0 %v52
    %1320 = vmatprep.subr.mxu0 %v49
    %1321 = vmatpush1.msra.mxu0 %v48
    %1322 = vmatprep.subr.mxu0 %v45
    %1323 = vmatpush1.msra.mxu0 %v44
    %1324 = vmatprep.subr.mxu0 %v41
    %1325 = vmatpush1.msra.mxu0 %v40
    %1326 = vmatprep.subr.mxu0 %v37
    %1327 = vmatpush1.msra.mxu0 %v36
    %1328 = vmatprep.subr.mxu0 %v33
    %1329 = vmatpush1.msra.mxu0 %v32
    %1330 = vmatprep.subr.mxu0 0.0
    %1331 = vmatpush2.msra.mxu0 0.0
    %1332 = vmatprep.subr.mxu0 0.0
    %1333 = vmatpush2.msra.mxu0 0.0
    %1334 = vmatprep.subr.mxu0 0.0
    %1335 = vmatpush2.msra.mxu0 0.0
    %1336 = vmatprep.subr.mxu0 0.0
    %1337 = vmatpush2.msra.mxu0 0.0
    %1338 = vmatprep.subr.mxu0 0.0
    %1339 = vmatpush2.msra.mxu0 0.0
    %1340 = vmatprep.subr.mxu0 0.0
    %1341 = vmatpush2.msra.mxu0 0.0
    %1342 = vmatprep.subr.mxu0 0.0
    %1343 = vmatpush2.msra.mxu0 0.0
    %1344 = vmatprep.subr.mxu0 0.0
    %1345 = vmatpush2.msra.mxu0 0.0
    %1346 = vmatprep.subr.mxu0 0.0
    %1347 = vmatpush2.msra.mxu0 0.0
    %1348 = vmatprep.subr.mxu0 0.0
    %1349 = vmatpush2.msra.mxu0 0.0
    %1350 = vmatprep.subr.mxu0 0.0
    %1351 = vmatpush2.msra.mxu0 0.0
    %1352 = vmatprep.subr.mxu0 0.0
    %1353 = vmatpush2.msra.mxu0 0.0
    %1354 = vmatprep.subr.mxu0 0.0
    %1355 = vmatpush2.msra.mxu0 0.0
    %1356 = vmatprep.subr.mxu0 0.0
    %1357 = vmatpush2.msra.mxu0 0.0
    %1358 = vmatprep.subr.mxu0 0.0
    %1359 = vmatpush2.msra.mxu0 0.0
    %1360 = vmatprep.subr.mxu0 0.0
    %1361 = vmatpush2.msra.mxu0 0.0
    %1362 = vmatprep.mubr.f32.mxu0 0.0
    %1363 = vmatmul.mubr.f32.gmra.mxu0 %v1296
    %v1364 = vpop.f32.mrf.mxu0
    %v1365 = vadd.f32 %v241, %v1364
    %v1366 = vpop.f32.mrf.mxu0
    %v1367 = vadd.f32 %v245, %v1366
    %1368 = vdwg.mxu0
    %1369 = vmatprep.subr.mxu0 0.0
    %1370 = vmatpush1.msra.mxu0 0.0
    %1371 = vmatprep.subr.mxu0 0.0
    %1372 = vmatpush1.msra.mxu0 0.0
    %1373 = vmatprep.subr.mxu0 0.0
    %1374 = vmatpush1.msra.mxu0 0.0
    %1375 = vmatprep.subr.mxu0 0.0
    %1376 = vmatpush1.msra.mxu0 0.0
    %1377 = vmatprep.subr.mxu0 %v79
    %1378 = vmatpush1.msra.mxu0 %v78
    %1379 = vmatprep.subr.mxu0 %v75
    %1380 = vmatpush1.msra.mxu0 %v74
    %1381 = vmatprep.subr.mxu0 %v71
    %1382 = vmatpush1.msra.mxu0 %v70
    %1383 = vmatprep.subr.mxu0 %v67
    %1384 = vmatpush1.msra.mxu0 %v66
    %1385 = vmatprep.subr.mxu0 %v63
    %1386 = vmatpush1.msra.mxu0 %v62
    %1387 = vmatprep.subr.mxu0 %v59
    %1388 = vmatpush1.msra.mxu0 %v58
    %1389 = vmatprep.subr.mxu0 %v55
    %1390 = vmatpush1.msra.mxu0 %v54
    %1391 = vmatprep.subr.mxu0 %v51
    %1392 = vmatpush1.msra.mxu0 %v50
    %1393 = vmatprep.subr.mxu0 %v47
    %1394 = vmatpush1.msra.mxu0 %v46
    %1395 = vmatprep.subr.mxu0 %v43
    %1396 = vmatpush1.msra.mxu0 %v42
    %1397 = vmatprep.subr.mxu0 %v39
    %1398 = vmatpush1.msra.mxu0 %v38
    %1399 = vmatprep.subr.mxu0 %v35
    %1400 = vmatpush1.msra.mxu0 %v34
    %1401 = vmatprep.subr.mxu0 0.0
    %1402 = vmatpush2.msra.mxu0 0.0
    %1403 = vmatprep.subr.mxu0 0.0
    %1404 = vmatpush2.msra.mxu0 0.0
    %1405 = vmatprep.subr.mxu0 0.0
    %1406 = vmatpush2.msra.mxu0 0.0
    %1407 = vmatprep.subr.mxu0 0.0
    %1408 = vmatpush2.msra.mxu0 0.0
    %1409 = vmatprep.subr.mxu0 0.0
    %1410 = vmatpush2.msra.mxu0 0.0
    %1411 = vmatprep.subr.mxu0 0.0
    %1412 = vmatpush2.msra.mxu0 0.0
    %1413 = vmatprep.subr.mxu0 0.0
    %1414 = vmatpush2.msra.mxu0 0.0
    %1415 = vmatprep.subr.mxu0 0.0
    %1416 = vmatpush2.msra.mxu0 0.0
    %1417 = vmatprep.subr.mxu0 0.0
    %1418 = vmatpush2.msra.mxu0 0.0
    %1419 = vmatprep.subr.mxu0 0.0
    %1420 = vmatpush2.msra.mxu0 0.0
    %1421 = vmatprep.subr.mxu0 0.0
    %1422 = vmatpush2.msra.mxu0 0.0
    %1423 = vmatprep.subr.mxu0 0.0
    %1424 = vmatpush2.msra.mxu0 0.0
    %1425 = vmatprep.subr.mxu0 0.0
    %1426 = vmatpush2.msra.mxu0 0.0
    %1427 = vmatprep.subr.mxu0 0.0
    %1428 = vmatpush2.msra.mxu0 0.0
    %1429 = vmatprep.subr.mxu0 0.0
    %1430 = vmatpush2.msra.mxu0 0.0
    %1431 = vmatprep.subr.mxu0 0.0
    %1432 = vmatpush2.msra.mxu0 0.0
    %1433 = vmatprep.mubr.f32.mxu0 0.0
    %1434 = vmatmul.mubr.f32.gmra.mxu0 %v1296
    %v1435 = vpop.f32.mrf.mxu0
    %v1436 = vadd.f32 %v249, %v1435
    %v1437 = vpop.f32.mrf.mxu0
    %v1438 = vadd.f32 %v253, %v1437
    %1439 = vdwg.mxu0
    %v1440 = vadd.f32 %v1365, %v208
    %v1441 = vxor.u32 %v1440, 2147483648
    %v1442 = vmul.f32 %v1441, 1.442695
    %v1443 = vpow.pop %v1442
    %v1444 = vadd.f32 %v1443, 1.0
    %v1445 = vrcp.pop %v1444
    %v1446 = vmul.f32 1.0, %v1445
    %v1447 = vtanh.pop %v1440
    %v1448 = vmul.f32 %v1446, %v1182
    %1450 = vrot.lane.b32.xlu0 %v1447, 32
    %v1451 = vpop.permute.xlu0 %1450
    %v1453 = vmul.f32 %v1446, %v1451
    %1455 = vrot.lane.b32.xlu0 %v1453, 32
    %v1456 = vpop.permute.xlu0 %1455
    %v1458 = vadd.f32 %v1448, %v1456
    %v1459 = vtanh.pop %v1458
    %1461 = vrot.lane.b32.xlu0 %v1459, 32
    %v1462 = vpop.permute.xlu0 %1461
    %v1464 = vmul.f32 %v1446, %v1462
    %v1465 = vxor.u32 %v1367, 2147483648
    %v1466 = vmul.f32 %v1465, 1.442695
    %v1467 = vpow.pop %v1466
    %v1468 = vadd.f32 %v1467, 1.0
    %v1469 = vrcp.pop %v1468
    %v1470 = vmul.f32 1.0, %v1469
    %v1471 = vtanh.pop %v1367
    %v1472 = vmul.f32 %v1470, %v1206
    %1474 = vrot.lane.b32.xlu0 %v1471, 32
    %v1475 = vpop.permute.xlu0 %1474
    %v1477 = vmul.f32 %v1470, %v1475
    %1479 = vrot.lane.b32.xlu0 %v1477, 32
    %v1480 = vpop.permute.xlu0 %1479
    %v1482 = vadd.f32 %v1472, %v1480
    %v1483 = vtanh.pop %v1482
    %1485 = vrot.lane.b32.xlu0 %v1483, 32
    %v1486 = vpop.permute.xlu0 %1485
    %v1488 = vmul.f32 %v1470, %v1486
    %1490 = vrot.lane.b32.xlu0 %v1436, 80
    %v1491 = vpop.permute.xlu0 %1490
    %v1493 = vadd.f32 %v1436, %v1491
    %v1494 = vxor.u32 %v1493, 2147483648
    %v1495 = vmul.f32 %v1494, 1.442695
    %v1496 = vpow.pop %v1495
    %v1497 = vadd.f32 %v1496, 1.0
    %v1498 = vrcp.pop %v1497
    %v1499 = vmul.f32 1.0, %v1498
    %1500 = vrot.lane.b32.xlu0 %v1436, 48
    %v1501 = vpop.permute.xlu0 %1500
    %v1503 = vmul.f32 %v1499, %v1501
    %1505 = vrot.lane.b32.xlu0 %v1503, 32
    %v1506 = vpop.permute.xlu0 %1505
    %v1508 = vadd.f32 %v1436, %v1506
    %v1509 = vtanh.pop %v1508
    %v1510 = vsub.f32 1.0, %v1499
    %1512 = vrot.lane.b32.xlu0 %v1509, 112
    %v1513 = vpop.permute.xlu0 %1512
    %v1515 = vmul.f32 %v1510, %v1513
    %v1516 = vmul.f32 %v1499, %v1241
    %v1517 = vadd.f32 %v1515, %v1516
    %1519 = vrot.lane.b32.xlu0 %v1438, 80
    %v1520 = vpop.permute.xlu0 %1519
    %v1522 = vadd.f32 %v1436, %v1520
    %v1523 = vxor.u32 %v1522, 2147483648
    %v1524 = vmul.f32 %v1523, 1.442695
    %v1525 = vpow.pop %v1524
    %v1526 = vadd.f32 %v1525, 1.0
    %v1527 = vrcp.pop %v1526
    %v1528 = vmul.f32 1.0, %v1527
    %1529 = vrot.lane.b32.xlu0 %v1438, 48
    %v1530 = vpop.permute.xlu0 %1529
    %v1532 = vmul.f32 %v1528, %v1530
    %1534 = vrot.lane.b32.xlu0 %v1532, 32
    %v1535 = vpop.permute.xlu0 %1534
    %v1537 = vadd.f32 %v1438, %v1535
    %v1538 = vtanh.pop %v1537
    %v1539 = vsub.f32 1.0, %v1528
    %1541 = vrot.lane.b32.xlu0 %v1538, 112
    %v1542 = vpop.permute.xlu0 %1541
    %v1544 = vmul.f32 %v1539, %v1542
    %v1545 = vmul.f32 %v1528, %v1270
    %v1546 = vadd.f32 %v1544, %v1545
    %1548 = vrot.lane.b32.xlu0 %v1546, 48
    %v1549 = vpop.permute.xlu0 %1548
    %vm1551 = vcmask 392448
    %1552 = vst.msk [vmem:[#allocation5] sm:$0xff] %vm1551, %v1549
    %1554 = vrot.lane.b32.xlu0 %v1464, 64
    %v1555 = vpop.permute.xlu0 %1554
    %1558 = vrot.lane.b32.xlu0 %v1488, 96
    %v1559 = vpop.permute.xlu0 %1558
    %1562 = vrot.lane.b32.xlu0 %v1517, 48
    %v1563 = vpop.permute.xlu0 %1562
    %1565 = vrot.lane.b32.xlu0 %v1546, 96
    %v1566 = vpop.permute.xlu0 %1565
    %v1568 = vsel %vm231, %v1555, %v1559
    %v1569 = vsel %vm233, %v1568, %v1563
    %v1570 = vsel %vm235, %v1569, %v1566
    %v1572 = vsel %vm258, %v1570, 0
    %1574 = vmatprep.subr.mxu0 0.0
    %1575 = vmatpush1.msra.mxu0 0.0
    %1576 = vmatprep.subr.mxu0 0.0
    %1577 = vmatpush1.msra.mxu0 0.0
    %1578 = vmatprep.subr.mxu0 0.0
    %1579 = vmatpush1.msra.mxu0 0.0
    %1580 = vmatprep.subr.mxu0 0.0
    %1581 = vmatpush1.msra.mxu0 0.0
    %1582 = vmatprep.subr.mxu0 %v77
    %1583 = vmatpush1.msra.mxu0 %v76
    %1584 = vmatprep.subr.mxu0 %v73
    %1585 = vmatpush1.msra.mxu0 %v72
    %1586 = vmatprep.subr.mxu0 %v69
    %1587 = vmatpush1.msra.mxu0 %v68
    %1588 = vmatprep.subr.mxu0 %v65
    %1589 = vmatpush1.msra.mxu0 %v64
    %1590 = vmatprep.subr.mxu0 %v61
    %1591 = vmatpush1.msra.mxu0 %v60
    %1592 = vmatprep.subr.mxu0 %v57
    %1593 = vmatpush1.msra.mxu0 %v56
    %1594 = vmatprep.subr.mxu0 %v53
    %1595 = vmatpush1.msra.mxu0 %v52
    %1596 = vmatprep.subr.mxu0 %v49
    %1597 = vmatpush1.msra.mxu0 %v48
    %1598 = vmatprep.subr.mxu0 %v45
    %1599 = vmatpush1.msra.mxu0 %v44
    %1600 = vmatprep.subr.mxu0 %v41
    %1601 = vmatpush1.msra.mxu0 %v40
    %1602 = vmatprep.subr.mxu0 %v37
    %1603 = vmatpush1.msra.mxu0 %v36
    %1604 = vmatprep.subr.mxu0 %v33
    %1605 = vmatpush1.msra.mxu0 %v32
    %1606 = vmatprep.subr.mxu0 0.0
    %1607 = vmatpush2.msra.mxu0 0.0
    %1608 = vmatprep.subr.mxu0 0.0
    %1609 = vmatpush2.msra.mxu0 0.0
    %1610 = vmatprep.subr.mxu0 0.0
    %1611 = vmatpush2.msra.mxu0 0.0
    %1612 = vmatprep.subr.mxu0 0.0
    %1613 = vmatpush2.msra.mxu0 0.0
    %1614 = vmatprep.subr.mxu0 0.0
    %1615 = vmatpush2.msra.mxu0 0.0
    %1616 = vmatprep.subr.mxu0 0.0
    %1617 = vmatpush2.msra.mxu0 0.0
    %1618 = vmatprep.subr.mxu0 0.0
    %1619 = vmatpush2.msra.mxu0 0.0
    %1620 = vmatprep.subr.mxu0 0.0
    %1621 = vmatpush2.msra.mxu0 0.0
    %1622 = vmatprep.subr.mxu0 0.0
    %1623 = vmatpush2.msra.mxu0 0.0
    %1624 = vmatprep.subr.mxu0 0.0
    %1625 = vmatpush2.msra.mxu0 0.0
    %1626 = vmatprep.subr.mxu0 0.0
    %1627 = vmatpush2.msra.mxu0 0.0
    %1628 = vmatprep.subr.mxu0 0.0
    %1629 = vmatpush2.msra.mxu0 0.0
    %1630 = vmatprep.subr.mxu0 0.0
    %1631 = vmatpush2.msra.mxu0 0.0
    %1632 = vmatprep.subr.mxu0 0.0
    %1633 = vmatpush2.msra.mxu0 0.0
    %1634 = vmatprep.subr.mxu0 0.0
    %1635 = vmatpush2.msra.mxu0 0.0
    %1636 = vmatprep.subr.mxu0 0.0
    %1637 = vmatpush2.msra.mxu0 0.0
    %1638 = vmatprep.mubr.f32.mxu0 0.0
    %1639 = vmatmul.mubr.f32.gmra.mxu0 %v1572
    %v1640 = vpop.f32.mrf.mxu0
    %v1641 = vadd.f32 %v241, %v1640
    %v1642 = vpop.f32.mrf.mxu0
    %v1643 = vadd.f32 %v245, %v1642
    %1644 = vdwg.mxu0
    %1645 = vmatprep.subr.mxu0 0.0
    %1646 = vmatpush1.msra.mxu0 0.0
    %1647 = vmatprep.subr.mxu0 0.0
    %1648 = vmatpush1.msra.mxu0 0.0
    %1649 = vmatprep.subr.mxu0 0.0
    %1650 = vmatpush1.msra.mxu0 0.0
    %1651 = vmatprep.subr.mxu0 0.0
    %1652 = vmatpush1.msra.mxu0 0.0
    %1653 = vmatprep.subr.mxu0 %v79
    %1654 = vmatpush1.msra.mxu0 %v78
    %1655 = vmatprep.subr.mxu0 %v75
    %1656 = vmatpush1.msra.mxu0 %v74
    %1657 = vmatprep.subr.mxu0 %v71
    %1658 = vmatpush1.msra.mxu0 %v70
    %1659 = vmatprep.subr.mxu0 %v67
    %1660 = vmatpush1.msra.mxu0 %v66
    %1661 = vmatprep.subr.mxu0 %v63
    %1662 = vmatpush1.msra.mxu0 %v62
    %1663 = vmatprep.subr.mxu0 %v59
    %1664 = vmatpush1.msra.mxu0 %v58
    %1665 = vmatprep.subr.mxu0 %v55
    %1666 = vmatpush1.msra.mxu0 %v54
    %1667 = vmatprep.subr.mxu0 %v51
    %1668 = vmatpush1.msra.mxu0 %v50
    %1669 = vmatprep.subr.mxu0 %v47
    %1670 = vmatpush1.msra.mxu0 %v46
    %1671 = vmatprep.subr.mxu0 %v43
    %1672 = vmatpush1.msra.mxu0 %v42
    %1673 = vmatprep.subr.mxu0 %v39
    %1674 = vmatpush1.msra.mxu0 %v38
    %1675 = vmatprep.subr.mxu0 %v35
    %1676 = vmatpush1.msra.mxu0 %v34
    %1677 = vmatprep.subr.mxu0 0.0
    %1678 = vmatpush2.msra.mxu0 0.0
    %1679 = vmatprep.subr.mxu0 0.0
    %1680 = vmatpush2.msra.mxu0 0.0
    %1681 = vmatprep.subr.mxu0 0.0
    %1682 = vmatpush2.msra.mxu0 0.0
    %1683 = vmatprep.subr.mxu0 0.0
    %1684 = vmatpush2.msra.mxu0 0.0
    %1685 = vmatprep.subr.mxu0 0.0
    %1686 = vmatpush2.msra.mxu0 0.0
    %1687 = vmatprep.subr.mxu0 0.0
    %1688 = vmatpush2.msra.mxu0 0.0
    %1689 = vmatprep.subr.mxu0 0.0
    %1690 = vmatpush2.msra.mxu0 0.0
    %1691 = vmatprep.subr.mxu0 0.0
    %1692 = vmatpush2.msra.mxu0 0.0
    %1693 = vmatprep.subr.mxu0 0.0
    %1694 = vmatpush2.msra.mxu0 0.0
    %1695 = vmatprep.subr.mxu0 0.0
    %1696 = vmatpush2.msra.mxu0 0.0
    %1697 = vmatprep.subr.mxu0 0.0
    %1698 = vmatpush2.msra.mxu0 0.0
    %1699 = vmatprep.subr.mxu0 0.0
    %1700 = vmatpush2.msra.mxu0 0.0
    %1701 = vmatprep.subr.mxu0 0.0
    %1702 = vmatpush2.msra.mxu0 0.0
    %1703 = vmatprep.subr.mxu0 0.0
    %1704 = vmatpush2.msra.mxu0 0.0
    %1705 = vmatprep.subr.mxu0 0.0
    %1706 = vmatpush2.msra.mxu0 0.0
    %1707 = vmatprep.subr.mxu0 0.0
    %1708 = vmatpush2.msra.mxu0 0.0
    %1709 = vmatprep.mubr.f32.mxu0 0.0
    %1710 = vmatmul.mubr.f32.gmra.mxu0 %v1572
    %v1711 = vpop.f32.mrf.mxu0
    %v1712 = vadd.f32 %v249, %v1711
    %v1713 = vpop.f32.mrf.mxu0
    %v1714 = vadd.f32 %v253, %v1713
    %1715 = vdwg.mxu0
    %v1716 = vadd.f32 %v1641, %v213
    %v1717 = vxor.u32 %v1716, 2147483648
    %v1718 = vmul.f32 %v1717, 1.442695
    %v1719 = vpow.pop %v1718
    %v1720 = vadd.f32 %v1719, 1.0
    %v1721 = vrcp.pop %v1720
    %v1722 = vmul.f32 1.0, %v1721
    %v1723 = vtanh.pop %v1716
    %v1724 = vmul.f32 %v1722, %v1458
    %1726 = vrot.lane.b32.xlu0 %v1723, 32
    %v1727 = vpop.permute.xlu0 %1726
    %v1729 = vmul.f32 %v1722, %v1727
    %1731 = vrot.lane.b32.xlu0 %v1729, 32
    %v1732 = vpop.permute.xlu0 %1731
    %v1734 = vadd.f32 %v1724, %v1732
    %v1735 = vtanh.pop %v1734
    %1737 = vrot.lane.b32.xlu0 %v1735, 32
    %v1738 = vpop.permute.xlu0 %1737
    %v1740 = vmul.f32 %v1722, %v1738
    %v1741 = vxor.u32 %v1643, 2147483648
    %v1742 = vmul.f32 %v1741, 1.442695
    %v1743 = vpow.pop %v1742
    %v1744 = vadd.f32 %v1743, 1.0
    %v1745 = vrcp.pop %v1744
    %v1746 = vmul.f32 1.0, %v1745
    %v1747 = vtanh.pop %v1643
    %v1748 = vmul.f32 %v1746, %v1482
    %1750 = vrot.lane.b32.xlu0 %v1747, 32
    %v1751 = vpop.permute.xlu0 %1750
    %v1753 = vmul.f32 %v1746, %v1751
    %1755 = vrot.lane.b32.xlu0 %v1753, 32
    %v1756 = vpop.permute.xlu0 %1755
    %v1758 = vadd.f32 %v1748, %v1756
    %v1759 = vtanh.pop %v1758
    %1761 = vrot.lane.b32.xlu0 %v1759, 32
    %v1762 = vpop.permute.xlu0 %1761
    %v1764 = vmul.f32 %v1746, %v1762
    %1766 = vrot.lane.b32.xlu0 %v1712, 80
    %v1767 = vpop.permute.xlu0 %1766
    %v1769 = vadd.f32 %v1712, %v1767
    %v1770 = vxor.u32 %v1769, 2147483648
    %v1771 = vmul.f32 %v1770, 1.442695
    %v1772 = vpow.pop %v1771
    %v1773 = vadd.f32 %v1772, 1.0
    %v1774 = vrcp.pop %v1773
    %v1775 = vmul.f32 1.0, %v1774
    %1776 = vrot.lane.b32.xlu0 %v1712, 48
    %v1777 = vpop.permute.xlu0 %1776
    %v1779 = vmul.f32 %v1775, %v1777
    %1781 = vrot.lane.b32.xlu0 %v1779, 32
    %v1782 = vpop.permute.xlu0 %1781
    %v1784 = vadd.f32 %v1712, %v1782
    %v1785 = vtanh.pop %v1784
    %v1786 = vsub.f32 1.0, %v1775
    %1788 = vrot.lane.b32.xlu0 %v1785, 112
    %v1789 = vpop.permute.xlu0 %1788
    %v1791 = vmul.f32 %v1786, %v1789
    %v1792 = vmul.f32 %v1775, %v1517
    %v1793 = vadd.f32 %v1791, %v1792
    %1795 = vrot.lane.b32.xlu0 %v1714, 80
    %v1796 = vpop.permute.xlu0 %1795
    %v1798 = vadd.f32 %v1712, %v1796
    %v1799 = vxor.u32 %v1798, 2147483648
    %v1800 = vmul.f32 %v1799, 1.442695
    %v1801 = vpow.pop %v1800
    %v1802 = vadd.f32 %v1801, 1.0
    %v1803 = vrcp.pop %v1802
    %v1804 = vmul.f32 1.0, %v1803
    %1805 = vrot.lane.b32.xlu0 %v1714, 48
    %v1806 = vpop.permute.xlu0 %1805
    %v1808 = vmul.f32 %v1804, %v1806
    %1810 = vrot.lane.b32.xlu0 %v1808, 32
    %v1811 = vpop.permute.xlu0 %1810
    %v1813 = vadd.f32 %v1714, %v1811
    %v1814 = vtanh.pop %v1813
    %v1815 = vsub.f32 1.0, %v1804
    %1817 = vrot.lane.b32.xlu0 %v1814, 112
    %v1818 = vpop.permute.xlu0 %1817
    %v1820 = vmul.f32 %v1815, %v1818
    %v1821 = vmul.f32 %v1804, %v1546
    %v1822 = vadd.f32 %v1820, %v1821
    %1824 = vrot.lane.b32.xlu0 %v1822, 64
    %v1825 = vpop.permute.xlu0 %1824
    %vm1827 = vcmask 523648
    %1828 = vst.msk [vmem:[#allocation5] sm:$0xff] %vm1827, %v1825
    %1830 = vrot.lane.b32.xlu0 %v1740, 64
    %v1831 = vpop.permute.xlu0 %1830
    %1834 = vrot.lane.b32.xlu0 %v1764, 96
    %v1835 = vpop.permute.xlu0 %1834
    %1838 = vrot.lane.b32.xlu0 %v1793, 48
    %v1839 = vpop.permute.xlu0 %1838
    %1841 = vrot.lane.b32.xlu0 %v1822, 96
    %v1842 = vpop.permute.xlu0 %1841
    %v1844 = vsel %vm231, %v1831, %v1835
    %v1845 = vsel %vm233, %v1844, %v1839
    %v1846 = vsel %vm235, %v1845, %v1842
    %v1848 = vsel %vm258, %v1846, 0
    %1850 = vmatprep.subr.mxu0 0.0
    %1851 = vmatpush1.msra.mxu0 0.0
    %1852 = vmatprep.subr.mxu0 0.0
    %1853 = vmatpush1.msra.mxu0 0.0
    %1854 = vmatprep.subr.mxu0 0.0
    %1855 = vmatpush1.msra.mxu0 0.0
    %1856 = vmatprep.subr.mxu0 0.0
    %1857 = vmatpush1.msra.mxu0 0.0
    %1858 = vmatprep.subr.mxu0 %v77
    %1859 = vmatpush1.msra.mxu0 %v76
    %1860 = vmatprep.subr.mxu0 %v73
    %1861 = vmatpush1.msra.mxu0 %v72
    %1862 = vmatprep.subr.mxu0 %v69
    %1863 = vmatpush1.msra.mxu0 %v68
    %1864 = vmatprep.subr.mxu0 %v65
    %1865 = vmatpush1.msra.mxu0 %v64
    %1866 = vmatprep.subr.mxu0 %v61
    %1867 = vmatpush1.msra.mxu0 %v60
    %1868 = vmatprep.subr.mxu0 %v57
    %1869 = vmatpush1.msra.mxu0 %v56
    %1870 = vmatprep.subr.mxu0 %v53
    %1871 = vmatpush1.msra.mxu0 %v52
    %1872 = vmatprep.subr.mxu0 %v49
    %1873 = vmatpush1.msra.mxu0 %v48
    %1874 = vmatprep.subr.mxu0 %v45
    %1875 = vmatpush1.msra.mxu0 %v44
    %1876 = vmatprep.subr.mxu0 %v41
    %1877 = vmatpush1.msra.mxu0 %v40
    %1878 = vmatprep.subr.mxu0 %v37
    %1879 = vmatpush1.msra.mxu0 %v36
    %1880 = vmatprep.subr.mxu0 %v33
    %1881 = vmatpush1.msra.mxu0 %v32
    %1882 = vmatprep.subr.mxu0 0.0
    %1883 = vmatpush2.msra.mxu0 0.0
    %1884 = vmatprep.subr.mxu0 0.0
    %1885 = vmatpush2.msra.mxu0 0.0
    %1886 = vmatprep.subr.mxu0 0.0
    %1887 = vmatpush2.msra.mxu0 0.0
    %1888 = vmatprep.subr.mxu0 0.0
    %1889 = vmatpush2.msra.mxu0 0.0
    %1890 = vmatprep.subr.mxu0 0.0
    %1891 = vmatpush2.msra.mxu0 0.0
    %1892 = vmatprep.subr.mxu0 0.0
    %1893 = vmatpush2.msra.mxu0 0.0
    %1894 = vmatprep.subr.mxu0 0.0
    %1895 = vmatpush2.msra.mxu0 0.0
    %1896 = vmatprep.subr.mxu0 0.0
    %1897 = vmatpush2.msra.mxu0 0.0
    %1898 = vmatprep.subr.mxu0 0.0
    %1899 = vmatpush2.msra.mxu0 0.0
    %1900 = vmatprep.subr.mxu0 0.0
    %1901 = vmatpush2.msra.mxu0 0.0
    %1902 = vmatprep.subr.mxu0 0.0
    %1903 = vmatpush2.msra.mxu0 0.0
    %1904 = vmatprep.subr.mxu0 0.0
    %1905 = vmatpush2.msra.mxu0 0.0
    %1906 = vmatprep.subr.mxu0 0.0
    %1907 = vmatpush2.msra.mxu0 0.0
    %1908 = vmatprep.subr.mxu0 0.0
    %1909 = vmatpush2.msra.mxu0 0.0
    %1910 = vmatprep.subr.mxu0 0.0
    %1911 = vmatpush2.msra.mxu0 0.0
    %1912 = vmatprep.subr.mxu0 0.0
    %1913 = vmatpush2.msra.mxu0 0.0
    %1914 = vmatprep.mubr.f32.mxu0 0.0
    %1915 = vmatmul.mubr.f32.gmra.mxu0 %v1848
    %v1916 = vpop.f32.mrf.mxu0
    %v1917 = vadd.f32 %v241, %v1916
    %v1918 = vpop.f32.mrf.mxu0
    %v1919 = vadd.f32 %v245, %v1918
    %1920 = vdwg.mxu0
    %1921 = vmatprep.subr.mxu0 0.0
    %1922 = vmatpush1.msra.mxu0 0.0
    %1923 = vmatprep.subr.mxu0 0.0
    %1924 = vmatpush1.msra.mxu0 0.0
    %1925 = vmatprep.subr.mxu0 0.0
    %1926 = vmatpush1.msra.mxu0 0.0
    %1927 = vmatprep.subr.mxu0 0.0
    %1928 = vmatpush1.msra.mxu0 0.0
    %1929 = vmatprep.subr.mxu0 %v79
    %1930 = vmatpush1.msra.mxu0 %v78
    %1931 = vmatprep.subr.mxu0 %v75
    %1932 = vmatpush1.msra.mxu0 %v74
    %1933 = vmatprep.subr.mxu0 %v71
    %1934 = vmatpush1.msra.mxu0 %v70
    %1935 = vmatprep.subr.mxu0 %v67
    %1936 = vmatpush1.msra.mxu0 %v66
    %1937 = vmatprep.subr.mxu0 %v63
    %1938 = vmatpush1.msra.mxu0 %v62
    %1939 = vmatprep.subr.mxu0 %v59
    %1940 = vmatpush1.msra.mxu0 %v58
    %1941 = vmatprep.subr.mxu0 %v55
    %1942 = vmatpush1.msra.mxu0 %v54
    %1943 = vmatprep.subr.mxu0 %v51
    %1944 = vmatpush1.msra.mxu0 %v50
    %1945 = vmatprep.subr.mxu0 %v47
    %1946 = vmatpush1.msra.mxu0 %v46
    %1947 = vmatprep.subr.mxu0 %v43
    %1948 = vmatpush1.msra.mxu0 %v42
    %1949 = vmatprep.subr.mxu0 %v39
    %1950 = vmatpush1.msra.mxu0 %v38
    %1951 = vmatprep.subr.mxu0 %v35
    %1952 = vmatpush1.msra.mxu0 %v34
    %1953 = vmatprep.subr.mxu0 0.0
    %1954 = vmatpush2.msra.mxu0 0.0
    %1955 = vmatprep.subr.mxu0 0.0
    %1956 = vmatpush2.msra.mxu0 0.0
    %1957 = vmatprep.subr.mxu0 0.0
    %1958 = vmatpush2.msra.mxu0 0.0
    %1959 = vmatprep.subr.mxu0 0.0
    %1960 = vmatpush2.msra.mxu0 0.0
    %1961 = vmatprep.subr.mxu0 0.0
    %1962 = vmatpush2.msra.mxu0 0.0
    %1963 = vmatprep.subr.mxu0 0.0
    %1964 = vmatpush2.msra.mxu0 0.0
    %1965 = vmatprep.subr.mxu0 0.0
    %1966 = vmatpush2.msra.mxu0 0.0
    %1967 = vmatprep.subr.mxu0 0.0
    %1968 = vmatpush2.msra.mxu0 0.0
    %1969 = vmatprep.subr.mxu0 0.0
    %1970 = vmatpush2.msra.mxu0 0.0
    %1971 = vmatprep.subr.mxu0 0.0
    %1972 = vmatpush2.msra.mxu0 0.0
    %1973 = vmatprep.subr.mxu0 0.0
    %1974 = vmatpush2.msra.mxu0 0.0
    %1975 = vmatprep.subr.mxu0 0.0
    %1976 = vmatpush2.msra.mxu0 0.0
    %1977 = vmatprep.subr.mxu0 0.0
    %1978 = vmatpush2.msra.mxu0 0.0
    %1979 = vmatprep.subr.mxu0 0.0
    %1980 = vmatpush2.msra.mxu0 0.0
    %1981 = vmatprep.subr.mxu0 0.0
    %1982 = vmatpush2.msra.mxu0 0.0
    %1983 = vmatprep.subr.mxu0 0.0
    %1984 = vmatpush2.msra.mxu0 0.0
    %1985 = vmatprep.mubr.f32.mxu0 0.0
    %1986 = vmatmul.mubr.f32.gmra.mxu0 %v1848
    %v1987 = vpop.f32.mrf.mxu0
    %v1988 = vadd.f32 %v249, %v1987
    %v1989 = vpop.f32.mrf.mxu0
    %v1990 = vadd.f32 %v253, %v1989
    %1991 = vdwg.mxu0
    %v1992 = vadd.f32 %v1917, %v218
    %v1993 = vxor.u32 %v1992, 2147483648
    %v1994 = vmul.f32 %v1993, 1.442695
    %v1995 = vpow.pop %v1994
    %v1996 = vadd.f32 %v1995, 1.0
    %v1997 = vrcp.pop %v1996
    %v1998 = vmul.f32 1.0, %v1997
    %v1999 = vtanh.pop %v1992
    %v2000 = vmul.f32 %v1998, %v1734
    %2002 = vrot.lane.b32.xlu0 %v1999, 32
    %v2003 = vpop.permute.xlu0 %2002
    %v2005 = vmul.f32 %v1998, %v2003
    %2007 = vrot.lane.b32.xlu0 %v2005, 32
    %v2008 = vpop.permute.xlu0 %2007
    %v2010 = vadd.f32 %v2000, %v2008
    %v2011 = vtanh.pop %v2010
    %2013 = vrot.lane.b32.xlu0 %v2011, 32
    %v2014 = vpop.permute.xlu0 %2013
    %v2016 = vmul.f32 %v1998, %v2014
    %v2017 = vxor.u32 %v1919, 2147483648
    %v2018 = vmul.f32 %v2017, 1.442695
    %v2019 = vpow.pop %v2018
    %v2020 = vadd.f32 %v2019, 1.0
    %v2021 = vrcp.pop %v2020
    %v2022 = vmul.f32 1.0, %v2021
    %v2023 = vtanh.pop %v1919
    %v2024 = vmul.f32 %v2022, %v1758
    %2026 = vrot.lane.b32.xlu0 %v2023, 32
    %v2027 = vpop.permute.xlu0 %2026
    %v2029 = vmul.f32 %v2022, %v2027
    %2031 = vrot.lane.b32.xlu0 %v2029, 32
    %v2032 = vpop.permute.xlu0 %2031
    %v2034 = vadd.f32 %v2024, %v2032
    %v2035 = vtanh.pop %v2034
    %2037 = vrot.lane.b32.xlu0 %v2035, 32
    %v2038 = vpop.permute.xlu0 %2037
    %v2040 = vmul.f32 %v2022, %v2038
    %2042 = vrot.lane.b32.xlu0 %v1988, 80
    %v2043 = vpop.permute.xlu0 %2042
    %v2045 = vadd.f32 %v1988, %v2043
    %v2046 = vxor.u32 %v2045, 2147483648
    %v2047 = vmul.f32 %v2046, 1.442695
    %v2048 = vpow.pop %v2047
    %v2049 = vadd.f32 %v2048, 1.0
    %v2050 = vrcp.pop %v2049
    %v2051 = vmul.f32 1.0, %v2050
    %2052 = vrot.lane.b32.xlu0 %v1988, 48
    %v2053 = vpop.permute.xlu0 %2052
    %v2055 = vmul.f32 %v2051, %v2053
    %2057 = vrot.lane.b32.xlu0 %v2055, 32
    %v2058 = vpop.permute.xlu0 %2057
    %v2060 = vadd.f32 %v1988, %v2058
    %v2061 = vtanh.pop %v2060
    %v2062 = vsub.f32 1.0, %v2051
    %2064 = vrot.lane.b32.xlu0 %v2061, 112
    %v2065 = vpop.permute.xlu0 %2064
    %v2067 = vmul.f32 %v2062, %v2065
    %v2068 = vmul.f32 %v2051, %v1793
    %v2069 = vadd.f32 %v2067, %v2068
    %2071 = vrot.lane.b32.xlu0 %v1990, 80
    %v2072 = vpop.permute.xlu0 %2071
    %v2074 = vadd.f32 %v1988, %v2072
    %v2075 = vxor.u32 %v2074, 2147483648
    %v2076 = vmul.f32 %v2075, 1.442695
    %v2077 = vpow.pop %v2076
    %v2078 = vadd.f32 %v2077, 1.0
    %v2079 = vrcp.pop %v2078
    %v2080 = vmul.f32 1.0, %v2079
    %2081 = vrot.lane.b32.xlu0 %v1990, 48
    %v2082 = vpop.permute.xlu0 %2081
    %v2084 = vmul.f32 %v2080, %v2082
    %2086 = vrot.lane.b32.xlu0 %v2084, 32
    %v2087 = vpop.permute.xlu0 %2086
    %v2089 = vadd.f32 %v1990, %v2087
    %v2090 = vtanh.pop %v2089
    %v2091 = vsub.f32 1.0, %v2080
    %2093 = vrot.lane.b32.xlu0 %v2090, 112
    %v2094 = vpop.permute.xlu0 %2093
    %v2096 = vmul.f32 %v2091, %v2094
    %v2097 = vmul.f32 %v2080, %v1822
    %v2098 = vadd.f32 %v2096, %v2097
    %2100 = vrot.lane.b32.xlu0 %v2098, 80
    %v2101 = vpop.permute.xlu0 %2100
    %vm2103 = vcmask 654848
    %2104 = vst.msk [vmem:[#allocation5] sm:$0xff] %vm2103, %v2101
    %2106 = vrot.lane.b32.xlu0 %v2016, 64
    %v2107 = vpop.permute.xlu0 %2106
    %2110 = vrot.lane.b32.xlu0 %v2040, 96
    %v2111 = vpop.permute.xlu0 %2110
    %2114 = vrot.lane.b32.xlu0 %v2069, 48
    %v2115 = vpop.permute.xlu0 %2114
    %2117 = vrot.lane.b32.xlu0 %v2098, 96
    %v2118 = vpop.permute.xlu0 %2117
    %v2120 = vsel %vm231, %v2107, %v2111
    %v2121 = vsel %vm233, %v2120, %v2115
    %v2122 = vsel %vm235, %v2121, %v2118
    %v2124 = vsel %vm258, %v2122, 0
    %2126 = vmatprep.subr.mxu0 0.0
    %2127 = vmatpush1.msra.mxu0 0.0
    %2128 = vmatprep.subr.mxu0 0.0
    %2129 = vmatpush1.msra.mxu0 0.0
    %2130 = vmatprep.subr.mxu0 0.0
    %2131 = vmatpush1.msra.mxu0 0.0
    %2132 = vmatprep.subr.mxu0 0.0
    %2133 = vmatpush1.msra.mxu0 0.0
    %2134 = vmatprep.subr.mxu0 %v77
    %2135 = vmatpush1.msra.mxu0 %v76
    %2136 = vmatprep.subr.mxu0 %v73
    %2137 = vmatpush1.msra.mxu0 %v72
    %2138 = vmatprep.subr.mxu0 %v69
    %2139 = vmatpush1.msra.mxu0 %v68
    %2140 = vmatprep.subr.mxu0 %v65
    %2141 = vmatpush1.msra.mxu0 %v64
    %2142 = vmatprep.subr.mxu0 %v61
    %2143 = vmatpush1.msra.mxu0 %v60
    %2144 = vmatprep.subr.mxu0 %v57
    %2145 = vmatpush1.msra.mxu0 %v56
    %2146 = vmatprep.subr.mxu0 %v53
    %2147 = vmatpush1.msra.mxu0 %v52
    %2148 = vmatprep.subr.mxu0 %v49
    %2149 = vmatpush1.msra.mxu0 %v48
    %2150 = vmatprep.subr.mxu0 %v45
    %2151 = vmatpush1.msra.mxu0 %v44
    %2152 = vmatprep.subr.mxu0 %v41
    %2153 = vmatpush1.msra.mxu0 %v40
    %2154 = vmatprep.subr.mxu0 %v37
    %2155 = vmatpush1.msra.mxu0 %v36
    %2156 = vmatprep.subr.mxu0 %v33
    %2157 = vmatpush1.msra.mxu0 %v32
    %2158 = vmatprep.subr.mxu0 0.0
    %2159 = vmatpush2.msra.mxu0 0.0
    %2160 = vmatprep.subr.mxu0 0.0
    %2161 = vmatpush2.msra.mxu0 0.0
    %2162 = vmatprep.subr.mxu0 0.0
    %2163 = vmatpush2.msra.mxu0 0.0
    %2164 = vmatprep.subr.mxu0 0.0
    %2165 = vmatpush2.msra.mxu0 0.0
    %2166 = vmatprep.subr.mxu0 0.0
    %2167 = vmatpush2.msra.mxu0 0.0
    %2168 = vmatprep.subr.mxu0 0.0
    %2169 = vmatpush2.msra.mxu0 0.0
    %2170 = vmatprep.subr.mxu0 0.0
    %2171 = vmatpush2.msra.mxu0 0.0
    %2172 = vmatprep.subr.mxu0 0.0
    %2173 = vmatpush2.msra.mxu0 0.0
    %2174 = vmatprep.subr.mxu0 0.0
    %2175 = vmatpush2.msra.mxu0 0.0
    %2176 = vmatprep.subr.mxu0 0.0
    %2177 = vmatpush2.msra.mxu0 0.0
    %2178 = vmatprep.subr.mxu0 0.0
    %2179 = vmatpush2.msra.mxu0 0.0
    %2180 = vmatprep.subr.mxu0 0.0
    %2181 = vmatpush2.msra.mxu0 0.0
    %2182 = vmatprep.subr.mxu0 0.0
    %2183 = vmatpush2.msra.mxu0 0.0
    %2184 = vmatprep.subr.mxu0 0.0
    %2185 = vmatpush2.msra.mxu0 0.0
    %2186 = vmatprep.subr.mxu0 0.0
    %2187 = vmatpush2.msra.mxu0 0.0
    %2188 = vmatprep.subr.mxu0 0.0
    %2189 = vmatpush2.msra.mxu0 0.0
    %2190 = vmatprep.mubr.f32.mxu0 0.0
    %2191 = vmatmul.mubr.f32.gmra.mxu0 %v2124
    %v2192 = vpop.f32.mrf.mxu0
    %v2193 = vpop.f32.mrf.mxu0
    %v2194 = vadd.f32 %v245, %v2193
    %2195 = vdwg.mxu0
    %2196 = vmatprep.subr.mxu0 0.0
    %2197 = vmatpush1.msra.mxu0 0.0
    %2198 = vmatprep.subr.mxu0 0.0
    %2199 = vmatpush1.msra.mxu0 0.0
    %2200 = vmatprep.subr.mxu0 0.0
    %2201 = vmatpush1.msra.mxu0 0.0
    %2202 = vmatprep.subr.mxu0 0.0
    %2203 = vmatpush1.msra.mxu0 0.0
    %2204 = vmatprep.subr.mxu0 %v79
    %2205 = vmatpush1.msra.mxu0 %v78
    %2206 = vmatprep.subr.mxu0 %v75
    %2207 = vmatpush1.msra.mxu0 %v74
    %2208 = vmatprep.subr.mxu0 %v71
    %2209 = vmatpush1.msra.mxu0 %v70
    %2210 = vmatprep.subr.mxu0 %v67
    %2211 = vmatpush1.msra.mxu0 %v66
    %2212 = vmatprep.subr.mxu0 %v63
    %2213 = vmatpush1.msra.mxu0 %v62
    %2214 = vmatprep.subr.mxu0 %v59
    %2215 = vmatpush1.msra.mxu0 %v58
    %2216 = vmatprep.subr.mxu0 %v55
    %2217 = vmatpush1.msra.mxu0 %v54
    %2218 = vmatprep.subr.mxu0 %v51
    %2219 = vmatpush1.msra.mxu0 %v50
    %2220 = vmatprep.subr.mxu0 %v47
    %2221 = vmatpush1.msra.mxu0 %v46
    %2222 = vmatprep.subr.mxu0 %v43
    %2223 = vmatpush1.msra.mxu0 %v42
    %2224 = vmatprep.subr.mxu0 %v39
    %2225 = vmatpush1.msra.mxu0 %v38
    %2226 = vmatprep.subr.mxu0 %v35
    %2227 = vmatpush1.msra.mxu0 %v34
    %2228 = vmatprep.subr.mxu0 0.0
    %2229 = vmatpush2.msra.mxu0 0.0
    %2230 = vmatprep.subr.mxu0 0.0
    %2231 = vmatpush2.msra.mxu0 0.0
    %2232 = vmatprep.subr.mxu0 0.0
    %2233 = vmatpush2.msra.mxu0 0.0
    %2234 = vmatprep.subr.mxu0 0.0
    %2235 = vmatpush2.msra.mxu0 0.0
    %2236 = vmatprep.subr.mxu0 0.0
    %2237 = vmatpush2.msra.mxu0 0.0
    %2238 = vmatprep.subr.mxu0 0.0
    %2239 = vmatpush2.msra.mxu0 0.0
    %2240 = vmatprep.subr.mxu0 0.0
    %2241 = vmatpush2.msra.mxu0 0.0
    %2242 = vmatprep.subr.mxu0 0.0
    %2243 = vmatpush2.msra.mxu0 0.0
    %2244 = vmatprep.subr.mxu0 0.0
    %2245 = vmatpush2.msra.mxu0 0.0
    %2246 = vmatprep.subr.mxu0 0.0
    %2247 = vmatpush2.msra.mxu0 0.0
    %2248 = vmatprep.subr.mxu0 0.0
    %2249 = vmatpush2.msra.mxu0 0.0
    %2250 = vmatprep.subr.mxu0 0.0
    %2251 = vmatpush2.msra.mxu0 0.0
    %2252 = vmatprep.subr.mxu0 0.0
    %2253 = vmatpush2.msra.mxu0 0.0
    %2254 = vmatprep.subr.mxu0 0.0
    %2255 = vmatpush2.msra.mxu0 0.0
    %2256 = vmatprep.subr.mxu0 0.0
    %2257 = vmatpush2.msra.mxu0 0.0
    %2258 = vmatprep.subr.mxu0 0.0
    %2259 = vmatpush2.msra.mxu0 0.0
    %2260 = vmatprep.mubr.f32.mxu0 0.0
    %2261 = vmatmul.mubr.f32.gmra.mxu0 %v2124
    %v2262 = vpop.f32.mrf.mxu0
    %v2263 = vadd.f32 %v249, %v2262
    %v2264 = vpop.f32.mrf.mxu0
    %v2265 = vadd.f32 %v253, %v2264
    %2266 = vdwg.mxu0
    %v2267 = vxor.u32 %v2194, 2147483648
    %v2268 = vmul.f32 %v2267, 1.442695
    %v2269 = vpow.pop %v2268
    %v2270 = vadd.f32 %v2269, 1.0
    %v2271 = vrcp.pop %v2270
    %v2272 = vmul.f32 1.0, %v2271
    %v2273 = vtanh.pop %v2194
    %v2274 = vmul.f32 %v2272, %v2034
    %2276 = vrot.lane.b32.xlu0 %v2273, 32
    %v2277 = vpop.permute.xlu0 %2276
    %v2279 = vmul.f32 %v2272, %v2277
    %2281 = vrot.lane.b32.xlu0 %v2279, 32
    %v2282 = vpop.permute.xlu0 %2281
    %v2284 = vadd.f32 %v2274, %v2282
    %v2285 = vtanh.pop %v2284
    %2287 = vrot.lane.b32.xlu0 %v2285, 32
    %v2288 = vpop.permute.xlu0 %2287
    %v2290 = vmul.f32 %v2272, %v2288
    %2292 = vrot.lane.b32.xlu0 %v2263, 80
    %v2293 = vpop.permute.xlu0 %2292
    %v2295 = vadd.f32 %v2263, %v2293
    %v2296 = vxor.u32 %v2295, 2147483648
    %v2297 = vmul.f32 %v2296, 1.442695
    %v2298 = vpow.pop %v2297
    %v2299 = vadd.f32 %v2298, 1.0
    %v2300 = vrcp.pop %v2299
    %v2301 = vmul.f32 1.0, %v2300
    %2302 = vrot.lane.b32.xlu0 %v2263, 48
    %v2303 = vpop.permute.xlu0 %2302
    %v2305 = vmul.f32 %v2301, %v2303
    %2307 = vrot.lane.b32.xlu0 %v2305, 32
    %v2308 = vpop.permute.xlu0 %2307
    %v2310 = vadd.f32 %v2263, %v2308
    %v2311 = vtanh.pop %v2310
    %v2312 = vsub.f32 1.0, %v2301
    %2314 = vrot.lane.b32.xlu0 %v2311, 112
    %v2315 = vpop.permute.xlu0 %2314
    %v2317 = vmul.f32 %v2312, %v2315
    %v2318 = vmul.f32 %v2301, %v2069
    %v2319 = vadd.f32 %v2317, %v2318
    %2321 = vrot.lane.b32.xlu0 %v2265, 80
    %v2322 = vpop.permute.xlu0 %2321
    %v2324 = vadd.f32 %v2263, %v2322
    %v2325 = vxor.u32 %v2324, 2147483648
    %v2326 = vmul.f32 %v2325, 1.442695
    %v2327 = vpow.pop %v2326
    %v2328 = vadd.f32 %v2327, 1.0
    %v2329 = vrcp.pop %v2328
    %v2330 = vmul.f32 1.0, %v2329
    %2331 = vrot.lane.b32.xlu0 %v2265, 48
    %v2332 = vpop.permute.xlu0 %2331
    %v2334 = vmul.f32 %v2330, %v2332
    %2336 = vrot.lane.b32.xlu0 %v2334, 32
    %v2337 = vpop.permute.xlu0 %2336
    %v2339 = vadd.f32 %v2265, %v2337
    %v2340 = vtanh.pop %v2339
    %v2341 = vsub.f32 1.0, %v2330
    %2343 = vrot.lane.b32.xlu0 %v2340, 112
    %v2344 = vpop.permute.xlu0 %2343
    %v2346 = vmul.f32 %v2341, %v2344
    %v2347 = vmul.f32 %v2330, %v2098
    %v2348 = vadd.f32 %v2346, %v2347
    %2350 = vrot.lane.b32.xlu0 %v2348, 96
    %v2351 = vpop.permute.xlu0 %2350
    %vm2353 = vcmask 786048
    %2354 = vst.msk [vmem:[#allocation5] sm:$0xff] %vm2353, %v2351
    %2356 = vrot.lane.b32.xlu0 %v2290, 96
    %v2357 = vpop.permute.xlu0 %2356
    %2360 = vrot.lane.b32.xlu0 %v2319, 48
    %v2361 = vpop.permute.xlu0 %2360
    %v2363 = vsel %vm231, %v2107, %v2357
    %v2364 = vsel %vm233, %v2363, %v2361
    %v2365 = vsel %vm235, %v2364, %v2351
    %v2367 = vsel %vm258, %v2365, 0
    %2369 = vmatprep.subr.mxu0 0.0
    %2370 = vmatpush1.msra.mxu0 0.0
    %2371 = vmatprep.subr.mxu0 0.0
    %2372 = vmatpush1.msra.mxu0 0.0
    %2373 = vmatprep.subr.mxu0 0.0
    %2374 = vmatpush1.msra.mxu0 0.0
    %2375 = vmatprep.subr.mxu0 0.0
    %2376 = vmatpush1.msra.mxu0 0.0
    %2377 = vmatprep.subr.mxu0 %v79
    %2378 = vmatpush1.msra.mxu0 %v78
    %2379 = vmatprep.subr.mxu0 %v75
    %2380 = vmatpush1.msra.mxu0 %v74
    %2381 = vmatprep.subr.mxu0 %v71
    %2382 = vmatpush1.msra.mxu0 %v70
    %2383 = vmatprep.subr.mxu0 %v67
    %2384 = vmatpush1.msra.mxu0 %v66
    %2385 = vmatprep.subr.mxu0 %v63
    %2386 = vmatpush1.msra.mxu0 %v62
    %2387 = vmatprep.subr.mxu0 %v59
    %2388 = vmatpush1.msra.mxu0 %v58
    %2389 = vmatprep.subr.mxu0 %v55
    %2390 = vmatpush1.msra.mxu0 %v54
    %2391 = vmatprep.subr.mxu0 %v51
    %2392 = vmatpush1.msra.mxu0 %v50
    %2393 = vmatprep.subr.mxu0 %v47
    %2394 = vmatpush1.msra.mxu0 %v46
    %2395 = vmatprep.subr.mxu0 %v43
    %2396 = vmatpush1.msra.mxu0 %v42
    %2397 = vmatprep.subr.mxu0 %v39
    %2398 = vmatpush1.msra.mxu0 %v38
    %2399 = vmatprep.subr.mxu0 %v35
    %2400 = vmatpush1.msra.mxu0 %v34
    %2401 = vmatprep.subr.mxu0 0.0
    %2402 = vmatpush2.msra.mxu0 0.0
    %2403 = vmatprep.subr.mxu0 0.0
    %2404 = vmatpush2.msra.mxu0 0.0
    %2405 = vmatprep.subr.mxu0 0.0
    %2406 = vmatpush2.msra.mxu0 0.0
    %2407 = vmatprep.subr.mxu0 0.0
    %2408 = vmatpush2.msra.mxu0 0.0
    %2409 = vmatprep.subr.mxu0 0.0
    %2410 = vmatpush2.msra.mxu0 0.0
    %2411 = vmatprep.subr.mxu0 0.0
    %2412 = vmatpush2.msra.mxu0 0.0
    %2413 = vmatprep.subr.mxu0 0.0
    %2414 = vmatpush2.msra.mxu0 0.0
    %2415 = vmatprep.subr.mxu0 0.0
    %2416 = vmatpush2.msra.mxu0 0.0
    %2417 = vmatprep.subr.mxu0 0.0
    %2418 = vmatpush2.msra.mxu0 0.0
    %2419 = vmatprep.subr.mxu0 0.0
    %2420 = vmatpush2.msra.mxu0 0.0
    %2421 = vmatprep.subr.mxu0 0.0
    %2422 = vmatpush2.msra.mxu0 0.0
    %2423 = vmatprep.subr.mxu0 0.0
    %2424 = vmatpush2.msra.mxu0 0.0
    %2425 = vmatprep.subr.mxu0 0.0
    %2426 = vmatpush2.msra.mxu0 0.0
    %2427 = vmatprep.subr.mxu0 0.0
    %2428 = vmatpush2.msra.mxu0 0.0
    %2429 = vmatprep.subr.mxu0 0.0
    %2430 = vmatpush2.msra.mxu0 0.0
    %2431 = vmatprep.subr.mxu0 0.0
    %2432 = vmatpush2.msra.mxu0 0.0
    %2433 = vmatprep.mubr.f32.mxu0 0.0
    %2434 = vmatmul.mubr.f32.gmra.mxu0 %v2367
    %v2435 = vpop.f32.mrf.mxu0
    %v2436 = vadd.f32 %v249, %v2435
    %v2437 = vpop.f32.mrf.mxu0
    %v2438 = vadd.f32 %v253, %v2437
    %2439 = vdwg.mxu0
    %2441 = vrot.lane.b32.xlu0 %v2436, 80
    %v2442 = vpop.permute.xlu0 %2441
    %v2444 = vadd.f32 %v2436, %v2442
    %v2445 = vxor.u32 %v2444, 2147483648
    %v2446 = vmul.f32 %v2445, 1.442695
    %v2447 = vpow.pop %v2446
    %v2448 = vadd.f32 %v2447, 1.0
    %v2449 = vrcp.pop %v2448
    %v2450 = vmul.f32 1.0, %v2449
    %2451 = vrot.lane.b32.xlu0 %v2436, 48
    %v2452 = vpop.permute.xlu0 %2451
    %v2454 = vmul.f32 %v2450, %v2452
    %2456 = vrot.lane.b32.xlu0 %v2454, 32
    %v2457 = vpop.permute.xlu0 %2456
    %v2459 = vadd.f32 %v2436, %v2457
    %v2460 = vtanh.pop %v2459
    %v2461 = vsub.f32 1.0, %v2450
    %2463 = vrot.lane.b32.xlu0 %v2460, 112
    %v2464 = vpop.permute.xlu0 %2463
    %v2466 = vmul.f32 %v2461, %v2464
    %v2467 = vmul.f32 %v2450, %v2319
    %v2468 = vadd.f32 %v2466, %v2467
    %2470 = vrot.lane.b32.xlu0 %v2438, 80
    %v2471 = vpop.permute.xlu0 %2470
    %v2473 = vadd.f32 %v2436, %v2471
    %v2474 = vxor.u32 %v2473, 2147483648
    %v2475 = vmul.f32 %v2474, 1.442695
    %v2476 = vpow.pop %v2475
    %v2477 = vadd.f32 %v2476, 1.0
    %v2478 = vrcp.pop %v2477
    %v2479 = vmul.f32 1.0, %v2478
    %2480 = vrot.lane.b32.xlu0 %v2438, 48
    %v2481 = vpop.permute.xlu0 %2480
    %v2483 = vmul.f32 %v2479, %v2481
    %2485 = vrot.lane.b32.xlu0 %v2483, 32
    %v2486 = vpop.permute.xlu0 %2485
    %v2488 = vadd.f32 %v2438, %v2486
    %v2489 = vtanh.pop %v2488
    %v2490 = vsub.f32 1.0, %v2479
    %2492 = vrot.lane.b32.xlu0 %v2489, 112
    %v2493 = vpop.permute.xlu0 %2492
    %v2495 = vmul.f32 %v2490, %v2493
    %v2496 = vmul.f32 %v2479, %v2348
    %v2497 = vadd.f32 %v2495, %v2496
    %2499 = vrot.lane.b32.xlu0 %v2497, 112
    %v2500 = vpop.permute.xlu0 %2499
    %vm2502 = vcmask 917248
    %2503 = vst.msk [vmem:[#allocation5] sm:$0xff] %vm2502, %v2500
    %2505 = vrot.lane.b32.xlu0 %v2468, 48
    %v2506 = vpop.permute.xlu0 %2505
    %2508 = vrot.lane.b32.xlu0 %v2497, 96
    %v2509 = vpop.permute.xlu0 %2508
    %v2511 = vsel %vm233, %v2363, %v2506
    %v2512 = vsel %vm235, %v2511, %v2509
    %v2514 = vsel %vm258, %v2512, 0
    %2516 = vmatprep.subr.mxu0 0.0
    %2517 = vmatpush1.msra.mxu0 0.0
    %2518 = vmatprep.subr.mxu0 0.0
    %2519 = vmatpush1.msra.mxu0 0.0
    %2520 = vmatprep.subr.mxu0 0.0
    %2521 = vmatpush1.msra.mxu0 0.0
    %2522 = vmatprep.subr.mxu0 0.0
    %2523 = vmatpush1.msra.mxu0 0.0
    %2524 = vmatprep.subr.mxu0 %v79
    %2525 = vmatpush1.msra.mxu0 %v78
    %2526 = vmatprep.subr.mxu0 %v75
    %2527 = vmatpush1.msra.mxu0 %v74
    %2528 = vmatprep.subr.mxu0 %v71
    %2529 = vmatpush1.msra.mxu0 %v70
    %2530 = vmatprep.subr.mxu0 %v67
    %2531 = vmatpush1.msra.mxu0 %v66
    %2532 = vmatprep.subr.mxu0 %v63
    %2533 = vmatpush1.msra.mxu0 %v62
    %2534 = vmatprep.subr.mxu0 %v59
    %2535 = vmatpush1.msra.mxu0 %v58
    %2536 = vmatprep.subr.mxu0 %v55
    %2537 = vmatpush1.msra.mxu0 %v54
    %2538 = vmatprep.subr.mxu0 %v51
    %2539 = vmatpush1.msra.mxu0 %v50
    %2540 = vmatprep.subr.mxu0 %v47
    %2541 = vmatpush1.msra.mxu0 %v46
    %2542 = vmatprep.subr.mxu0 %v43
    %2543 = vmatpush1.msra.mxu0 %v42
    %2544 = vmatprep.subr.mxu0 %v39
    %2545 = vmatpush1.msra.mxu0 %v38
    %2546 = vmatprep.subr.mxu0 %v35
    %2547 = vmatpush1.msra.mxu0 %v34
    %2548 = vmatprep.subr.mxu0 0.0
    %2549 = vmatpush2.msra.mxu0 0.0
    %2550 = vmatprep.subr.mxu0 0.0
    %2551 = vmatpush2.msra.mxu0 0.0
    %2552 = vmatprep.subr.mxu0 0.0
    %2553 = vmatpush2.msra.mxu0 0.0
    %2554 = vmatprep.subr.mxu0 0.0
    %2555 = vmatpush2.msra.mxu0 0.0
    %2556 = vmatprep.subr.mxu0 0.0
    %2557 = vmatpush2.msra.mxu0 0.0
    %2558 = vmatprep.subr.mxu0 0.0
    %2559 = vmatpush2.msra.mxu0 0.0
    %2560 = vmatprep.subr.mxu0 0.0
    %2561 = vmatpush2.msra.mxu0 0.0
    %2562 = vmatprep.subr.mxu0 0.0
    %2563 = vmatpush2.msra.mxu0 0.0
    %2564 = vmatprep.subr.mxu0 0.0
    %2565 = vmatpush2.msra.mxu0 0.0
    %2566 = vmatprep.subr.mxu0 0.0
    %2567 = vmatpush2.msra.mxu0 0.0
    %2568 = vmatprep.subr.mxu0 0.0
    %2569 = vmatpush2.msra.mxu0 0.0
    %2570 = vmatprep.subr.mxu0 0.0
    %2571 = vmatpush2.msra.mxu0 0.0
    %2572 = vmatprep.subr.mxu0 0.0
    %2573 = vmatpush2.msra.mxu0 0.0
    %2574 = vmatprep.subr.mxu0 0.0
    %2575 = vmatpush2.msra.mxu0 0.0
    %2576 = vmatprep.subr.mxu0 0.0
    %2577 = vmatpush2.msra.mxu0 0.0
    %2578 = vmatprep.subr.mxu0 0.0
    %2579 = vmatpush2.msra.mxu0 0.0
    %2580 = vmatprep.mubr.f32.mxu0 0.0
    %2581 = vmatmul.mubr.f32.gmra.mxu0 %v2514
    %v2582 = vpop.f32.mrf.mxu0
    %v2583 = vadd.f32 %v249, %v2582
    %v2584 = vpop.f32.mrf.mxu0
    %v2585 = vadd.f32 %v253, %v2584
    %2586 = vdwg.mxu0
    %2588 = vrot.lane.b32.xlu0 %v2585, 80
    %v2589 = vpop.permute.xlu0 %2588
    %v2591 = vadd.f32 %v2583, %v2589
    %v2592 = vxor.u32 %v2591, 2147483648
    %v2593 = vmul.f32 %v2592, 1.442695
    %v2594 = vpow.pop %v2593
    %v2595 = vadd.f32 %v2594, 1.0
    %v2596 = vrcp.pop %v2595
    %v2597 = vmul.f32 1.0, %v2596
    %2598 = vrot.lane.b32.xlu0 %v2585, 48
    %v2599 = vpop.permute.xlu0 %2598
    %v2601 = vmul.f32 %v2597, %v2599
    %2603 = vrot.lane.b32.xlu0 %v2601, 32
    %v2604 = vpop.permute.xlu0 %2603
    %v2606 = vadd.f32 %v2585, %v2604
    %v2607 = vtanh.pop %v2606
    %v2608 = vsub.f32 1.0, %v2597
    %2610 = vrot.lane.b32.xlu0 %v2607, 112
    %v2611 = vpop.permute.xlu0 %2610
    %v2613 = vmul.f32 %v2608, %v2611
    %v2614 = vmul.f32 %v2597, %v2497
    %v2615 = vadd.f32 %v2613, %v2614
    %vm2616 = vcmask 1048448
    %2617 = vst.msk [vmem:[#allocation5] sm:$0xff] %vm2616, %v2615
    // Predicated region
    $region22: #{tpu_custom_call.1} parent=1 // pred_check
      _
    $region23: #{tpu_custom_call.1} parent=1 // pred_check_branch
      %2619 = sbr.rel (0) target = $region25
    $region24: #{tpu_custom_call.1} parent=1 // pred_region
      %s2621 = ssub.s32 128, 128
      %2622 = vsyncadd [#allocation4], %s2621
      %s2624 = sshll.u32 [#allocation5], 4
      %s2625 = int_to_ptr.vmem [resolvable:$true] %s2624
      %2627 = dma.vmem_to_hbm [thread:$0]  %s2625, 128, %s4, [#allocation4]
    $region25: #{tpu_custom_call.1} parent=1 // pred_fallthru
      _
    // Predicated region
    $region26: #{tpu_custom_call.1} parent=1 // pred_check
      _
    $region27: #{tpu_custom_call.1} parent=1 // pred_check_branch
      %2629 = sbr.rel (0) target = $region29
    $region28: #{tpu_custom_call.1} parent=1 // pred_region
      %2630 = dma.done [#allocation4], 128
    $region29: #{tpu_custom_call.1} parent=1 // pred_fallthru
      _
    %2631 = vsyncpa [#allocation3], 1
    %2632 = vsyncpa [#allocation4], 1

</llo_original>
